<compile_context>
chip_gen: v7x
topology: tpu7x:2x2x1
jax: 0.10.0
libtpu: 0.0.40
codegen_flags: <defaults>
</compile_context>

<pallas_src>
import math

import jax
import jax.numpy as jnp
from jax import lax
from jax.experimental import pallas as pl
from jax.experimental.pallas import tpu as pltpu

# ----------------------------- configuration --------------------------------
B = 2            # batch
N_CH = 4         # global_params['n_channels']
TEMPORAL = 8     # encoder_params['temporal_size']
EMB = 16         # global_params['embedding_size']
N_HEADS = 2      # encoder_params['n_encoder_heads']
N_LAYERS = 2     # encoder_params['n_encoder_layers']
FF = 2048        # nn.TransformerEncoderLayer default dim_feedforward
D_HEAD = EMB // N_HEADS

K_T = 25                               # temporal conv kernel width
POOL_K, POOL_S = 75, 15                # AvgPool2d((1,75),(1,15))
W_IN = 204                             # input time samples
W1 = W_IN - K_T + 1                    # 180 after temporal conv
P_SEQ = (W1 - POOL_K) // POOL_S + 1    # 8 tokens after pooling
NS = B * P_SEQ                         # rows entering the transformer
LN_EPS = 1e-5


# ------------------------------ fused kernel ---------------------------------
def _encoder_fused_kernel(
    x_ref,            # (B, C, W)      f32   input (conv-input channel squeezed)
    wtb_ref,          # (T*C, K*C)     f32   temporal conv weight, im2col-matmul form
    btb_ref,          # (T*C, 1)       f32
    wsp_ref,          # (C, T*C)       f32   spatial conv weight, BN folded in
    bsp_ref,          # (C, 1)         f32
    wprj_ref,         # (C, E)         f32   1x1 projector weight (pre-transposed)
    bprj_ref,         # (1, E)         f32
    wq_ref, wk_ref, wv_ref,        # (L, E, E)
    bq_ref, bk_ref, bv_ref,        # (L, 1, E)
    wo_ref,           # (L, H, Dh, E)        out-proj weight, per-head split
    bo_ref,           # (L, 1, E)
    g1_ref, b1_ref,   # (L, 1, E)            norm1 gamma/beta
    wf1_ref,          # (L, E, FF)     bf16  linear1 weight (pre-transposed)
    bf1_ref,          # (L, 1, FF)     f32
    wf2_ref,          # (L, E, FF)     bf16  linear2 weight (used as h @ W2^T)
    bf2_ref,          # (L, 1, E)      f32
    g2_ref, b2_ref,   # (L, 1, E)            norm2 gamma/beta
    o_ref,            # (B, P, E)      f32
):
    f32 = jnp.float32

    # -- pooling matrix (structural constant): pool_t[p, w] = 1/75 inside window p
    p_idx = lax.broadcasted_iota(jnp.int32, (P_SEQ, W1), 0)
    w_idx = lax.broadcasted_iota(jnp.int32, (P_SEQ, W1), 1)
    in_win = (w_idx >= p_idx * POOL_S) & (w_idx < p_idx * POOL_S + POOL_K)
    pool_t = jnp.where(in_win, 1.0 / POOL_K, 0.0)                  # (P, W1)

    wtb = wtb_ref[...]
    btb = btb_ref[...]
    wsp = wsp_ref[...]
    bsp = bsp_ref[...]
    wprj = wprj_ref[...]
    bprj = bprj_ref[...]

    # ----------------------- CNN embedding (per sample) ----------------------
    tokens = []
    for b in range(B):
        xb = x_ref[b]                                              # (C, W)
        # im2col: row (k*C + c) holds x[c, k : k + W1]
        cols = [xb[:, k:k + W1] for k in range(K_T)]
        im2col = jnp.concatenate(cols, axis=0)                     # (K*C, W1)
        # temporal Conv2d(1, T, (1,25)) as one MXU matmul
        temporal = jnp.dot(wtb, im2col, preferred_element_type=f32) + btb   # (T*C, W1)
        # spatial Conv2d(T, C, (C,1)) with eval-mode BatchNorm folded in
        spat = jnp.dot(wsp, temporal, preferred_element_type=f32) + bsp     # (C, W1)
        # ELU(alpha=1); exp(min(y,0))-1 keeps a guaranteed-supported lowering
        act = jnp.where(spat > 0, spat, jnp.exp(jnp.minimum(spat, 0.0)) - 1.0)
        # AvgPool2d((1,75),(1,15)) as a matmul with the pooling matrix
        pooled = lax.dot_general(pool_t, act, (((1,), (1,)), ((), ())),
                                 preferred_element_type=f32)                # (P, C)
        # projector Conv2d(C, E, 1x1)
        tokens.append(jnp.dot(pooled, wprj, preferred_element_type=f32) + bprj)  # (P, E)

    # rows ordered (b, p): row index = b * P_SEQ + p
    xt = jnp.concatenate(tokens, axis=0)                           # (NS, E)

    # ------------------ TransformerEncoder (batch_first=False) ---------------
    # The module feeds (B, P, E) directly into a batch_first=False encoder, so
    # dim 0 (B) is the sequence axis: attention mixes rows that share the same
    # token index p.  With (b, p) row ordering, two rows share p iff their row
    # index difference is a multiple of P_SEQ (|diff| < B*P_SEQ) -- built below
    # with iota/compare only (no vector integer div/mod).
    ridx = lax.broadcasted_iota(jnp.int32, (NS, NS), 0)
    cidx = lax.broadcasted_iota(jnp.int32, (NS, NS), 1)
    diff = ridx - cidx
    same = diff == 0
    for m in range(1, B):
        same = same | (diff == m * P_SEQ) | (diff == -m * P_SEQ)

    scale = 1.0 / math.sqrt(D_HEAD)
    neg_big = jnp.float32(-1e30)

    def layer_norm(t, g, bta):
        mu = jnp.mean(t, axis=-1, keepdims=True)
        var = jnp.mean((t - mu) ** 2, axis=-1, keepdims=True)
        return (t - mu) * lax.rsqrt(var + LN_EPS) * g + bta

    for l in range(N_LAYERS):
        # ---- self attention (post-LN layer) ----
        q = jnp.dot(xt, wq_ref[l], preferred_element_type=f32) + bq_ref[l]
        k = jnp.dot(xt, wk_ref[l], preferred_element_type=f32) + bk_ref[l]
        v = jnp.dot(xt, wv_ref[l], preferred_element_type=f32) + bv_ref[l]

        attn_out = jnp.zeros((NS, EMB), f32)
        for h in range(N_HEADS):
            sl = slice(h * D_HEAD, (h + 1) * D_HEAD)
            qh, kh, vh = q[:, sl], k[:, sl], v[:, sl]
            sc = lax.dot_general(qh, kh, (((1,), (1,)), ((), ())),
                                 preferred_element_type=f32) * scale        # (NS, NS)
            sc = jnp.where(same, sc, neg_big)
            mx = jnp.max(sc, axis=-1, keepdims=True)
            pe = jnp.where(same, jnp.exp(sc - mx), 0.0)
            inv = pl.reciprocal(jnp.sum(pe, axis=-1, keepdims=True), approx=True)
            attn = pe * inv
            ctx = jnp.dot(attn, vh, preferred_element_type=f32)             # (NS, Dh)
            # fold each head straight into the output projection (no lane concat)
            attn_out = attn_out + jnp.dot(ctx, wo_ref[l, h],
                                          preferred_element_type=f32)
        attn_out = attn_out + bo_ref[l]

        x1 = layer_norm(xt + attn_out, g1_ref[l], b1_ref[l])

        # ---- feed-forward (relu), bf16 weights, f32 accumulation ----
        h1 = jnp.dot(x1.astype(jnp.bfloat16), wf1_ref[l],
                     preferred_element_type=f32) + bf1_ref[l]               # (NS, FF)
        h1 = jnp.maximum(h1, 0.0)
        ff = lax.dot_general(h1.astype(jnp.bfloat16), wf2_ref[l],
                             (((1,), (1,)), ((), ())),
                             preferred_element_type=f32) + bf2_ref[l]       # (NS, E)
        xt = layer_norm(x1 + ff, g2_ref[l], b2_ref[l])

    o_ref[...] = xt.reshape(B, P_SEQ, EMB)


# ------------------------------ wrapper --------------------------------------
@jax.jit
def encoder_forward(x_nchw, p):
    x = x_nchw[:, 0, :, :]                          # (B, C, W): drop conv input channel
    return pl.pallas_call(
        _encoder_fused_kernel,
        out_shape=jax.ShapeDtypeStruct((B, P_SEQ, EMB), jnp.float32),
        compiler_params=pltpu.CompilerParams(vmem_limit_bytes=32 * 1024 * 1024),
    )(x,
      p['wt_big'], p['bt_big'], p['wsp_f'], p['bsp_f'], p['wproj_t'], p['bproj'],
      p['wq'], p['wk'], p['wv'], p['bq'], p['bk'], p['bv'],
      p['wo'], p['bo'], p['ln1_g'], p['ln1_b'],
      p['w1'], p['b1'], p['w2'], p['b2'], p['ln2_g'], p['ln2_b'])


# ------------------------------ parameters -----------------------------------
def init_raw_params(key):
    """Deterministic, PyTorch-layout parameters of the Encoder (eval mode)."""
    keys = iter(jax.random.split(key, 16 + 12 * N_LAYERS))

    def nrm(shape, s):
        return jax.random.normal(next(keys), shape, jnp.float32) * s

    raw = {
        'wt': nrm((TEMPORAL, K_T), 0.2),              # Conv2d(1, T, (1,25)).weight
        'bt': nrm((TEMPORAL,), 0.1),
        'wsp': nrm((N_CH, TEMPORAL, N_CH), 0.2),      # Conv2d(T, C, (C,1)).weight
        'bsp': nrm((N_CH,), 0.1),
        'bn_gamma': 1.0 + nrm((N_CH,), 0.1),          # BatchNorm2d (eval, running stats)
        'bn_beta': nrm((N_CH,), 0.1),
        'bn_mean': nrm((N_CH,), 0.1),
        'bn_var': 1.0 + jnp.abs(nrm((N_CH,), 0.1)),
        'wproj': nrm((EMB, N_CH), 0.2),               # Conv2d(C, E, 1x1).weight
        'bproj': nrm((EMB,), 0.1),
        'layers': [],
    }
    for _ in range(N_LAYERS):
        raw['layers'].append(dict(
            in_w=nrm((3 * EMB, EMB), 0.1), in_b=nrm((3 * EMB,), 0.05),
            out_w=nrm((EMB, EMB), 0.1), out_b=nrm((EMB,), 0.05),
            ln1_g=1.0 + nrm((EMB,), 0.05), ln1_b=nrm((EMB,), 0.05),
            w1=nrm((FF, EMB), 0.05), b1=nrm((FF,), 0.05),
            w2=nrm((EMB, FF), 0.05), b2=nrm((EMB,), 0.05),
            ln2_g=1.0 + nrm((EMB,), 0.05), ln2_b=nrm((EMB,), 0.05),
        ))
    return raw


def prepare_params(raw):
    """Kernel-friendly parameters (all folds done on the host, in float32):
       * temporal conv weight rearranged into im2col-matmul form (exact),
       * eval-mode BatchNorm folded into the spatial conv,
       * weights pre-transposed / per-head split / layer-stacked,
       * feed-forward weights cast to bfloat16 (f32 accumulation in-kernel)."""
    # temporal conv as matmul on (k*C + c, W1) patches: W_big = kron(wt, I_C)
    wt_big = jnp.kron(raw['wt'], jnp.eye(N_CH, dtype=jnp.float32))   # (T*C, K*C)
    bt_big = jnp.repeat(raw['bt'], N_CH)[:, None]                    # (T*C, 1)

    # fold BatchNorm (eval) into the spatial conv
    s = raw['bn_gamma'] / jnp.sqrt(raw['bn_var'] + 1e-5)             # (C,)
    wsp_flat = raw['wsp'].reshape(N_CH, TEMPORAL * N_CH)             # rows (t, c)
    wsp_f = s[:, None] * wsp_flat
    bsp_f = (s * (raw['bsp'] - raw['bn_mean']) + raw['bn_beta'])[:, None]

    p = {
        'wt_big': wt_big, 'bt_big': bt_big,
        'wsp_f': wsp_f, 'bsp_f': bsp_f,
        'wproj_t': raw['wproj'].T,                                   # (C, E)
        'bproj': raw['bproj'][None, :],                              # (1, E)
    }

    def stack(fn):
        return jnp.stack([fn(l) for l in raw['layers']], axis=0)

    p['wq'] = stack(lambda l: l['in_w'][:EMB].T)                     # (L, E, E)
    p['wk'] = stack(lambda l: l['in_w'][EMB:2 * EMB].T)
    p['wv'] = stack(lambda l: l['in_w'][2 * EMB:].T)
    p['bq'] = stack(lambda l: l['in_b'][None, :EMB])                 # (L, 1, E)
    p['bk'] = stack(lambda l: l['in_b'][None, EMB:2 * EMB])
    p['bv'] = stack(lambda l: l['in_b'][None, 2 * EMB:])
    p['wo'] = stack(lambda l: l['out_w'].T.reshape(N_HEADS, D_HEAD, EMB))
    p['bo'] = stack(lambda l: l['out_b'][None, :])
    p['ln1_g'] = stack(lambda l: l['ln1_g'][None, :])
    p['ln1_b'] = stack(lambda l: l['ln1_b'][None, :])
    p['w1'] = stack(lambda l: l['w1'].T).astype(jnp.bfloat16)        # (L, E, FF)
    p['b1'] = stack(lambda l: l['b1'][None, :])                      # (L, 1, FF)
    p['w2'] = stack(lambda l: l['w2']).astype(jnp.bfloat16)          # (L, E, FF): h @ W2^T
    p['b2'] = stack(lambda l: l['b2'][None, :])
    p['ln2_g'] = stack(lambda l: l['ln2_g'][None, :])
    p['ln2_b'] = stack(lambda l: l['ln2_b'][None, :])
    return p


# ------------------------- pure-JAX reference --------------------------------
@jax.jit
def encoder_reference(x_nchw, p):
    """Reference forward using the same prepared parameters."""
    x = x_nchw[:, 0, :, :]
    f32 = jnp.float32
    hi = jax.lax.Precision.HIGHEST
    tokens = []
    for b in range(B):
        xb = x[b]
        im2col = jnp.concatenate([xb[:, k:k + W1] for k in range(K_T)], axis=0)
        temporal = jnp.dot(p['wt_big'], im2col, precision=hi) + p['bt_big']
        spat = jnp.dot(p['wsp_f'], temporal, precision=hi) + p['bsp_f']
        act = jnp.where(spat > 0, spat, jnp.exp(jnp.minimum(spat, 0.0)) - 1.0)
        pooled = jnp.stack(
            [jnp.mean(act[:, s0:s0 + POOL_K], axis=1)
             for s0 in range(0, P_SEQ * POOL_S, POOL_S)], axis=0)           # (P, C)
        tokens.append(jnp.dot(pooled, p['wproj_t'], precision=hi) + p['bproj'])
    xt = jnp.concatenate(tokens, axis=0)                                     # (NS, E)

    pid = jnp.arange(NS) % P_SEQ
    same = pid[:, None] == pid[None, :]
    scale = 1.0 / math.sqrt(D_HEAD)

    def layer_norm(t, g, bta):
        mu = jnp.mean(t, axis=-1, keepdims=True)
        var = jnp.mean((t - mu) ** 2, axis=-1, keepdims=True)
        return (t - mu) * jax.lax.rsqrt(var + LN_EPS) * g + bta

    for l in range(N_LAYERS):
        q = jnp.dot(xt, p['wq'][l], precision=hi) + p['bq'][l]
        k = jnp.dot(xt, p['wk'][l], precision=hi) + p['bk'][l]
        v = jnp.dot(xt, p['wv'][l], precision=hi) + p['bv'][l]
        attn_out = jnp.zeros((NS, EMB), f32)
        for h in range(N_HEADS):
            sl = slice(h * D_HEAD, (h + 1) * D_HEAD)
            sc = jnp.dot(q[:, sl], k[:, sl].T, precision=hi) * scale
            sc = jnp.where(same, sc, -1e30)
            w = jax.nn.softmax(sc, axis=-1)
            ctx = jnp.dot(w, v[:, sl], precision=hi)
            attn_out = attn_out + jnp.dot(ctx, p['wo'][l, h], precision=hi)
        attn_out = attn_out + p['bo'][l]
        x1 = layer_norm(xt + attn_out, p['ln1_g'][l], p['ln1_b'][l])
        h1 = jnp.maximum(jnp.dot(x1.astype(jnp.bfloat16), p['w1'][l],
                                 preferred_element_type=f32) + p['b1'][l], 0.0)
        ff = jnp.dot(h1.astype(jnp.bfloat16), p['w2'][l].T,
                     preferred_element_type=f32) + p['b2'][l]
        xt = layer_norm(x1 + ff, p['ln2_g'][l], p['ln2_b'][l])
    return xt.reshape(B, P_SEQ, EMB)


# --------------------------------- main ---------------------------------------
if __name__ == "__main__":
    key = jax.random.PRNGKey(0)
    kx, kp = jax.random.split(key)
    x = jax.random.normal(kx, (B, 1, N_CH, W_IN), jnp.float32)
    params = prepare_params(init_raw_params(kp))

    out = encoder_forward(x, params)
    out = jax.block_until_ready(out)
    assert out.shape == (B, P_SEQ, EMB), out.shape
    assert bool(jnp.all(jnp.isfinite(out)))

    ref = jax.block_until_ready(encoder_reference(x, params))
    max_err = float(jnp.max(jnp.abs(out - ref)))
    assert max_err < 5e-2, f"max |kernel - reference| = {max_err}"

    print("KERNEL_OK")
</pallas_src>

<mosaic_0001>
module attributes {stable_mosaic.version = 11 : i64} {
  func.func @_encoder_fused_kernel(%arg0: memref<2x4x204xf32, #tpu.memory_space<vmem>>, %arg1: memref<32x100xf32, #tpu.memory_space<vmem>>, %arg2: memref<32x1xf32, #tpu.memory_space<vmem>>, %arg3: memref<4x32xf32, #tpu.memory_space<vmem>>, %arg4: memref<4x1xf32, #tpu.memory_space<vmem>>, %arg5: memref<4x16xf32, #tpu.memory_space<vmem>>, %arg6: memref<1x16xf32, #tpu.memory_space<vmem>>, %arg7: memref<2x16x16xf32, #tpu.memory_space<vmem>>, %arg8: memref<2x16x16xf32, #tpu.memory_space<vmem>>, %arg9: memref<2x16x16xf32, #tpu.memory_space<vmem>>, %arg10: memref<2x1x16xf32, #tpu.memory_space<vmem>>, %arg11: memref<2x1x16xf32, #tpu.memory_space<vmem>>, %arg12: memref<2x1x16xf32, #tpu.memory_space<vmem>>, %arg13: memref<2x2x8x16xf32, #tpu.memory_space<vmem>>, %arg14: memref<2x1x16xf32, #tpu.memory_space<vmem>>, %arg15: memref<2x1x16xf32, #tpu.memory_space<vmem>>, %arg16: memref<2x1x16xf32, #tpu.memory_space<vmem>>, %arg17: memref<2x16x2048xbf16, #tpu.memory_space<vmem>>, %arg18: memref<2x1x2048xf32, #tpu.memory_space<vmem>>, %arg19: memref<2x16x2048xbf16, #tpu.memory_space<vmem>>, %arg20: memref<2x1x16xf32, #tpu.memory_space<vmem>>, %arg21: memref<2x1x16xf32, #tpu.memory_space<vmem>>, %arg22: memref<2x1x16xf32, #tpu.memory_space<vmem>>, %arg23: memref<2x8x16xf32, #tpu.memory_space<vmem>>) attributes {dimension_semantics = [], scalar_prefetch = 0 : i64, scratch_operands = 0 : i64, tpu.core_type = #tpu.core_type<tc>} {
    %0 = tpu.iota {dimensions = array<i32: 0>} : vector<8x180xi32>
    %1 = tpu.iota {dimensions = array<i32: 1>} : vector<8x180xi32>
    %c15_i32 = arith.constant 15 : i32
    %2 = vector.broadcast %c15_i32 : i32 to vector<8x180xi32>
    %3 = arith.muli %0, %2 : vector<8x180xi32>
    %4 = arith.cmpi sge, %1, %3 : vector<8x180xi32>
    %c15_i32_0 = arith.constant 15 : i32
    %5 = vector.broadcast %c15_i32_0 : i32 to vector<8x180xi32>
    %6 = arith.muli %0, %5 : vector<8x180xi32>
    %c75_i32 = arith.constant 75 : i32
    %7 = vector.broadcast %c75_i32 : i32 to vector<8x180xi32>
    %8 = arith.addi %6, %7 : vector<8x180xi32>
    %9 = arith.cmpi slt, %1, %8 : vector<8x180xi32>
    %10 = arith.andi %4, %9 : vector<8x180xi1>
    %cst = arith.constant 0.0133333337 : f32
    %cst_1 = arith.constant 0.000000e+00 : f32
    %11 = vector.broadcast %cst : f32 to vector<8x180xf32>
    %12 = vector.broadcast %cst_1 : f32 to vector<8x180xf32>
    %13 = arith.select %10, %11, %12 : vector<8x180xi1>, vector<8x180xf32>
    %c0 = arith.constant 0 : index
    %c0_2 = arith.constant 0 : index
    %14 = vector.load %arg1[%c0, %c0_2] : memref<32x100xf32, #tpu.memory_space<vmem>>, vector<32x100xf32>
    %c0_3 = arith.constant 0 : index
    %c0_4 = arith.constant 0 : index
    %15 = vector.load %arg2[%c0_3, %c0_4] : memref<32x1xf32, #tpu.memory_space<vmem>>, vector<32x1xf32>
    %c0_5 = arith.constant 0 : index
    %c0_6 = arith.constant 0 : index
    %16 = vector.load %arg3[%c0_5, %c0_6] : memref<4x32xf32, #tpu.memory_space<vmem>>, vector<4x32xf32>
    %c0_7 = arith.constant 0 : index
    %c0_8 = arith.constant 0 : index
    %17 = vector.load %arg4[%c0_7, %c0_8] : memref<4x1xf32, #tpu.memory_space<vmem>>, vector<4x1xf32>
    %c0_9 = arith.constant 0 : index
    %c0_10 = arith.constant 0 : index
    %18 = vector.load %arg5[%c0_9, %c0_10] : memref<4x16xf32, #tpu.memory_space<vmem>>, vector<4x16xf32>
    %c0_11 = arith.constant 0 : index
    %c0_12 = arith.constant 0 : index
    %19 = vector.load %arg6[%c0_11, %c0_12] : memref<1x16xf32, #tpu.memory_space<vmem>>, vector<1x16xf32>
    %c0_13 = arith.constant 0 : index
    %c0_14 = arith.constant 0 : index
    %c0_15 = arith.constant 0 : index
    %20 = vector.load %arg0[%c0_13, %c0_14, %c0_15] : memref<2x4x204xf32, #tpu.memory_space<vmem>>, vector<1x4x204xf32>
    %21 = vector.shape_cast %20 : vector<1x4x204xf32> to vector<4x204xf32>
    %22 = vector.extract_strided_slice %21 {offsets = [0, 0], sizes = [4, 180], strides = [1, 1]} : vector<4x204xf32> to vector<4x180xf32>
    %23 = vector.extract_strided_slice %21 {offsets = [0, 1], sizes = [4, 180], strides = [1, 1]} : vector<4x204xf32> to vector<4x180xf32>
    %24 = vector.extract_strided_slice %21 {offsets = [0, 2], sizes = [4, 180], strides = [1, 1]} : vector<4x204xf32> to vector<4x180xf32>
    %25 = vector.extract_strided_slice %21 {offsets = [0, 3], sizes = [4, 180], strides = [1, 1]} : vector<4x204xf32> to vector<4x180xf32>
    %26 = vector.extract_strided_slice %21 {offsets = [0, 4], sizes = [4, 180], strides = [1, 1]} : vector<4x204xf32> to vector<4x180xf32>
    %27 = vector.extract_strided_slice %21 {offsets = [0, 5], sizes = [4, 180], strides = [1, 1]} : vector<4x204xf32> to vector<4x180xf32>
    %28 = vector.extract_strided_slice %21 {offsets = [0, 6], sizes = [4, 180], strides = [1, 1]} : vector<4x204xf32> to vector<4x180xf32>
    %29 = vector.extract_strided_slice %21 {offsets = [0, 7], sizes = [4, 180], strides = [1, 1]} : vector<4x204xf32> to vector<4x180xf32>
    %30 = vector.extract_strided_slice %21 {offsets = [0, 8], sizes = [4, 180], strides = [1, 1]} : vector<4x204xf32> to vector<4x180xf32>
    %31 = vector.extract_strided_slice %21 {offsets = [0, 9], sizes = [4, 180], strides = [1, 1]} : vector<4x204xf32> to vector<4x180xf32>
    %32 = vector.extract_strided_slice %21 {offsets = [0, 10], sizes = [4, 180], strides = [1, 1]} : vector<4x204xf32> to vector<4x180xf32>
    %33 = vector.extract_strided_slice %21 {offsets = [0, 11], sizes = [4, 180], strides = [1, 1]} : vector<4x204xf32> to vector<4x180xf32>
    %34 = vector.extract_strided_slice %21 {offsets = [0, 12], sizes = [4, 180], strides = [1, 1]} : vector<4x204xf32> to vector<4x180xf32>
    %35 = vector.extract_strided_slice %21 {offsets = [0, 13], sizes = [4, 180], strides = [1, 1]} : vector<4x204xf32> to vector<4x180xf32>
    %36 = vector.extract_strided_slice %21 {offsets = [0, 14], sizes = [4, 180], strides = [1, 1]} : vector<4x204xf32> to vector<4x180xf32>
    %37 = vector.extract_strided_slice %21 {offsets = [0, 15], sizes = [4, 180], strides = [1, 1]} : vector<4x204xf32> to vector<4x180xf32>
    %38 = vector.extract_strided_slice %21 {offsets = [0, 16], sizes = [4, 180], strides = [1, 1]} : vector<4x204xf32> to vector<4x180xf32>
    %39 = vector.extract_strided_slice %21 {offsets = [0, 17], sizes = [4, 180], strides = [1, 1]} : vector<4x204xf32> to vector<4x180xf32>
    %40 = vector.extract_strided_slice %21 {offsets = [0, 18], sizes = [4, 180], strides = [1, 1]} : vector<4x204xf32> to vector<4x180xf32>
    %41 = vector.extract_strided_slice %21 {offsets = [0, 19], sizes = [4, 180], strides = [1, 1]} : vector<4x204xf32> to vector<4x180xf32>
    %42 = vector.extract_strided_slice %21 {offsets = [0, 20], sizes = [4, 180], strides = [1, 1]} : vector<4x204xf32> to vector<4x180xf32>
    %43 = vector.extract_strided_slice %21 {offsets = [0, 21], sizes = [4, 180], strides = [1, 1]} : vector<4x204xf32> to vector<4x180xf32>
    %44 = vector.extract_strided_slice %21 {offsets = [0, 22], sizes = [4, 180], strides = [1, 1]} : vector<4x204xf32> to vector<4x180xf32>
    %45 = vector.extract_strided_slice %21 {offsets = [0, 23], sizes = [4, 180], strides = [1, 1]} : vector<4x204xf32> to vector<4x180xf32>
    %46 = vector.extract_strided_slice %21 {offsets = [0, 24], sizes = [4, 180], strides = [1, 1]} : vector<4x204xf32> to vector<4x180xf32>
    %47 = tpu.concatenate %22, %23, %24, %25, %26, %27, %28, %29, %30, %31, %32, %33, %34, %35, %36, %37 in 0 : vector<4x180xf32>, vector<4x180xf32>, vector<4x180xf32>, vector<4x180xf32>, vector<4x180xf32>, vector<4x180xf32>, vector<4x180xf32>, vector<4x180xf32>, vector<4x180xf32>, vector<4x180xf32>, vector<4x180xf32>, vector<4x180xf32>, vector<4x180xf32>, vector<4x180xf32>, vector<4x180xf32>, vector<4x180xf32> -> vector<64x180xf32>
    %48 = tpu.concatenate %38, %39, %40, %41, %42, %43, %44, %45, %46 in 0 : vector<4x180xf32>, vector<4x180xf32>, vector<4x180xf32>, vector<4x180xf32>, vector<4x180xf32>, vector<4x180xf32>, vector<4x180xf32>, vector<4x180xf32>, vector<4x180xf32> -> vector<36x180xf32>
    %49 = tpu.concatenate %47, %48 in 0 : vector<64x180xf32>, vector<36x180xf32> -> vector<100x180xf32>
    %cst_16 = arith.constant dense<0.000000e+00> : vector<32x180xf32>
    %50 = tpu.matmul %14, %49, %cst_16 {dimension_numbers = #tpu.dot_dimension_numbers<[1], [0], [0], [1], [0, 0, 1, 1], [], []>} : vector<32x100xf32>, vector<100x180xf32>, vector<32x180xf32> -> vector<32x180xf32>
    %51 = vector.broadcast %15 : vector<32x1xf32> to vector<32x180xf32>
    %52 = arith.addf %50, %51 : vector<32x180xf32>
    %cst_17 = arith.constant dense<0.000000e+00> : vector<4x180xf32>
    %53 = tpu.matmul %16, %52, %cst_17 {dimension_numbers = #tpu.dot_dimension_numbers<[1], [0], [0], [1], [0, 0, 1, 1], [], []>} : vector<4x32xf32>, vector<32x180xf32>, vector<4x180xf32> -> vector<4x180xf32>
    %54 = vector.broadcast %17 : vector<4x1xf32> to vector<4x180xf32>
    %55 = arith.addf %53, %54 : vector<4x180xf32>
    %cst_18 = arith.constant 0.000000e+00 : f32
    %56 = vector.broadcast %cst_18 : f32 to vector<4x180xf32>
    %57 = arith.cmpf ogt, %55, %56 : vector<4x180xf32>
    %cst_19 = arith.constant 0.000000e+00 : f32
    %58 = vector.broadcast %cst_19 : f32 to vector<4x180xf32>
    %59 = arith.minimumf %55, %58 : vector<4x180xf32>
    %60 = math.exp %59 : vector<4x180xf32>
    %cst_20 = arith.constant 1.000000e+00 : f32
    %61 = vector.broadcast %cst_20 : f32 to vector<4x180xf32>
    %62 = arith.subf %60, %61 : vector<4x180xf32>
    %63 = arith.select %57, %55, %62 : vector<4x180xi1>, vector<4x180xf32>
    %cst_21 = arith.constant dense<0.000000e+00> : vector<8x4xf32>
    %64 = tpu.matmul %13, %63, %cst_21 {dimension_numbers = #tpu.dot_dimension_numbers<[1], [1], [0], [0], [0, 0, 1, 0], [], []>} : vector<8x180xf32>, vector<4x180xf32>, vector<8x4xf32> -> vector<8x4xf32>
    %cst_22 = arith.constant dense<0.000000e+00> : vector<8x16xf32>
    %65 = tpu.matmul %64, %18, %cst_22 {dimension_numbers = #tpu.dot_dimension_numbers<[1], [0], [0], [1], [0, 0, 1, 1], [], []>} : vector<8x4xf32>, vector<4x16xf32>, vector<8x16xf32> -> vector<8x16xf32>
    %66 = vector.broadcast %19 : vector<1x16xf32> to vector<8x16xf32>
    %67 = arith.addf %65, %66 : vector<8x16xf32>
    %c1 = arith.constant 1 : index
    %c0_23 = arith.constant 0 : index
    %c0_24 = arith.constant 0 : index
    %68 = vector.load %arg0[%c1, %c0_23, %c0_24] : memref<2x4x204xf32, #tpu.memory_space<vmem>>, vector<1x4x204xf32>
    %69 = vector.shape_cast %68 : vector<1x4x204xf32> to vector<4x204xf32>
    %70 = vector.extract_strided_slice %69 {offsets = [0, 0], sizes = [4, 180], strides = [1, 1]} : vector<4x204xf32> to vector<4x180xf32>
    %71 = vector.extract_strided_slice %69 {offsets = [0, 1], sizes = [4, 180], strides = [1, 1]} : vector<4x204xf32> to vector<4x180xf32>
    %72 = vector.extract_strided_slice %69 {offsets = [0, 2], sizes = [4, 180], strides = [1, 1]} : vector<4x204xf32> to vector<4x180xf32>
    %73 = vector.extract_strided_slice %69 {offsets = [0, 3], sizes = [4, 180], strides = [1, 1]} : vector<4x204xf32> to vector<4x180xf32>
    %74 = vector.extract_strided_slice %69 {offsets = [0, 4], sizes = [4, 180], strides = [1, 1]} : vector<4x204xf32> to vector<4x180xf32>
    %75 = vector.extract_strided_slice %69 {offsets = [0, 5], sizes = [4, 180], strides = [1, 1]} : vector<4x204xf32> to vector<4x180xf32>
    %76 = vector.extract_strided_slice %69 {offsets = [0, 6], sizes = [4, 180], strides = [1, 1]} : vector<4x204xf32> to vector<4x180xf32>
    %77 = vector.extract_strided_slice %69 {offsets = [0, 7], sizes = [4, 180], strides = [1, 1]} : vector<4x204xf32> to vector<4x180xf32>
    %78 = vector.extract_strided_slice %69 {offsets = [0, 8], sizes = [4, 180], strides = [1, 1]} : vector<4x204xf32> to vector<4x180xf32>
    %79 = vector.extract_strided_slice %69 {offsets = [0, 9], sizes = [4, 180], strides = [1, 1]} : vector<4x204xf32> to vector<4x180xf32>
    %80 = vector.extract_strided_slice %69 {offsets = [0, 10], sizes = [4, 180], strides = [1, 1]} : vector<4x204xf32> to vector<4x180xf32>
    %81 = vector.extract_strided_slice %69 {offsets = [0, 11], sizes = [4, 180], strides = [1, 1]} : vector<4x204xf32> to vector<4x180xf32>
    %82 = vector.extract_strided_slice %69 {offsets = [0, 12], sizes = [4, 180], strides = [1, 1]} : vector<4x204xf32> to vector<4x180xf32>
    %83 = vector.extract_strided_slice %69 {offsets = [0, 13], sizes = [4, 180], strides = [1, 1]} : vector<4x204xf32> to vector<4x180xf32>
    %84 = vector.extract_strided_slice %69 {offsets = [0, 14], sizes = [4, 180], strides = [1, 1]} : vector<4x204xf32> to vector<4x180xf32>
    %85 = vector.extract_strided_slice %69 {offsets = [0, 15], sizes = [4, 180], strides = [1, 1]} : vector<4x204xf32> to vector<4x180xf32>
    %86 = vector.extract_strided_slice %69 {offsets = [0, 16], sizes = [4, 180], strides = [1, 1]} : vector<4x204xf32> to vector<4x180xf32>
    %87 = vector.extract_strided_slice %69 {offsets = [0, 17], sizes = [4, 180], strides = [1, 1]} : vector<4x204xf32> to vector<4x180xf32>
    %88 = vector.extract_strided_slice %69 {offsets = [0, 18], sizes = [4, 180], strides = [1, 1]} : vector<4x204xf32> to vector<4x180xf32>
    %89 = vector.extract_strided_slice %69 {offsets = [0, 19], sizes = [4, 180], strides = [1, 1]} : vector<4x204xf32> to vector<4x180xf32>
    %90 = vector.extract_strided_slice %69 {offsets = [0, 20], sizes = [4, 180], strides = [1, 1]} : vector<4x204xf32> to vector<4x180xf32>
    %91 = vector.extract_strided_slice %69 {offsets = [0, 21], sizes = [4, 180], strides = [1, 1]} : vector<4x204xf32> to vector<4x180xf32>
    %92 = vector.extract_strided_slice %69 {offsets = [0, 22], sizes = [4, 180], strides = [1, 1]} : vector<4x204xf32> to vector<4x180xf32>
    %93 = vector.extract_strided_slice %69 {offsets = [0, 23], sizes = [4, 180], strides = [1, 1]} : vector<4x204xf32> to vector<4x180xf32>
    %94 = vector.extract_strided_slice %69 {offsets = [0, 24], sizes = [4, 180], strides = [1, 1]} : vector<4x204xf32> to vector<4x180xf32>
    %95 = tpu.concatenate %70, %71, %72, %73, %74, %75, %76, %77, %78, %79, %80, %81, %82, %83, %84, %85 in 0 : vector<4x180xf32>, vector<4x180xf32>, vector<4x180xf32>, vector<4x180xf32>, vector<4x180xf32>, vector<4x180xf32>, vector<4x180xf32>, vector<4x180xf32>, vector<4x180xf32>, vector<4x180xf32>, vector<4x180xf32>, vector<4x180xf32>, vector<4x180xf32>, vector<4x180xf32>, vector<4x180xf32>, vector<4x180xf32> -> vector<64x180xf32>
    %96 = tpu.concatenate %86, %87, %88, %89, %90, %91, %92, %93, %94 in 0 : vector<4x180xf32>, vector<4x180xf32>, vector<4x180xf32>, vector<4x180xf32>, vector<4x180xf32>, vector<4x180xf32>, vector<4x180xf32>, vector<4x180xf32>, vector<4x180xf32> -> vector<36x180xf32>
    %97 = tpu.concatenate %95, %96 in 0 : vector<64x180xf32>, vector<36x180xf32> -> vector<100x180xf32>
    %cst_25 = arith.constant dense<0.000000e+00> : vector<32x180xf32>
    %98 = tpu.matmul %14, %97, %cst_25 {dimension_numbers = #tpu.dot_dimension_numbers<[1], [0], [0], [1], [0, 0, 1, 1], [], []>} : vector<32x100xf32>, vector<100x180xf32>, vector<32x180xf32> -> vector<32x180xf32>
    %99 = vector.broadcast %15 : vector<32x1xf32> to vector<32x180xf32>
    %100 = arith.addf %98, %99 : vector<32x180xf32>
    %cst_26 = arith.constant dense<0.000000e+00> : vector<4x180xf32>
    %101 = tpu.matmul %16, %100, %cst_26 {dimension_numbers = #tpu.dot_dimension_numbers<[1], [0], [0], [1], [0, 0, 1, 1], [], []>} : vector<4x32xf32>, vector<32x180xf32>, vector<4x180xf32> -> vector<4x180xf32>
    %102 = vector.broadcast %17 : vector<4x1xf32> to vector<4x180xf32>
    %103 = arith.addf %101, %102 : vector<4x180xf32>
    %cst_27 = arith.constant 0.000000e+00 : f32
    %104 = vector.broadcast %cst_27 : f32 to vector<4x180xf32>
    %105 = arith.cmpf ogt, %103, %104 : vector<4x180xf32>
    %cst_28 = arith.constant 0.000000e+00 : f32
    %106 = vector.broadcast %cst_28 : f32 to vector<4x180xf32>
    %107 = arith.minimumf %103, %106 : vector<4x180xf32>
    %108 = math.exp %107 : vector<4x180xf32>
    %cst_29 = arith.constant 1.000000e+00 : f32
    %109 = vector.broadcast %cst_29 : f32 to vector<4x180xf32>
    %110 = arith.subf %108, %109 : vector<4x180xf32>
    %111 = arith.select %105, %103, %110 : vector<4x180xi1>, vector<4x180xf32>
    %cst_30 = arith.constant dense<0.000000e+00> : vector<8x4xf32>
    %112 = tpu.matmul %13, %111, %cst_30 {dimension_numbers = #tpu.dot_dimension_numbers<[1], [1], [0], [0], [0, 0, 1, 0], [], []>} : vector<8x180xf32>, vector<4x180xf32>, vector<8x4xf32> -> vector<8x4xf32>
    %cst_31 = arith.constant dense<0.000000e+00> : vector<8x16xf32>
    %113 = tpu.matmul %112, %18, %cst_31 {dimension_numbers = #tpu.dot_dimension_numbers<[1], [0], [0], [1], [0, 0, 1, 1], [], []>} : vector<8x4xf32>, vector<4x16xf32>, vector<8x16xf32> -> vector<8x16xf32>
    %114 = vector.broadcast %19 : vector<1x16xf32> to vector<8x16xf32>
    %115 = arith.addf %113, %114 : vector<8x16xf32>
    %116 = tpu.concatenate %67, %115 in 0 : vector<8x16xf32>, vector<8x16xf32> -> vector<16x16xf32>
    %117 = tpu.iota {dimensions = array<i32: 0>} : vector<16x16xi32>
    %118 = tpu.iota {dimensions = array<i32: 1>} : vector<16x16xi32>
    %119 = arith.subi %117, %118 : vector<16x16xi32>
    %c0_i32 = arith.constant 0 : i32
    %120 = vector.broadcast %c0_i32 : i32 to vector<16x16xi32>
    %121 = arith.cmpi eq, %119, %120 : vector<16x16xi32>
    %c8_i32 = arith.constant 8 : i32
    %122 = vector.broadcast %c8_i32 : i32 to vector<16x16xi32>
    %123 = arith.cmpi eq, %119, %122 : vector<16x16xi32>
    %124 = arith.ori %121, %123 : vector<16x16xi1>
    %c-8_i32 = arith.constant -8 : i32
    %125 = vector.broadcast %c-8_i32 : i32 to vector<16x16xi32>
    %126 = arith.cmpi eq, %119, %125 : vector<16x16xi32>
    %127 = arith.ori %124, %126 : vector<16x16xi1>
    %c0_32 = arith.constant 0 : index
    %c0_33 = arith.constant 0 : index
    %c0_34 = arith.constant 0 : index
    %128 = vector.load %arg7[%c0_32, %c0_33, %c0_34] : memref<2x16x16xf32, #tpu.memory_space<vmem>>, vector<1x16x16xf32>
    %129 = vector.shape_cast %128 : vector<1x16x16xf32> to vector<16x16xf32>
    %cst_35 = arith.constant dense<0.000000e+00> : vector<16x16xf32>
    %130 = tpu.matmul %116, %129, %cst_35 {dimension_numbers = #tpu.dot_dimension_numbers<[1], [0], [0], [1], [0, 0, 1, 1], [], []>} : vector<16x16xf32>, vector<16x16xf32>, vector<16x16xf32> -> vector<16x16xf32>
    %c0_36 = arith.constant 0 : index
    %c0_37 = arith.constant 0 : index
    %c0_38 = arith.constant 0 : index
    %131 = vector.load %arg10[%c0_36, %c0_37, %c0_38] : memref<2x1x16xf32, #tpu.memory_space<vmem>>, vector<1x1x16xf32>
    %132 = vector.shape_cast %131 : vector<1x1x16xf32> to vector<1x16xf32>
    %133 = vector.broadcast %132 : vector<1x16xf32> to vector<16x16xf32>
    %134 = arith.addf %130, %133 : vector<16x16xf32>
    %c0_39 = arith.constant 0 : index
    %c0_40 = arith.constant 0 : index
    %c0_41 = arith.constant 0 : index
    %135 = vector.load %arg8[%c0_39, %c0_40, %c0_41] : memref<2x16x16xf32, #tpu.memory_space<vmem>>, vector<1x16x16xf32>
    %136 = vector.shape_cast %135 : vector<1x16x16xf32> to vector<16x16xf32>
    %cst_42 = arith.constant dense<0.000000e+00> : vector<16x16xf32>
    %137 = tpu.matmul %116, %136, %cst_42 {dimension_numbers = #tpu.dot_dimension_numbers<[1], [0], [0], [1], [0, 0, 1, 1], [], []>} : vector<16x16xf32>, vector<16x16xf32>, vector<16x16xf32> -> vector<16x16xf32>
    %c0_43 = arith.constant 0 : index
    %c0_44 = arith.constant 0 : index
    %c0_45 = arith.constant 0 : index
    %138 = vector.load %arg11[%c0_43, %c0_44, %c0_45] : memref<2x1x16xf32, #tpu.memory_space<vmem>>, vector<1x1x16xf32>
    %139 = vector.shape_cast %138 : vector<1x1x16xf32> to vector<1x16xf32>
    %140 = vector.broadcast %139 : vector<1x16xf32> to vector<16x16xf32>
    %141 = arith.addf %137, %140 : vector<16x16xf32>
    %c0_46 = arith.constant 0 : index
    %c0_47 = arith.constant 0 : index
    %c0_48 = arith.constant 0 : index
    %142 = vector.load %arg9[%c0_46, %c0_47, %c0_48] : memref<2x16x16xf32, #tpu.memory_space<vmem>>, vector<1x16x16xf32>
    %143 = vector.shape_cast %142 : vector<1x16x16xf32> to vector<16x16xf32>
    %cst_49 = arith.constant dense<0.000000e+00> : vector<16x16xf32>
    %144 = tpu.matmul %116, %143, %cst_49 {dimension_numbers = #tpu.dot_dimension_numbers<[1], [0], [0], [1], [0, 0, 1, 1], [], []>} : vector<16x16xf32>, vector<16x16xf32>, vector<16x16xf32> -> vector<16x16xf32>
    %c0_50 = arith.constant 0 : index
    %c0_51 = arith.constant 0 : index
    %c0_52 = arith.constant 0 : index
    %145 = vector.load %arg12[%c0_50, %c0_51, %c0_52] : memref<2x1x16xf32, #tpu.memory_space<vmem>>, vector<1x1x16xf32>
    %146 = vector.shape_cast %145 : vector<1x1x16xf32> to vector<1x16xf32>
    %147 = vector.broadcast %146 : vector<1x16xf32> to vector<16x16xf32>
    %148 = arith.addf %144, %147 : vector<16x16xf32>
    %cst_53 = arith.constant 0.000000e+00 : f32
    %149 = vector.broadcast %cst_53 : f32 to vector<16x16xf32>
    %150 = vector.extract_strided_slice %134 {offsets = [0, 0], sizes = [16, 8], strides = [1, 1]} : vector<16x16xf32> to vector<16x8xf32>
    %151 = vector.extract_strided_slice %141 {offsets = [0, 0], sizes = [16, 8], strides = [1, 1]} : vector<16x16xf32> to vector<16x8xf32>
    %152 = vector.extract_strided_slice %148 {offsets = [0, 0], sizes = [16, 8], strides = [1, 1]} : vector<16x16xf32> to vector<16x8xf32>
    %cst_54 = arith.constant dense<0.000000e+00> : vector<16x16xf32>
    %153 = tpu.matmul %150, %151, %cst_54 {dimension_numbers = #tpu.dot_dimension_numbers<[1], [1], [0], [0], [0, 0, 1, 0], [], []>} : vector<16x8xf32>, vector<16x8xf32>, vector<16x16xf32> -> vector<16x16xf32>
    %cst_55 = arith.constant 0.353553385 : f32
    %154 = vector.broadcast %cst_55 : f32 to vector<16x16xf32>
    %155 = arith.mulf %153, %154 : vector<16x16xf32>
    %cst_56 = arith.constant -1.000000e+30 : f32
    %156 = vector.broadcast %cst_56 : f32 to vector<16x16xf32>
    %157 = arith.select %127, %155, %156 : vector<16x16xi1>, vector<16x16xf32>
    %cst_57 = arith.constant dense<0xFF800000> : vector<16xf32>
    %158 = vector.multi_reduction <maximumf>, %157, %cst_57 [1] : vector<16x16xf32> to vector<16xf32>
    %159 = vector.shape_cast %158 : vector<16xf32> to vector<16x1xf32>
    %160 = vector.broadcast %159 : vector<16x1xf32> to vector<16x16xf32>
    %161 = arith.subf %157, %160 : vector<16x16xf32>
    %162 = math.exp %161 : vector<16x16xf32>
    %cst_58 = arith.constant 0.000000e+00 : f32
    %163 = vector.broadcast %cst_58 : f32 to vector<16x16xf32>
    %164 = arith.select %127, %162, %163 : vector<16x16xi1>, vector<16x16xf32>
    %cst_59 = arith.constant dense<0.000000e+00> : vector<16xf32>
    %165 = vector.multi_reduction <add>, %164, %cst_59 [1] : vector<16x16xf32> to vector<16xf32>
    %166 = vector.shape_cast %165 : vector<16xf32> to vector<16x1xf32>
    %167 = tpu.reciprocal %166 {approx = true} : vector<16x1xf32> -> vector<16x1xf32>
    %168 = vector.broadcast %167 : vector<16x1xf32> to vector<16x16xf32>
    %169 = arith.mulf %164, %168 : vector<16x16xf32>
    %cst_60 = arith.constant dense<0.000000e+00> : vector<16x8xf32>
    %170 = tpu.matmul %169, %152, %cst_60 {dimension_numbers = #tpu.dot_dimension_numbers<[1], [0], [0], [1], [0, 0, 1, 1], [], []>} : vector<16x16xf32>, vector<16x8xf32>, vector<16x8xf32> -> vector<16x8xf32>
    %c0_61 = arith.constant 0 : index
    %c0_62 = arith.constant 0 : index
    %c0_63 = arith.constant 0 : index
    %c0_64 = arith.constant 0 : index
    %171 = vector.load %arg13[%c0_61, %c0_62, %c0_63, %c0_64] : memref<2x2x8x16xf32, #tpu.memory_space<vmem>>, vector<1x1x8x16xf32>
    %172 = vector.shape_cast %171 : vector<1x1x8x16xf32> to vector<8x16xf32>
    %cst_65 = arith.constant dense<0.000000e+00> : vector<16x16xf32>
    %173 = tpu.matmul %170, %172, %cst_65 {dimension_numbers = #tpu.dot_dimension_numbers<[1], [0], [0], [1], [0, 0, 1, 1], [], []>} : vector<16x8xf32>, vector<8x16xf32>, vector<16x16xf32> -> vector<16x16xf32>
    %174 = arith.addf %149, %173 : vector<16x16xf32>
    %175 = vector.extract_strided_slice %134 {offsets = [0, 8], sizes = [16, 8], strides = [1, 1]} : vector<16x16xf32> to vector<16x8xf32>
    %176 = vector.extract_strided_slice %141 {offsets = [0, 8], sizes = [16, 8], strides = [1, 1]} : vector<16x16xf32> to vector<16x8xf32>
    %177 = vector.extract_strided_slice %148 {offsets = [0, 8], sizes = [16, 8], strides = [1, 1]} : vector<16x16xf32> to vector<16x8xf32>
    %cst_66 = arith.constant dense<0.000000e+00> : vector<16x16xf32>
    %178 = tpu.matmul %175, %176, %cst_66 {dimension_numbers = #tpu.dot_dimension_numbers<[1], [1], [0], [0], [0, 0, 1, 0], [], []>} : vector<16x8xf32>, vector<16x8xf32>, vector<16x16xf32> -> vector<16x16xf32>
    %cst_67 = arith.constant 0.353553385 : f32
    %179 = vector.broadcast %cst_67 : f32 to vector<16x16xf32>
    %180 = arith.mulf %178, %179 : vector<16x16xf32>
    %cst_68 = arith.constant -1.000000e+30 : f32
    %181 = vector.broadcast %cst_68 : f32 to vector<16x16xf32>
    %182 = arith.select %127, %180, %181 : vector<16x16xi1>, vector<16x16xf32>
    %cst_69 = arith.constant dense<0xFF800000> : vector<16xf32>
    %183 = vector.multi_reduction <maximumf>, %182, %cst_69 [1] : vector<16x16xf32> to vector<16xf32>
    %184 = vector.shape_cast %183 : vector<16xf32> to vector<16x1xf32>
    %185 = vector.broadcast %184 : vector<16x1xf32> to vector<16x16xf32>
    %186 = arith.subf %182, %185 : vector<16x16xf32>
    %187 = math.exp %186 : vector<16x16xf32>
    %cst_70 = arith.constant 0.000000e+00 : f32
    %188 = vector.broadcast %cst_70 : f32 to vector<16x16xf32>
    %189 = arith.select %127, %187, %188 : vector<16x16xi1>, vector<16x16xf32>
    %cst_71 = arith.constant dense<0.000000e+00> : vector<16xf32>
    %190 = vector.multi_reduction <add>, %189, %cst_71 [1] : vector<16x16xf32> to vector<16xf32>
    %191 = vector.shape_cast %190 : vector<16xf32> to vector<16x1xf32>
    %192 = tpu.reciprocal %191 {approx = true} : vector<16x1xf32> -> vector<16x1xf32>
    %193 = vector.broadcast %192 : vector<16x1xf32> to vector<16x16xf32>
    %194 = arith.mulf %189, %193 : vector<16x16xf32>
    %cst_72 = arith.constant dense<0.000000e+00> : vector<16x8xf32>
    %195 = tpu.matmul %194, %177, %cst_72 {dimension_numbers = #tpu.dot_dimension_numbers<[1], [0], [0], [1], [0, 0, 1, 1], [], []>} : vector<16x16xf32>, vector<16x8xf32>, vector<16x8xf32> -> vector<16x8xf32>
    %c0_73 = arith.constant 0 : index
    %c1_74 = arith.constant 1 : index
    %c0_75 = arith.constant 0 : index
    %c0_76 = arith.constant 0 : index
    %196 = vector.load %arg13[%c0_73, %c1_74, %c0_75, %c0_76] : memref<2x2x8x16xf32, #tpu.memory_space<vmem>>, vector<1x1x8x16xf32>
    %197 = vector.shape_cast %196 : vector<1x1x8x16xf32> to vector<8x16xf32>
    %cst_77 = arith.constant dense<0.000000e+00> : vector<16x16xf32>
    %198 = tpu.matmul %195, %197, %cst_77 {dimension_numbers = #tpu.dot_dimension_numbers<[1], [0], [0], [1], [0, 0, 1, 1], [], []>} : vector<16x8xf32>, vector<8x16xf32>, vector<16x16xf32> -> vector<16x16xf32>
    %199 = arith.addf %174, %198 : vector<16x16xf32>
    %c0_78 = arith.constant 0 : index
    %c0_79 = arith.constant 0 : index
    %c0_80 = arith.constant 0 : index
    %200 = vector.load %arg14[%c0_78, %c0_79, %c0_80] : memref<2x1x16xf32, #tpu.memory_space<vmem>>, vector<1x1x16xf32>
    %201 = vector.shape_cast %200 : vector<1x1x16xf32> to vector<1x16xf32>
    %202 = vector.broadcast %201 : vector<1x16xf32> to vector<16x16xf32>
    %203 = arith.addf %199, %202 : vector<16x16xf32>
    %204 = arith.addf %116, %203 : vector<16x16xf32>
    %c0_81 = arith.constant 0 : index
    %c0_82 = arith.constant 0 : index
    %c0_83 = arith.constant 0 : index
    %205 = vector.load %arg15[%c0_81, %c0_82, %c0_83] : memref<2x1x16xf32, #tpu.memory_space<vmem>>, vector<1x1x16xf32>
    %206 = vector.shape_cast %205 : vector<1x1x16xf32> to vector<1x16xf32>
    %c0_84 = arith.constant 0 : index
    %c0_85 = arith.constant 0 : index
    %c0_86 = arith.constant 0 : index
    %207 = vector.load %arg16[%c0_84, %c0_85, %c0_86] : memref<2x1x16xf32, #tpu.memory_space<vmem>>, vector<1x1x16xf32>
    %208 = vector.shape_cast %207 : vector<1x1x16xf32> to vector<1x16xf32>
    %cst_87 = arith.constant dense<0.000000e+00> : vector<16xf32>
    %209 = vector.multi_reduction <add>, %204, %cst_87 [1] : vector<16x16xf32> to vector<16xf32>
    %210 = vector.shape_cast %209 : vector<16xf32> to vector<16x1xf32>
    %cst_88 = arith.constant 1.600000e+01 : f32
    %211 = vector.broadcast %cst_88 : f32 to vector<16x1xf32>
    %212 = arith.divf %210, %211 : vector<16x1xf32>
    %213 = vector.broadcast %212 : vector<16x1xf32> to vector<16x16xf32>
    %214 = arith.subf %204, %213 : vector<16x16xf32>
    %215 = arith.mulf %214, %214 : vector<16x16xf32>
    %cst_89 = arith.constant dense<0.000000e+00> : vector<16xf32>
    %216 = vector.multi_reduction <add>, %215, %cst_89 [1] : vector<16x16xf32> to vector<16xf32>
    %217 = vector.shape_cast %216 : vector<16xf32> to vector<16x1xf32>
    %cst_90 = arith.constant 1.600000e+01 : f32
    %218 = vector.broadcast %cst_90 : f32 to vector<16x1xf32>
    %219 = arith.divf %217, %218 : vector<16x1xf32>
    %220 = vector.broadcast %212 : vector<16x1xf32> to vector<16x16xf32>
    %221 = arith.subf %204, %220 : vector<16x16xf32>
    %cst_91 = arith.constant 9.99999974E-6 : f32
    %222 = vector.broadcast %cst_91 : f32 to vector<16x1xf32>
    %223 = arith.addf %219, %222 : vector<16x1xf32>
    %224 = math.rsqrt %223 : vector<16x1xf32>
    %225 = vector.broadcast %224 : vector<16x1xf32> to vector<16x16xf32>
    %226 = arith.mulf %221, %225 : vector<16x16xf32>
    %227 = vector.broadcast %206 : vector<1x16xf32> to vector<16x16xf32>
    %228 = arith.mulf %226, %227 : vector<16x16xf32>
    %229 = vector.broadcast %208 : vector<1x16xf32> to vector<16x16xf32>
    %230 = arith.addf %228, %229 : vector<16x16xf32>
    %231 = arith.truncf %230 : vector<16x16xf32> to vector<16x16xbf16>
    %c0_92 = arith.constant 0 : index
    %c0_93 = arith.constant 0 : index
    %c0_94 = arith.constant 0 : index
    %232 = vector.load %arg17[%c0_92, %c0_93, %c0_94] : memref<2x16x2048xbf16, #tpu.memory_space<vmem>>, vector<1x16x2048xbf16>
    %233 = vector.shape_cast %232 : vector<1x16x2048xbf16> to vector<16x2048xbf16>
    %cst_95 = arith.constant dense<0.000000e+00> : vector<16x2048xf32>
    %234 = tpu.matmul %231, %233, %cst_95 {dimension_numbers = #tpu.dot_dimension_numbers<[1], [0], [0], [1], [0, 0, 1, 1], [], []>} : vector<16x16xbf16>, vector<16x2048xbf16>, vector<16x2048xf32> -> vector<16x2048xf32>
    %c0_96 = arith.constant 0 : index
    %c0_97 = arith.constant 0 : index
    %c0_98 = arith.constant 0 : index
    %235 = vector.load %arg18[%c0_96, %c0_97, %c0_98] : memref<2x1x2048xf32, #tpu.memory_space<vmem>>, vector<1x1x2048xf32>
    %236 = vector.shape_cast %235 : vector<1x1x2048xf32> to vector<1x2048xf32>
    %237 = vector.broadcast %236 : vector<1x2048xf32> to vector<16x2048xf32>
    %238 = arith.addf %234, %237 : vector<16x2048xf32>
    %cst_99 = arith.constant 0.000000e+00 : f32
    %239 = vector.broadcast %cst_99 : f32 to vector<16x2048xf32>
    %240 = arith.maximumf %238, %239 : vector<16x2048xf32>
    %241 = arith.truncf %240 : vector<16x2048xf32> to vector<16x2048xbf16>
    %c0_100 = arith.constant 0 : index
    %c0_101 = arith.constant 0 : index
    %c0_102 = arith.constant 0 : index
    %242 = vector.load %arg19[%c0_100, %c0_101, %c0_102] : memref<2x16x2048xbf16, #tpu.memory_space<vmem>>, vector<1x16x2048xbf16>
    %243 = vector.shape_cast %242 : vector<1x16x2048xbf16> to vector<16x2048xbf16>
    %cst_103 = arith.constant dense<0.000000e+00> : vector<16x16xf32>
    %244 = tpu.matmul %241, %243, %cst_103 {dimension_numbers = #tpu.dot_dimension_numbers<[1], [1], [0], [0], [0, 0, 1, 0], [], []>} : vector<16x2048xbf16>, vector<16x2048xbf16>, vector<16x16xf32> -> vector<16x16xf32>
    %c0_104 = arith.constant 0 : index
    %c0_105 = arith.constant 0 : index
    %c0_106 = arith.constant 0 : index
    %245 = vector.load %arg20[%c0_104, %c0_105, %c0_106] : memref<2x1x16xf32, #tpu.memory_space<vmem>>, vector<1x1x16xf32>
    %246 = vector.shape_cast %245 : vector<1x1x16xf32> to vector<1x16xf32>
    %247 = vector.broadcast %246 : vector<1x16xf32> to vector<16x16xf32>
    %248 = arith.addf %244, %247 : vector<16x16xf32>
    %249 = arith.addf %230, %248 : vector<16x16xf32>
    %c0_107 = arith.constant 0 : index
    %c0_108 = arith.constant 0 : index
    %c0_109 = arith.constant 0 : index
    %250 = vector.load %arg21[%c0_107, %c0_108, %c0_109] : memref<2x1x16xf32, #tpu.memory_space<vmem>>, vector<1x1x16xf32>
    %251 = vector.shape_cast %250 : vector<1x1x16xf32> to vector<1x16xf32>
    %c0_110 = arith.constant 0 : index
    %c0_111 = arith.constant 0 : index
    %c0_112 = arith.constant 0 : index
    %252 = vector.load %arg22[%c0_110, %c0_111, %c0_112] : memref<2x1x16xf32, #tpu.memory_space<vmem>>, vector<1x1x16xf32>
    %253 = vector.shape_cast %252 : vector<1x1x16xf32> to vector<1x16xf32>
    %cst_113 = arith.constant dense<0.000000e+00> : vector<16xf32>
    %254 = vector.multi_reduction <add>, %249, %cst_113 [1] : vector<16x16xf32> to vector<16xf32>
    %255 = vector.shape_cast %254 : vector<16xf32> to vector<16x1xf32>
    %cst_114 = arith.constant 1.600000e+01 : f32
    %256 = vector.broadcast %cst_114 : f32 to vector<16x1xf32>
    %257 = arith.divf %255, %256 : vector<16x1xf32>
    %258 = vector.broadcast %257 : vector<16x1xf32> to vector<16x16xf32>
    %259 = arith.subf %249, %258 : vector<16x16xf32>
    %260 = arith.mulf %259, %259 : vector<16x16xf32>
    %cst_115 = arith.constant dense<0.000000e+00> : vector<16xf32>
    %261 = vector.multi_reduction <add>, %260, %cst_115 [1] : vector<16x16xf32> to vector<16xf32>
    %262 = vector.shape_cast %261 : vector<16xf32> to vector<16x1xf32>
    %cst_116 = arith.constant 1.600000e+01 : f32
    %263 = vector.broadcast %cst_116 : f32 to vector<16x1xf32>
    %264 = arith.divf %262, %263 : vector<16x1xf32>
    %265 = vector.broadcast %257 : vector<16x1xf32> to vector<16x16xf32>
    %266 = arith.subf %249, %265 : vector<16x16xf32>
    %cst_117 = arith.constant 9.99999974E-6 : f32
    %267 = vector.broadcast %cst_117 : f32 to vector<16x1xf32>
    %268 = arith.addf %264, %267 : vector<16x1xf32>
    %269 = math.rsqrt %268 : vector<16x1xf32>
    %270 = vector.broadcast %269 : vector<16x1xf32> to vector<16x16xf32>
    %271 = arith.mulf %266, %270 : vector<16x16xf32>
    %272 = vector.broadcast %251 : vector<1x16xf32> to vector<16x16xf32>
    %273 = arith.mulf %271, %272 : vector<16x16xf32>
    %274 = vector.broadcast %253 : vector<1x16xf32> to vector<16x16xf32>
    %275 = arith.addf %273, %274 : vector<16x16xf32>
    %c1_118 = arith.constant 1 : index
    %c0_119 = arith.constant 0 : index
    %c0_120 = arith.constant 0 : index
    %276 = vector.load %arg7[%c1_118, %c0_119, %c0_120] : memref<2x16x16xf32, #tpu.memory_space<vmem>>, vector<1x16x16xf32>
    %277 = vector.shape_cast %276 : vector<1x16x16xf32> to vector<16x16xf32>
    %cst_121 = arith.constant dense<0.000000e+00> : vector<16x16xf32>
    %278 = tpu.matmul %275, %277, %cst_121 {dimension_numbers = #tpu.dot_dimension_numbers<[1], [0], [0], [1], [0, 0, 1, 1], [], []>} : vector<16x16xf32>, vector<16x16xf32>, vector<16x16xf32> -> vector<16x16xf32>
    %c1_122 = arith.constant 1 : index
    %c0_123 = arith.constant 0 : index
    %c0_124 = arith.constant 0 : index
    %279 = vector.load %arg10[%c1_122, %c0_123, %c0_124] : memref<2x1x16xf32, #tpu.memory_space<vmem>>, vector<1x1x16xf32>
    %280 = vector.shape_cast %279 : vector<1x1x16xf32> to vector<1x16xf32>
    %281 = vector.broadcast %280 : vector<1x16xf32> to vector<16x16xf32>
    %282 = arith.addf %278, %281 : vector<16x16xf32>
    %c1_125 = arith.constant 1 : index
    %c0_126 = arith.constant 0 : index
    %c0_127 = arith.constant 0 : index
    %283 = vector.load %arg8[%c1_125, %c0_126, %c0_127] : memref<2x16x16xf32, #tpu.memory_space<vmem>>, vector<1x16x16xf32>
    %284 = vector.shape_cast %283 : vector<1x16x16xf32> to vector<16x16xf32>
    %cst_128 = arith.constant dense<0.000000e+00> : vector<16x16xf32>
    %285 = tpu.matmul %275, %284, %cst_128 {dimension_numbers = #tpu.dot_dimension_numbers<[1], [0], [0], [1], [0, 0, 1, 1], [], []>} : vector<16x16xf32>, vector<16x16xf32>, vector<16x16xf32> -> vector<16x16xf32>
    %c1_129 = arith.constant 1 : index
    %c0_130 = arith.constant 0 : index
    %c0_131 = arith.constant 0 : index
    %286 = vector.load %arg11[%c1_129, %c0_130, %c0_131] : memref<2x1x16xf32, #tpu.memory_space<vmem>>, vector<1x1x16xf32>
    %287 = vector.shape_cast %286 : vector<1x1x16xf32> to vector<1x16xf32>
    %288 = vector.broadcast %287 : vector<1x16xf32> to vector<16x16xf32>
    %289 = arith.addf %285, %288 : vector<16x16xf32>
    %c1_132 = arith.constant 1 : index
    %c0_133 = arith.constant 0 : index
    %c0_134 = arith.constant 0 : index
    %290 = vector.load %arg9[%c1_132, %c0_133, %c0_134] : memref<2x16x16xf32, #tpu.memory_space<vmem>>, vector<1x16x16xf32>
    %291 = vector.shape_cast %290 : vector<1x16x16xf32> to vector<16x16xf32>
    %cst_135 = arith.constant dense<0.000000e+00> : vector<16x16xf32>
    %292 = tpu.matmul %275, %291, %cst_135 {dimension_numbers = #tpu.dot_dimension_numbers<[1], [0], [0], [1], [0, 0, 1, 1], [], []>} : vector<16x16xf32>, vector<16x16xf32>, vector<16x16xf32> -> vector<16x16xf32>
    %c1_136 = arith.constant 1 : index
    %c0_137 = arith.constant 0 : index
    %c0_138 = arith.constant 0 : index
    %293 = vector.load %arg12[%c1_136, %c0_137, %c0_138] : memref<2x1x16xf32, #tpu.memory_space<vmem>>, vector<1x1x16xf32>
    %294 = vector.shape_cast %293 : vector<1x1x16xf32> to vector<1x16xf32>
    %295 = vector.broadcast %294 : vector<1x16xf32> to vector<16x16xf32>
    %296 = arith.addf %292, %295 : vector<16x16xf32>
    %cst_139 = arith.constant 0.000000e+00 : f32
    %297 = vector.broadcast %cst_139 : f32 to vector<16x16xf32>
    %298 = vector.extract_strided_slice %282 {offsets = [0, 0], sizes = [16, 8], strides = [1, 1]} : vector<16x16xf32> to vector<16x8xf32>
    %299 = vector.extract_strided_slice %289 {offsets = [0, 0], sizes = [16, 8], strides = [1, 1]} : vector<16x16xf32> to vector<16x8xf32>
    %300 = vector.extract_strided_slice %296 {offsets = [0, 0], sizes = [16, 8], strides = [1, 1]} : vector<16x16xf32> to vector<16x8xf32>
    %cst_140 = arith.constant dense<0.000000e+00> : vector<16x16xf32>
    %301 = tpu.matmul %298, %299, %cst_140 {dimension_numbers = #tpu.dot_dimension_numbers<[1], [1], [0], [0], [0, 0, 1, 0], [], []>} : vector<16x8xf32>, vector<16x8xf32>, vector<16x16xf32> -> vector<16x16xf32>
    %cst_141 = arith.constant 0.353553385 : f32
    %302 = vector.broadcast %cst_141 : f32 to vector<16x16xf32>
    %303 = arith.mulf %301, %302 : vector<16x16xf32>
    %cst_142 = arith.constant -1.000000e+30 : f32
    %304 = vector.broadcast %cst_142 : f32 to vector<16x16xf32>
    %305 = arith.select %127, %303, %304 : vector<16x16xi1>, vector<16x16xf32>
    %cst_143 = arith.constant dense<0xFF800000> : vector<16xf32>
    %306 = vector.multi_reduction <maximumf>, %305, %cst_143 [1] : vector<16x16xf32> to vector<16xf32>
    %307 = vector.shape_cast %306 : vector<16xf32> to vector<16x1xf32>
    %308 = vector.broadcast %307 : vector<16x1xf32> to vector<16x16xf32>
    %309 = arith.subf %305, %308 : vector<16x16xf32>
    %310 = math.exp %309 : vector<16x16xf32>
    %cst_144 = arith.constant 0.000000e+00 : f32
    %311 = vector.broadcast %cst_144 : f32 to vector<16x16xf32>
    %312 = arith.select %127, %310, %311 : vector<16x16xi1>, vector<16x16xf32>
    %cst_145 = arith.constant dense<0.000000e+00> : vector<16xf32>
    %313 = vector.multi_reduction <add>, %312, %cst_145 [1] : vector<16x16xf32> to vector<16xf32>
    %314 = vector.shape_cast %313 : vector<16xf32> to vector<16x1xf32>
    %315 = tpu.reciprocal %314 {approx = true} : vector<16x1xf32> -> vector<16x1xf32>
    %316 = vector.broadcast %315 : vector<16x1xf32> to vector<16x16xf32>
    %317 = arith.mulf %312, %316 : vector<16x16xf32>
    %cst_146 = arith.constant dense<0.000000e+00> : vector<16x8xf32>
    %318 = tpu.matmul %317, %300, %cst_146 {dimension_numbers = #tpu.dot_dimension_numbers<[1], [0], [0], [1], [0, 0, 1, 1], [], []>} : vector<16x16xf32>, vector<16x8xf32>, vector<16x8xf32> -> vector<16x8xf32>
    %c1_147 = arith.constant 1 : index
    %c0_148 = arith.constant 0 : index
    %c0_149 = arith.constant 0 : index
    %c0_150 = arith.constant 0 : index
    %319 = vector.load %arg13[%c1_147, %c0_148, %c0_149, %c0_150] : memref<2x2x8x16xf32, #tpu.memory_space<vmem>>, vector<1x1x8x16xf32>
    %320 = vector.shape_cast %319 : vector<1x1x8x16xf32> to vector<8x16xf32>
    %cst_151 = arith.constant dense<0.000000e+00> : vector<16x16xf32>
    %321 = tpu.matmul %318, %320, %cst_151 {dimension_numbers = #tpu.dot_dimension_numbers<[1], [0], [0], [1], [0, 0, 1, 1], [], []>} : vector<16x8xf32>, vector<8x16xf32>, vector<16x16xf32> -> vector<16x16xf32>
    %322 = arith.addf %297, %321 : vector<16x16xf32>
    %323 = vector.extract_strided_slice %282 {offsets = [0, 8], sizes = [16, 8], strides = [1, 1]} : vector<16x16xf32> to vector<16x8xf32>
    %324 = vector.extract_strided_slice %289 {offsets = [0, 8], sizes = [16, 8], strides = [1, 1]} : vector<16x16xf32> to vector<16x8xf32>
    %325 = vector.extract_strided_slice %296 {offsets = [0, 8], sizes = [16, 8], strides = [1, 1]} : vector<16x16xf32> to vector<16x8xf32>
    %cst_152 = arith.constant dense<0.000000e+00> : vector<16x16xf32>
    %326 = tpu.matmul %323, %324, %cst_152 {dimension_numbers = #tpu.dot_dimension_numbers<[1], [1], [0], [0], [0, 0, 1, 0], [], []>} : vector<16x8xf32>, vector<16x8xf32>, vector<16x16xf32> -> vector<16x16xf32>
    %cst_153 = arith.constant 0.353553385 : f32
    %327 = vector.broadcast %cst_153 : f32 to vector<16x16xf32>
    %328 = arith.mulf %326, %327 : vector<16x16xf32>
    %cst_154 = arith.constant -1.000000e+30 : f32
    %329 = vector.broadcast %cst_154 : f32 to vector<16x16xf32>
    %330 = arith.select %127, %328, %329 : vector<16x16xi1>, vector<16x16xf32>
    %cst_155 = arith.constant dense<0xFF800000> : vector<16xf32>
    %331 = vector.multi_reduction <maximumf>, %330, %cst_155 [1] : vector<16x16xf32> to vector<16xf32>
    %332 = vector.shape_cast %331 : vector<16xf32> to vector<16x1xf32>
    %333 = vector.broadcast %332 : vector<16x1xf32> to vector<16x16xf32>
    %334 = arith.subf %330, %333 : vector<16x16xf32>
    %335 = math.exp %334 : vector<16x16xf32>
    %cst_156 = arith.constant 0.000000e+00 : f32
    %336 = vector.broadcast %cst_156 : f32 to vector<16x16xf32>
    %337 = arith.select %127, %335, %336 : vector<16x16xi1>, vector<16x16xf32>
    %cst_157 = arith.constant dense<0.000000e+00> : vector<16xf32>
    %338 = vector.multi_reduction <add>, %337, %cst_157 [1] : vector<16x16xf32> to vector<16xf32>
    %339 = vector.shape_cast %338 : vector<16xf32> to vector<16x1xf32>
    %340 = tpu.reciprocal %339 {approx = true} : vector<16x1xf32> -> vector<16x1xf32>
    %341 = vector.broadcast %340 : vector<16x1xf32> to vector<16x16xf32>
    %342 = arith.mulf %337, %341 : vector<16x16xf32>
    %cst_158 = arith.constant dense<0.000000e+00> : vector<16x8xf32>
    %343 = tpu.matmul %342, %325, %cst_158 {dimension_numbers = #tpu.dot_dimension_numbers<[1], [0], [0], [1], [0, 0, 1, 1], [], []>} : vector<16x16xf32>, vector<16x8xf32>, vector<16x8xf32> -> vector<16x8xf32>
    %c1_159 = arith.constant 1 : index
    %c1_160 = arith.constant 1 : index
    %c0_161 = arith.constant 0 : index
    %c0_162 = arith.constant 0 : index
    %344 = vector.load %arg13[%c1_159, %c1_160, %c0_161, %c0_162] : memref<2x2x8x16xf32, #tpu.memory_space<vmem>>, vector<1x1x8x16xf32>
    %345 = vector.shape_cast %344 : vector<1x1x8x16xf32> to vector<8x16xf32>
    %cst_163 = arith.constant dense<0.000000e+00> : vector<16x16xf32>
    %346 = tpu.matmul %343, %345, %cst_163 {dimension_numbers = #tpu.dot_dimension_numbers<[1], [0], [0], [1], [0, 0, 1, 1], [], []>} : vector<16x8xf32>, vector<8x16xf32>, vector<16x16xf32> -> vector<16x16xf32>
    %347 = arith.addf %322, %346 : vector<16x16xf32>
    %c1_164 = arith.constant 1 : index
    %c0_165 = arith.constant 0 : index
    %c0_166 = arith.constant 0 : index
    %348 = vector.load %arg14[%c1_164, %c0_165, %c0_166] : memref<2x1x16xf32, #tpu.memory_space<vmem>>, vector<1x1x16xf32>
    %349 = vector.shape_cast %348 : vector<1x1x16xf32> to vector<1x16xf32>
    %350 = vector.broadcast %349 : vector<1x16xf32> to vector<16x16xf32>
    %351 = arith.addf %347, %350 : vector<16x16xf32>
    %352 = arith.addf %275, %351 : vector<16x16xf32>
    %c1_167 = arith.constant 1 : index
    %c0_168 = arith.constant 0 : index
    %c0_169 = arith.constant 0 : index
    %353 = vector.load %arg15[%c1_167, %c0_168, %c0_169] : memref<2x1x16xf32, #tpu.memory_space<vmem>>, vector<1x1x16xf32>
    %354 = vector.shape_cast %353 : vector<1x1x16xf32> to vector<1x16xf32>
    %c1_170 = arith.constant 1 : index
    %c0_171 = arith.constant 0 : index
    %c0_172 = arith.constant 0 : index
    %355 = vector.load %arg16[%c1_170, %c0_171, %c0_172] : memref<2x1x16xf32, #tpu.memory_space<vmem>>, vector<1x1x16xf32>
    %356 = vector.shape_cast %355 : vector<1x1x16xf32> to vector<1x16xf32>
    %cst_173 = arith.constant dense<0.000000e+00> : vector<16xf32>
    %357 = vector.multi_reduction <add>, %352, %cst_173 [1] : vector<16x16xf32> to vector<16xf32>
    %358 = vector.shape_cast %357 : vector<16xf32> to vector<16x1xf32>
    %cst_174 = arith.constant 1.600000e+01 : f32
    %359 = vector.broadcast %cst_174 : f32 to vector<16x1xf32>
    %360 = arith.divf %358, %359 : vector<16x1xf32>
    %361 = vector.broadcast %360 : vector<16x1xf32> to vector<16x16xf32>
    %362 = arith.subf %352, %361 : vector<16x16xf32>
    %363 = arith.mulf %362, %362 : vector<16x16xf32>
    %cst_175 = arith.constant dense<0.000000e+00> : vector<16xf32>
    %364 = vector.multi_reduction <add>, %363, %cst_175 [1] : vector<16x16xf32> to vector<16xf32>
    %365 = vector.shape_cast %364 : vector<16xf32> to vector<16x1xf32>
    %cst_176 = arith.constant 1.600000e+01 : f32
    %366 = vector.broadcast %cst_176 : f32 to vector<16x1xf32>
    %367 = arith.divf %365, %366 : vector<16x1xf32>
    %368 = vector.broadcast %360 : vector<16x1xf32> to vector<16x16xf32>
    %369 = arith.subf %352, %368 : vector<16x16xf32>
    %cst_177 = arith.constant 9.99999974E-6 : f32
    %370 = vector.broadcast %cst_177 : f32 to vector<16x1xf32>
    %371 = arith.addf %367, %370 : vector<16x1xf32>
    %372 = math.rsqrt %371 : vector<16x1xf32>
    %373 = vector.broadcast %372 : vector<16x1xf32> to vector<16x16xf32>
    %374 = arith.mulf %369, %373 : vector<16x16xf32>
    %375 = vector.broadcast %354 : vector<1x16xf32> to vector<16x16xf32>
    %376 = arith.mulf %374, %375 : vector<16x16xf32>
    %377 = vector.broadcast %356 : vector<1x16xf32> to vector<16x16xf32>
    %378 = arith.addf %376, %377 : vector<16x16xf32>
    %379 = arith.truncf %378 : vector<16x16xf32> to vector<16x16xbf16>
    %c1_178 = arith.constant 1 : index
    %c0_179 = arith.constant 0 : index
    %c0_180 = arith.constant 0 : index
    %380 = vector.load %arg17[%c1_178, %c0_179, %c0_180] : memref<2x16x2048xbf16, #tpu.memory_space<vmem>>, vector<1x16x2048xbf16>
    %381 = vector.shape_cast %380 : vector<1x16x2048xbf16> to vector<16x2048xbf16>
    %cst_181 = arith.constant dense<0.000000e+00> : vector<16x2048xf32>
    %382 = tpu.matmul %379, %381, %cst_181 {dimension_numbers = #tpu.dot_dimension_numbers<[1], [0], [0], [1], [0, 0, 1, 1], [], []>} : vector<16x16xbf16>, vector<16x2048xbf16>, vector<16x2048xf32> -> vector<16x2048xf32>
    %c1_182 = arith.constant 1 : index
    %c0_183 = arith.constant 0 : index
    %c0_184 = arith.constant 0 : index
    %383 = vector.load %arg18[%c1_182, %c0_183, %c0_184] : memref<2x1x2048xf32, #tpu.memory_space<vmem>>, vector<1x1x2048xf32>
    %384 = vector.shape_cast %383 : vector<1x1x2048xf32> to vector<1x2048xf32>
    %385 = vector.broadcast %384 : vector<1x2048xf32> to vector<16x2048xf32>
    %386 = arith.addf %382, %385 : vector<16x2048xf32>
    %cst_185 = arith.constant 0.000000e+00 : f32
    %387 = vector.broadcast %cst_185 : f32 to vector<16x2048xf32>
    %388 = arith.maximumf %386, %387 : vector<16x2048xf32>
    %389 = arith.truncf %388 : vector<16x2048xf32> to vector<16x2048xbf16>
    %c1_186 = arith.constant 1 : index
    %c0_187 = arith.constant 0 : index
    %c0_188 = arith.constant 0 : index
    %390 = vector.load %arg19[%c1_186, %c0_187, %c0_188] : memref<2x16x2048xbf16, #tpu.memory_space<vmem>>, vector<1x16x2048xbf16>
    %391 = vector.shape_cast %390 : vector<1x16x2048xbf16> to vector<16x2048xbf16>
    %cst_189 = arith.constant dense<0.000000e+00> : vector<16x16xf32>
    %392 = tpu.matmul %389, %391, %cst_189 {dimension_numbers = #tpu.dot_dimension_numbers<[1], [1], [0], [0], [0, 0, 1, 0], [], []>} : vector<16x2048xbf16>, vector<16x2048xbf16>, vector<16x16xf32> -> vector<16x16xf32>
    %c1_190 = arith.constant 1 : index
    %c0_191 = arith.constant 0 : index
    %c0_192 = arith.constant 0 : index
    %393 = vector.load %arg20[%c1_190, %c0_191, %c0_192] : memref<2x1x16xf32, #tpu.memory_space<vmem>>, vector<1x1x16xf32>
    %394 = vector.shape_cast %393 : vector<1x1x16xf32> to vector<1x16xf32>
    %395 = vector.broadcast %394 : vector<1x16xf32> to vector<16x16xf32>
    %396 = arith.addf %392, %395 : vector<16x16xf32>
    %397 = arith.addf %378, %396 : vector<16x16xf32>
    %c1_193 = arith.constant 1 : index
    %c0_194 = arith.constant 0 : index
    %c0_195 = arith.constant 0 : index
    %398 = vector.load %arg21[%c1_193, %c0_194, %c0_195] : memref<2x1x16xf32, #tpu.memory_space<vmem>>, vector<1x1x16xf32>
    %399 = vector.shape_cast %398 : vector<1x1x16xf32> to vector<1x16xf32>
    %c1_196 = arith.constant 1 : index
    %c0_197 = arith.constant 0 : index
    %c0_198 = arith.constant 0 : index
    %400 = vector.load %arg22[%c1_196, %c0_197, %c0_198] : memref<2x1x16xf32, #tpu.memory_space<vmem>>, vector<1x1x16xf32>
    %401 = vector.shape_cast %400 : vector<1x1x16xf32> to vector<1x16xf32>
    %cst_199 = arith.constant dense<0.000000e+00> : vector<16xf32>
    %402 = vector.multi_reduction <add>, %397, %cst_199 [1] : vector<16x16xf32> to vector<16xf32>
    %403 = vector.shape_cast %402 : vector<16xf32> to vector<16x1xf32>
    %cst_200 = arith.constant 1.600000e+01 : f32
    %404 = vector.broadcast %cst_200 : f32 to vector<16x1xf32>
    %405 = arith.divf %403, %404 : vector<16x1xf32>
    %406 = vector.broadcast %405 : vector<16x1xf32> to vector<16x16xf32>
    %407 = arith.subf %397, %406 : vector<16x16xf32>
    %408 = arith.mulf %407, %407 : vector<16x16xf32>
    %cst_201 = arith.constant dense<0.000000e+00> : vector<16xf32>
    %409 = vector.multi_reduction <add>, %408, %cst_201 [1] : vector<16x16xf32> to vector<16xf32>
    %410 = vector.shape_cast %409 : vector<16xf32> to vector<16x1xf32>
    %cst_202 = arith.constant 1.600000e+01 : f32
    %411 = vector.broadcast %cst_202 : f32 to vector<16x1xf32>
    %412 = arith.divf %410, %411 : vector<16x1xf32>
    %413 = vector.broadcast %405 : vector<16x1xf32> to vector<16x16xf32>
    %414 = arith.subf %397, %413 : vector<16x16xf32>
    %cst_203 = arith.constant 9.99999974E-6 : f32
    %415 = vector.broadcast %cst_203 : f32 to vector<16x1xf32>
    %416 = arith.addf %412, %415 : vector<16x1xf32>
    %417 = math.rsqrt %416 : vector<16x1xf32>
    %418 = vector.broadcast %417 : vector<16x1xf32> to vector<16x16xf32>
    %419 = arith.mulf %414, %418 : vector<16x16xf32>
    %420 = vector.broadcast %399 : vector<1x16xf32> to vector<16x16xf32>
    %421 = arith.mulf %419, %420 : vector<16x16xf32>
    %422 = vector.broadcast %401 : vector<1x16xf32> to vector<16x16xf32>
    %423 = arith.addf %421, %422 : vector<16x16xf32>
    %424 = vector.shape_cast %423 : vector<16x16xf32> to vector<2x8x16xf32>
    %c0_204 = arith.constant 0 : index
    %c0_205 = arith.constant 0 : index
    %c0_206 = arith.constant 0 : index
    %425 = vector.load %arg23[%c0_204, %c0_205, %c0_206] : memref<2x8x16xf32, #tpu.memory_space<vmem>>, vector<2x8x16xf32>
    tpu.vector_store %arg23[%c0_204, %c0_205, %c0_206], %424 {strides = array<i32>} : memref<2x8x16xf32, #tpu.memory_space<vmem>>, vector<2x8x16xf32>,
    return
  }
}

</mosaic_0001>

<llo_original>
// kernel: encoder_forward.1
$region0: #{encoder_forward.1}
  #allocation0 [shape = 'u32[]', space=smem, size = 0x4, offset = 0x4, fixed_abs, tag = 'smem constant byte address 0x4 - core index']
  #allocation1 [shape = 'u32[144,128]{1,0:T(1,128)}', space=vmem, size = 0x12000, scoped, tag = 'internal scratch']
  %s0 = inlined_call_operand.hbm [shape: f32[2,4,204], index: 0, kind: input, shape index: {}]
  %s1 = inlined_call_operand.vmem [shape: f32[32,100], index: 1, kind: input, shape index: {}]
  %s2 = inlined_call_operand.vmem [shape: f32[32,1], index: 2, kind: input, shape index: {}]
  %s3 = inlined_call_operand.vmem [shape: f32[4,32], index: 3, kind: input, shape index: {}]
  %s4 = inlined_call_operand.vmem [shape: f32[4,1], index: 4, kind: input, shape index: {}]
  %s5 = inlined_call_operand.vmem [shape: f32[4,16], index: 5, kind: input, shape index: {}]
  %s6 = inlined_call_operand.hbm [shape: f32[1,16], index: 6, kind: input, shape index: {}]
  %s7 = inlined_call_operand.vmem [shape: f32[2,16,16], index: 7, kind: input, shape index: {}]
  %s8 = inlined_call_operand.vmem [shape: f32[2,16,16], index: 8, kind: input, shape index: {}]
  %s9 = inlined_call_operand.hbm [shape: f32[2,16,16], index: 9, kind: input, shape index: {}]
  %s10 = inlined_call_operand.hbm [shape: f32[2,1,16], index: 10, kind: input, shape index: {}]
  %s11 = inlined_call_operand.hbm [shape: f32[2,1,16], index: 11, kind: input, shape index: {}]
  %s12 = inlined_call_operand.vmem [shape: f32[2,1,16], index: 12, kind: input, shape index: {}]
  %s13 = inlined_call_operand.hbm [shape: f32[2,2,8,16], index: 13, kind: input, shape index: {}]
  %s14 = inlined_call_operand.hbm [shape: f32[2,1,16], index: 14, kind: input, shape index: {}]
  %s15 = inlined_call_operand.hbm [shape: f32[2,1,16], index: 15, kind: input, shape index: {}]
  %s16 = inlined_call_operand.hbm [shape: f32[2,1,16], index: 16, kind: input, shape index: {}]
  %s17 = inlined_call_operand.hbm [shape: bf16[2,16,2048], index: 17, kind: input, shape index: {}]
  %s18 = inlined_call_operand.hbm [shape: f32[2,1,2048], index: 18, kind: input, shape index: {}]
  %s19 = inlined_call_operand.hbm [shape: bf16[2,16,2048], index: 19, kind: input, shape index: {}]
  %s20 = inlined_call_operand.hbm [shape: f32[2,1,16], index: 20, kind: input, shape index: {}]
  %s21 = inlined_call_operand.hbm [shape: f32[2,1,16], index: 21, kind: input, shape index: {}]
  %s22 = inlined_call_operand.hbm [shape: f32[2,1,16], index: 22, kind: input, shape index: {}]
  %s23 = inlined_call_operand.hbm [shape: f32[2,8,16], index: 23, kind: output, shape index: {}]
  %s24 = sld [smem:[#allocation0]]
  $region162: #{encoder_forward.1} parent=0
    _
  %s26 = ssub.s32 1, %s24
  %s27 = scalar_select 0, %s26, %s24
  $region1: #{encoder_forward.1} parent=0
    #allocation2 [shape = 'u8[8192]{0}', space=vmem, size = 0x2000, scoped, tag = 'input window, operand 0, single buffered']
    #allocation3 [shape = 's32[1]{0}', space=sflag, size = 0x4, scoped, tag = 'scoped memory for encoder_forward.1']
    #allocation4 [shape = 's32[1]{0}', space=sflag, size = 0x4, scoped, tag = 'scoped memory for encoder_forward.1']
    #allocation5 [shape = 'u8[512]{0}', space=vmem, size = 0x400, scoped, tag = 'input window, operand 6, single buffered']
    #allocation6 [shape = 's32[1]{0}', space=sflag, size = 0x4, scoped, tag = 'scoped memory for encoder_forward.1']
    #allocation7 [shape = 'u8[16384]{0}', space=vmem, size = 0x4000, scoped, tag = 'input window, operand 9, single buffered']
    #allocation8 [shape = 'u8[1024]{0}', space=vmem, size = 0x400, scoped, tag = 'input window, operand 10, single buffered']
    #allocation9 [shape = 's32[1]{0}', space=sflag, size = 0x4, scoped, tag = 'scoped memory for encoder_forward.1']
    #allocation10 [shape = 'u8[1024]{0}', space=vmem, size = 0x400, scoped, tag = 'input window, operand 11, single buffered']
    #allocation11 [shape = 'u8[16384]{0}', space=vmem, size = 0x4000, scoped, tag = 'input window, operand 13, single buffered']
    #allocation12 [shape = 's32[1]{0}', space=sflag, size = 0x4, scoped, tag = 'scoped memory for encoder_forward.1']
    #allocation13 [shape = 'u8[1024]{0}', space=vmem, size = 0x400, scoped, tag = 'input window, operand 14, single buffered']
    #allocation14 [shape = 'u8[1024]{0}', space=vmem, size = 0x400, scoped, tag = 'input window, operand 15, single buffered']
    #allocation15 [shape = 's32[1]{0}', space=sflag, size = 0x4, scoped, tag = 'scoped memory for encoder_forward.1']
    #allocation16 [shape = 'u8[1024]{0}', space=vmem, size = 0x400, scoped, tag = 'input window, operand 16, single buffered']
    #allocation17 [shape = 'u8[131072]{0}', space=vmem, size = 0x20000, scoped, tag = 'input window, operand 17, single buffered']
    #allocation18 [shape = 's32[1]{0}', space=sflag, size = 0x4, scoped, tag = 'scoped memory for encoder_forward.1']
    #allocation19 [shape = 'u8[16384]{0}', space=vmem, size = 0x4000, scoped, tag = 'input window, operand 18, single buffered']
    #allocation20 [shape = 'u8[131072]{0}', space=vmem, size = 0x20000, scoped, tag = 'input window, operand 19, single buffered']
    #allocation21 [shape = 's32[1]{0}', space=sflag, size = 0x4, scoped, tag = 'scoped memory for encoder_forward.1']
    #allocation22 [shape = 'u8[1024]{0}', space=vmem, size = 0x400, scoped, tag = 'input window, operand 20, single buffered']
    #allocation23 [shape = 'u8[1024]{0}', space=vmem, size = 0x400, scoped, tag = 'input window, operand 21, single buffered']
    #allocation24 [shape = 's32[1]{0}', space=sflag, size = 0x4, scoped, tag = 'scoped memory for encoder_forward.1']
    #allocation25 [shape = 'u8[1024]{0}', space=vmem, size = 0x400, scoped, tag = 'input window, operand 22, single buffered']
    #allocation26 [shape = 'u8[8192]{0}', space=vmem, size = 0x2000, scoped, tag = 'output window, operand 0, single buffered']
    %28 = vsyncpa [#allocation3], 0
    %29 = vsyncpa [#allocation6], 0
    %30 = vsyncpa [#allocation9], 0
    %31 = vsyncpa [#allocation12], 0
    %32 = vsyncpa [#allocation15], 0
    %33 = vsyncpa [#allocation18], 0
    %34 = vsyncpa [#allocation21], 0
    %35 = vsyncpa [#allocation24], 0
    %36 = vsyncpa [#allocation4], 0
    // Predicated region
    $region2: #{encoder_forward.1} parent=1 // pred_check
      _
    $region3: #{encoder_forward.1} parent=1 // pred_check_branch
      %38 = sbr.rel (0) target = $region5
    $region4: #{encoder_forward.1} parent=1 // pred_region
      %s40 = ssub.s32 256, 256
      %41 = vsyncadd [#allocation3], %s40
      %s42 = sshll.u32 [#allocation2], 4
      %s43 = int_to_ptr.vmem [resolvable:$true] %s42
      %48 = dma.hbm_to_vmem [thread:$0]  %s0, 256, %s43, [#allocation3], 128, 128, 8
    $region5: #{encoder_forward.1} parent=1 // pred_fallthru
      _
    // Predicated region
    $region6: #{encoder_forward.1} parent=1 // pred_check
      _
    $region7: #{encoder_forward.1} parent=1 // pred_check_branch
      %50 = sbr.rel (0) target = $region9
    $region8: #{encoder_forward.1} parent=1 // pred_region
      _
    $region9: #{encoder_forward.1} parent=1 // pred_fallthru
      _
    // Predicated region
    $region10: #{encoder_forward.1} parent=1 // pred_check
      _
    $region11: #{encoder_forward.1} parent=1 // pred_check_branch
      %52 = sbr.rel (0) target = $region13
    $region12: #{encoder_forward.1} parent=1 // pred_region
      _
    $region13: #{encoder_forward.1} parent=1 // pred_fallthru
      _
    // Predicated region
    $region14: #{encoder_forward.1} parent=1 // pred_check
      _
    $region15: #{encoder_forward.1} parent=1 // pred_check_branch
      %54 = sbr.rel (0) target = $region17
    $region16: #{encoder_forward.1} parent=1 // pred_region
      _
    $region17: #{encoder_forward.1} parent=1 // pred_fallthru
      _
    // Predicated region
    $region18: #{encoder_forward.1} parent=1 // pred_check
      _
    $region19: #{encoder_forward.1} parent=1 // pred_check_branch
      %56 = sbr.rel (0) target = $region21
    $region20: #{encoder_forward.1} parent=1 // pred_region
      _
    $region21: #{encoder_forward.1} parent=1 // pred_fallthru
      _
    // Predicated region
    $region22: #{encoder_forward.1} parent=1 // pred_check
      _
    $region23: #{encoder_forward.1} parent=1 // pred_check_branch
      %58 = sbr.rel (0) target = $region25
    $region24: #{encoder_forward.1} parent=1 // pred_region
      _
    $region25: #{encoder_forward.1} parent=1 // pred_fallthru
      _
    // Predicated region
    $region26: #{encoder_forward.1} parent=1 // pred_check
      _
    $region27: #{encoder_forward.1} parent=1 // pred_check_branch
      %60 = sbr.rel (0) target = $region29
    $region28: #{encoder_forward.1} parent=1 // pred_region
      %s62 = ssub.s32 16, 16
      %63 = vsyncadd [#allocation6], %s62
      %s65 = sshll.u32 [#allocation5], 4
      %s66 = int_to_ptr.vmem [resolvable:$true] %s65
      %68 = dma.hbm_to_vmem [thread:$0]  %s6, 16, %s66, [#allocation6]
    $region29: #{encoder_forward.1} parent=1 // pred_fallthru
      _
    // Predicated region
    $region30: #{encoder_forward.1} parent=1 // pred_check
      _
    $region31: #{encoder_forward.1} parent=1 // pred_check_branch
      %70 = sbr.rel (0) target = $region33
    $region32: #{encoder_forward.1} parent=1 // pred_region
      _
    $region33: #{encoder_forward.1} parent=1 // pred_fallthru
      _
    // Predicated region
    $region34: #{encoder_forward.1} parent=1 // pred_check
      _
    $region35: #{encoder_forward.1} parent=1 // pred_check_branch
      %72 = sbr.rel (0) target = $region37
    $region36: #{encoder_forward.1} parent=1 // pred_region
      _
    $region37: #{encoder_forward.1} parent=1 // pred_fallthru
      _
    // Predicated region
    $region38: #{encoder_forward.1} parent=1 // pred_check
      _
    $region39: #{encoder_forward.1} parent=1 // pred_check_branch
      %74 = sbr.rel (0) target = $region41
    $region40: #{encoder_forward.1} parent=1 // pred_region
      %s76 = ssub.s32 512, 512
      %77 = vsyncadd [#allocation6], %s76
      %s78 = sshll.u32 [#allocation7], 4
      %s79 = int_to_ptr.vmem [resolvable:$true] %s78
      %84 = dma.hbm_to_vmem [thread:$0]  %s9, 512, %s79, [#allocation6], 128, 128, 8
    $region41: #{encoder_forward.1} parent=1 // pred_fallthru
      _
    // Predicated region
    $region42: #{encoder_forward.1} parent=1 // pred_check
      _
    $region43: #{encoder_forward.1} parent=1 // pred_check_branch
      %86 = sbr.rel (0) target = $region45
    $region44: #{encoder_forward.1} parent=1 // pred_region
      %s88 = ssub.s32 32, 32
      %89 = vsyncadd [#allocation9], %s88
      %s90 = sshll.u32 [#allocation8], 4
      %s91 = int_to_ptr.vmem [resolvable:$true] %s90
      %96 = dma.hbm_to_vmem [thread:$0]  %s10, 32, %s91, [#allocation9], 16, 16, 1
    $region45: #{encoder_forward.1} parent=1 // pred_fallthru
      _
    // Predicated region
    $region46: #{encoder_forward.1} parent=1 // pred_check
      _
    $region47: #{encoder_forward.1} parent=1 // pred_check_branch
      %98 = sbr.rel (0) target = $region49
    $region48: #{encoder_forward.1} parent=1 // pred_region
      %s100 = ssub.s32 32, 32
      %101 = vsyncadd [#allocation9], %s100
      %s102 = sshll.u32 [#allocation10], 4
      %s103 = int_to_ptr.vmem [resolvable:$true] %s102
      %108 = dma.hbm_to_vmem [thread:$0]  %s11, 32, %s103, [#allocation9], 16, 16, 1
    $region49: #{encoder_forward.1} parent=1 // pred_fallthru
      _
    // Predicated region
    $region50: #{encoder_forward.1} parent=1 // pred_check
      _
    $region51: #{encoder_forward.1} parent=1 // pred_check_branch
      %110 = sbr.rel (0) target = $region53
    $region52: #{encoder_forward.1} parent=1 // pred_region
      _
    $region53: #{encoder_forward.1} parent=1 // pred_fallthru
      _
    // Predicated region
    $region54: #{encoder_forward.1} parent=1 // pred_check
      _
    $region55: #{encoder_forward.1} parent=1 // pred_check_branch
      %112 = sbr.rel (0) target = $region57
    $region56: #{encoder_forward.1} parent=1 // pred_region
      %s114 = ssub.s32 512, 512
      %115 = vsyncadd [#allocation12], %s114
      %s116 = sshll.u32 [#allocation11], 4
      %s117 = int_to_ptr.vmem [resolvable:$true] %s116
      %122 = dma.hbm_to_vmem [thread:$0]  %s13, 512, %s117, [#allocation12], 128, 128, 8
    $region57: #{encoder_forward.1} parent=1 // pred_fallthru
      _
    // Predicated region
    $region58: #{encoder_forward.1} parent=1 // pred_check
      _
    $region59: #{encoder_forward.1} parent=1 // pred_check_branch
      %124 = sbr.rel (0) target = $region61
    $region60: #{encoder_forward.1} parent=1 // pred_region
      %s126 = ssub.s32 32, 32
      %127 = vsyncadd [#allocation12], %s126
      %s128 = sshll.u32 [#allocation13], 4
      %s129 = int_to_ptr.vmem [resolvable:$true] %s128
      %134 = dma.hbm_to_vmem [thread:$0]  %s14, 32, %s129, [#allocation12], 16, 16, 1
    $region61: #{encoder_forward.1} parent=1 // pred_fallthru
      _
    // Predicated region
    $region62: #{encoder_forward.1} parent=1 // pred_check
      _
    $region63: #{encoder_forward.1} parent=1 // pred_check_branch
      %136 = sbr.rel (0) target = $region65
    $region64: #{encoder_forward.1} parent=1 // pred_region
      %s138 = ssub.s32 32, 32
      %139 = vsyncadd [#allocation15], %s138
      %s140 = sshll.u32 [#allocation14], 4
      %s141 = int_to_ptr.vmem [resolvable:$true] %s140
      %146 = dma.hbm_to_vmem [thread:$0]  %s15, 32, %s141, [#allocation15], 16, 16, 1
    $region65: #{encoder_forward.1} parent=1 // pred_fallthru
      _
    // Predicated region
    $region66: #{encoder_forward.1} parent=1 // pred_check
      _
    $region67: #{encoder_forward.1} parent=1 // pred_check_branch
      %148 = sbr.rel (0) target = $region69
    $region68: #{encoder_forward.1} parent=1 // pred_region
      %s150 = ssub.s32 32, 32
      %151 = vsyncadd [#allocation15], %s150
      %s152 = sshll.u32 [#allocation16], 4
      %s153 = int_to_ptr.vmem [resolvable:$true] %s152
      %158 = dma.hbm_to_vmem [thread:$0]  %s16, 32, %s153, [#allocation15], 16, 16, 1
    $region69: #{encoder_forward.1} parent=1 // pred_fallthru
      _
    // Predicated region
    $region70: #{encoder_forward.1} parent=1 // pred_check
      _
    $region71: #{encoder_forward.1} parent=1 // pred_check_branch
      %160 = sbr.rel (0) target = $region73
    $region72: #{encoder_forward.1} parent=1 // pred_region
      %s162 = ssub.s32 4096, 4096
      %163 = vsyncadd [#allocation18], %s162
      %s164 = sshll.u32 [#allocation17], 4
      %s165 = int_to_ptr.vmem [resolvable:$true] %s164
      %170 = dma.hbm_to_vmem [thread:$0]  %s17, 4096, %s165, [#allocation18], 1024, 1024, 64
    $region73: #{encoder_forward.1} parent=1 // pred_fallthru
      _
    // Predicated region
    $region74: #{encoder_forward.1} parent=1 // pred_check
      _
    $region75: #{encoder_forward.1} parent=1 // pred_check_branch
      %172 = sbr.rel (0) target = $region77
    $region76: #{encoder_forward.1} parent=1 // pred_region
      %s174 = ssub.s32 512, 512
      %175 = vsyncadd [#allocation18], %s174
      %s176 = sshll.u32 [#allocation19], 4
      %s177 = int_to_ptr.vmem [resolvable:$true] %s176
      %182 = dma.hbm_to_vmem [thread:$0]  %s18, 512, %s177, [#allocation18], 256, 256, 16
    $region77: #{encoder_forward.1} parent=1 // pred_fallthru
      _
    // Predicated region
    $region78: #{encoder_forward.1} parent=1 // pred_check
      _
    $region79: #{encoder_forward.1} parent=1 // pred_check_branch
      %184 = sbr.rel (0) target = $region81
    $region80: #{encoder_forward.1} parent=1 // pred_region
      %s186 = ssub.s32 4096, 4096
      %187 = vsyncadd [#allocation21], %s186
      %s188 = sshll.u32 [#allocation20], 4
      %s189 = int_to_ptr.vmem [resolvable:$true] %s188
      %194 = dma.hbm_to_vmem [thread:$0]  %s19, 4096, %s189, [#allocation21], 1024, 1024, 64
    $region81: #{encoder_forward.1} parent=1 // pred_fallthru
      _
    // Predicated region
    $region82: #{encoder_forward.1} parent=1 // pred_check
      _
    $region83: #{encoder_forward.1} parent=1 // pred_check_branch
      %196 = sbr.rel (0) target = $region85
    $region84: #{encoder_forward.1} parent=1 // pred_region
      %s198 = ssub.s32 32, 32
      %199 = vsyncadd [#allocation21], %s198
      %s200 = sshll.u32 [#allocation22], 4
      %s201 = int_to_ptr.vmem [resolvable:$true] %s200
      %206 = dma.hbm_to_vmem [thread:$0]  %s20, 32, %s201, [#allocation21], 16, 16, 1
    $region85: #{encoder_forward.1} parent=1 // pred_fallthru
      _
    // Predicated region
    $region86: #{encoder_forward.1} parent=1 // pred_check
      _
    $region87: #{encoder_forward.1} parent=1 // pred_check_branch
      %208 = sbr.rel (0) target = $region89
    $region88: #{encoder_forward.1} parent=1 // pred_region
      %s210 = ssub.s32 32, 32
      %211 = vsyncadd [#allocation24], %s210
      %s212 = sshll.u32 [#allocation23], 4
      %s213 = int_to_ptr.vmem [resolvable:$true] %s212
      %218 = dma.hbm_to_vmem [thread:$0]  %s21, 32, %s213, [#allocation24], 16, 16, 1
    $region89: #{encoder_forward.1} parent=1 // pred_fallthru
      _
    // Predicated region
    $region90: #{encoder_forward.1} parent=1 // pred_check
      _
    $region91: #{encoder_forward.1} parent=1 // pred_check_branch
      %220 = sbr.rel (0) target = $region93
    $region92: #{encoder_forward.1} parent=1 // pred_region
      %s222 = ssub.s32 32, 32
      %223 = vsyncadd [#allocation24], %s222
      %s224 = sshll.u32 [#allocation25], 4
      %s225 = int_to_ptr.vmem [resolvable:$true] %s224
      %230 = dma.hbm_to_vmem [thread:$0]  %s22, 32, %s225, [#allocation24], 16, 16, 1
    $region93: #{encoder_forward.1} parent=1 // pred_fallthru
      _
    // Predicated region
    $region94: #{encoder_forward.1} parent=1 // pred_check
      _
    $region95: #{encoder_forward.1} parent=1 // pred_check_branch
      %232 = sbr.rel (0) target = $region97
    $region96: #{encoder_forward.1} parent=1 // pred_region
      %233 = dma.done [#allocation3], 256
    $region97: #{encoder_forward.1} parent=1 // pred_fallthru
      _
    // Predicated region
    $region98: #{encoder_forward.1} parent=1 // pred_check
      _
    $region99: #{encoder_forward.1} parent=1 // pred_check_branch
      %235 = sbr.rel (0) target = $region101
    $region100: #{encoder_forward.1} parent=1 // pred_region
      %236 = dma.done [#allocation6], 16
    $region101: #{encoder_forward.1} parent=1 // pred_fallthru
      _
    // Predicated region
    $region102: #{encoder_forward.1} parent=1 // pred_check
      _
    $region103: #{encoder_forward.1} parent=1 // pred_check_branch
      %238 = sbr.rel (0) target = $region105
    $region104: #{encoder_forward.1} parent=1 // pred_region
      %239 = dma.done [#allocation6], 512
    $region105: #{encoder_forward.1} parent=1 // pred_fallthru
      _
    // Predicated region
    $region106: #{encoder_forward.1} parent=1 // pred_check
      _
    $region107: #{encoder_forward.1} parent=1 // pred_check_branch
      %241 = sbr.rel (0) target = $region109
    $region108: #{encoder_forward.1} parent=1 // pred_region
      %242 = dma.done [#allocation9], 32
    $region109: #{encoder_forward.1} parent=1 // pred_fallthru
      _
    // Predicated region
    $region110: #{encoder_forward.1} parent=1 // pred_check
      _
    $region111: #{encoder_forward.1} parent=1 // pred_check_branch
      %244 = sbr.rel (0) target = $region113
    $region112: #{encoder_forward.1} parent=1 // pred_region
      %245 = dma.done [#allocation9], 32
    $region113: #{encoder_forward.1} parent=1 // pred_fallthru
      _
    // Predicated region
    $region114: #{encoder_forward.1} parent=1 // pred_check
      _
    $region115: #{encoder_forward.1} parent=1 // pred_check_branch
      %247 = sbr.rel (0) target = $region117
    $region116: #{encoder_forward.1} parent=1 // pred_region
      %248 = dma.done [#allocation12], 512
    $region117: #{encoder_forward.1} parent=1 // pred_fallthru
      _
    // Predicated region
    $region118: #{encoder_forward.1} parent=1 // pred_check
      _
    $region119: #{encoder_forward.1} parent=1 // pred_check_branch
      %250 = sbr.rel (0) target = $region121
    $region120: #{encoder_forward.1} parent=1 // pred_region
      %251 = dma.done [#allocation12], 32
    $region121: #{encoder_forward.1} parent=1 // pred_fallthru
      _
    // Predicated region
    $region122: #{encoder_forward.1} parent=1 // pred_check
      _
    $region123: #{encoder_forward.1} parent=1 // pred_check_branch
      %253 = sbr.rel (0) target = $region125
    $region124: #{encoder_forward.1} parent=1 // pred_region
      %254 = dma.done [#allocation15], 32
    $region125: #{encoder_forward.1} parent=1 // pred_fallthru
      _
    // Predicated region
    $region126: #{encoder_forward.1} parent=1 // pred_check
      _
    $region127: #{encoder_forward.1} parent=1 // pred_check_branch
      %256 = sbr.rel (0) target = $region129
    $region128: #{encoder_forward.1} parent=1 // pred_region
      %257 = dma.done [#allocation15], 32
    $region129: #{encoder_forward.1} parent=1 // pred_fallthru
      _
    // Predicated region
    $region130: #{encoder_forward.1} parent=1 // pred_check
      _
    $region131: #{encoder_forward.1} parent=1 // pred_check_branch
      %259 = sbr.rel (0) target = $region133
    $region132: #{encoder_forward.1} parent=1 // pred_region
      %260 = dma.done [#allocation18], 4096
    $region133: #{encoder_forward.1} parent=1 // pred_fallthru
      _
    // Predicated region
    $region134: #{encoder_forward.1} parent=1 // pred_check
      _
    $region135: #{encoder_forward.1} parent=1 // pred_check_branch
      %262 = sbr.rel (0) target = $region137
    $region136: #{encoder_forward.1} parent=1 // pred_region
      %263 = dma.done [#allocation18], 512
    $region137: #{encoder_forward.1} parent=1 // pred_fallthru
      _
    // Predicated region
    $region138: #{encoder_forward.1} parent=1 // pred_check
      _
    $region139: #{encoder_forward.1} parent=1 // pred_check_branch
      %265 = sbr.rel (0) target = $region141
    $region140: #{encoder_forward.1} parent=1 // pred_region
      %266 = dma.done [#allocation21], 4096
    $region141: #{encoder_forward.1} parent=1 // pred_fallthru
      _
    // Predicated region
    $region142: #{encoder_forward.1} parent=1 // pred_check
      _
    $region143: #{encoder_forward.1} parent=1 // pred_check_branch
      %268 = sbr.rel (0) target = $region145
    $region144: #{encoder_forward.1} parent=1 // pred_region
      %269 = dma.done [#allocation21], 32
    $region145: #{encoder_forward.1} parent=1 // pred_fallthru
      _
    // Predicated region
    $region146: #{encoder_forward.1} parent=1 // pred_check
      _
    $region147: #{encoder_forward.1} parent=1 // pred_check_branch
      %271 = sbr.rel (0) target = $region149
    $region148: #{encoder_forward.1} parent=1 // pred_region
      %272 = dma.done [#allocation24], 32
    $region149: #{encoder_forward.1} parent=1 // pred_fallthru
      _
    // Predicated region
    $region150: #{encoder_forward.1} parent=1 // pred_check
      _
    $region151: #{encoder_forward.1} parent=1 // pred_check_branch
      %274 = sbr.rel (0) target = $region153
    $region152: #{encoder_forward.1} parent=1 // pred_region
      %275 = dma.done [#allocation24], 32
    $region153: #{encoder_forward.1} parent=1 // pred_fallthru
      _
    %v277 = vlaneseq
    %v278 = vshrl.u32 %v277, 7
    %v279 = vlaneseq
    %v280 = vand.u32 %v279, 127
    %v281 = vadd.s32 %v280, 128
    %v282 = vmul.u32 %v278, 15
    %vm283 = vcmp.ge.s32.totalorder %v280, %v282
    %vm284 = vcmp.ge.s32.totalorder %v281, %v282
    %v285 = vadd.s32 %v282, 75
    %vm286 = vcmp.lt.s32.totalorder %v280, %v285
    %vm287 = vcmp.lt.s32.totalorder %v281, %v285
    %vm288 = vmand %vm283, %vm286
    %vm289 = vmand %vm284, %vm287
    %v290 = vsel %vm288, 0.013333334, 0.0
    %v291 = vsel %vm289, 0.013333334, 0.0
    %v292 = vld [vmem:[%s1] sm:$0xff]
    %v293 = vld [vmem:[%s1 + $0x8] sm:$0xff]
    %v294 = vld [vmem:[%s1 + $0x10] sm:$0xff]
    %v295 = vld [vmem:[%s1 + $0x18] sm:$0xff]
    %v296 = vld [vmem:[%s2] sm:$0xff]
    %v297 = vld [vmem:[%s2 + $0x8] sm:$0xff]
    %v298 = vld [vmem:[%s2 + $0x10] sm:$0xff]
    %v299 = vld [vmem:[%s2 + $0x18] sm:$0xff]
    %v300 = vld [vmem:[%s3] sm:$0xf]
    %v301 = vld [vmem:[%s4] sm:$0xf]
    %v302 = vld [vmem:[%s5] sm:$0xf]
    %v303 = vld [vmem:[#allocation5] sm:$0x1]
    %v304 = vld [vmem:[#allocation2] sm:$0xff]
    %v306 = vcombine.high %v304, %v304
    %v308 = vcombine.low %v304, %v304
    %309 = vrot.lane.b32.xlu0 %v308, 127
    %v310 = vpop.permute.xlu0 %309
    %311 = vrot.lane.b32.xlu0 %v304, 127
    %v312 = vpop.permute.xlu0 %311
    %vm313 = vcmask 1039360
    %v314 = vsel %vm313, %v310, %v312
    %317 = vrot.lane.b32.xlu0 %v304, 126
    %v318 = vpop.permute.xlu0 %317
    %319 = vrot.lane.b32.xlu0 %v306, 126
    %v320 = vpop.permute.xlu0 %319
    %vm321 = vcmask 1031168
    %v322 = vsel %vm321, %v318, %v320
    %325 = vrot.lane.b32.xlu0 %v308, 125
    %v326 = vpop.permute.xlu0 %325
    %327 = vrot.lane.b32.xlu0 %v304, 125
    %v328 = vpop.permute.xlu0 %327
    %vm329 = vcmask 1022976
    %v330 = vsel %vm329, %v326, %v328
    %333 = vrot.lane.b32.xlu0 %v304, 124
    %v334 = vpop.permute.xlu0 %333
    %335 = vrot.lane.b32.xlu0 %v306, 124
    %v336 = vpop.permute.xlu0 %335
    %vm337 = vcmask 1014784
    %v338 = vsel %vm337, %v334, %v336
    %341 = vrot.lane.b32.xlu0 %v308, 123
    %v342 = vpop.permute.xlu0 %341
    %343 = vrot.lane.b32.xlu0 %v304, 123
    %v344 = vpop.permute.xlu0 %343
    %vm345 = vcmask 1006592
    %v346 = vsel %vm345, %v342, %v344
    %349 = vrot.lane.b32.xlu0 %v304, 122
    %v350 = vpop.permute.xlu0 %349
    %351 = vrot.lane.b32.xlu0 %v306, 122
    %v352 = vpop.permute.xlu0 %351
    %vm353 = vcmask 998400
    %v354 = vsel %vm353, %v350, %v352
    %357 = vrot.lane.b32.xlu0 %v308, 121
    %v358 = vpop.permute.xlu0 %357
    %359 = vrot.lane.b32.xlu0 %v304, 121
    %v360 = vpop.permute.xlu0 %359
    %vm361 = vcmask 990208
    %v362 = vsel %vm361, %v358, %v360
    %365 = vrot.lane.b32.xlu0 %v304, 120
    %v366 = vpop.permute.xlu0 %365
    %367 = vrot.lane.b32.xlu0 %v306, 120
    %v368 = vpop.permute.xlu0 %367
    %vm369 = vcmask 982016
    %v370 = vsel %vm369, %v366, %v368
    %373 = vrot.lane.b32.xlu0 %v308, 119
    %v374 = vpop.permute.xlu0 %373
    %375 = vrot.lane.b32.xlu0 %v304, 119
    %v376 = vpop.permute.xlu0 %375
    %vm377 = vcmask 973824
    %v378 = vsel %vm377, %v374, %v376
    %381 = vrot.lane.b32.xlu0 %v304, 118
    %v382 = vpop.permute.xlu0 %381
    %383 = vrot.lane.b32.xlu0 %v306, 118
    %v384 = vpop.permute.xlu0 %383
    %vm385 = vcmask 965632
    %v386 = vsel %vm385, %v382, %v384
    %389 = vrot.lane.b32.xlu0 %v308, 117
    %v390 = vpop.permute.xlu0 %389
    %391 = vrot.lane.b32.xlu0 %v304, 117
    %v392 = vpop.permute.xlu0 %391
    %vm393 = vcmask 957440
    %v394 = vsel %vm393, %v390, %v392
    %397 = vrot.lane.b32.xlu0 %v304, 116
    %v398 = vpop.permute.xlu0 %397
    %399 = vrot.lane.b32.xlu0 %v306, 116
    %v400 = vpop.permute.xlu0 %399
    %vm401 = vcmask 949248
    %v402 = vsel %vm401, %v398, %v400
    %405 = vrot.lane.b32.xlu0 %v308, 115
    %v406 = vpop.permute.xlu0 %405
    %407 = vrot.lane.b32.xlu0 %v304, 115
    %v408 = vpop.permute.xlu0 %407
    %vm409 = vcmask 941056
    %v410 = vsel %vm409, %v406, %v408
    %413 = vrot.lane.b32.xlu0 %v304, 114
    %v414 = vpop.permute.xlu0 %413
    %415 = vrot.lane.b32.xlu0 %v306, 114
    %v416 = vpop.permute.xlu0 %415
    %vm417 = vcmask 932864
    %v418 = vsel %vm417, %v414, %v416
    %421 = vrot.lane.b32.xlu0 %v308, 113
    %v422 = vpop.permute.xlu0 %421
    %423 = vrot.lane.b32.xlu0 %v304, 113
    %v424 = vpop.permute.xlu0 %423
    %vm425 = vcmask 924672
    %v426 = vsel %vm425, %v422, %v424
    %vm429 = vcmask 1043456
    %v430 = vsel %vm429, %v304, %v314
    %v431 = vsel %vm429, %v306, %v312
    %v432 = vsel %vm429, %v322, %v330
    %v433 = vsel %vm429, %v320, %v328
    %v434 = vsel %vm429, %v338, %v346
    %v435 = vsel %vm429, %v336, %v344
    %v436 = vsel %vm429, %v354, %v362
    %v437 = vsel %vm429, %v352, %v360
    %v438 = vsel %vm429, %v370, %v378
    %v439 = vsel %vm429, %v368, %v376
    %v440 = vsel %vm429, %v386, %v394
    %v441 = vsel %vm429, %v384, %v392
    %v442 = vsel %vm429, %v402, %v410
    %v443 = vsel %vm429, %v400, %v408
    %v444 = vsel %vm429, %v418, %v426
    %v445 = vsel %vm429, %v416, %v424
    %454 = vrot.lane.b32.xlu0 %v430, 112
    %v455 = vpop.permute.xlu0 %454
    %456 = vrot.lane.b32.xlu0 %v431, 112
    %v457 = vpop.permute.xlu0 %456
    %458 = vrot.lane.b32.xlu0 %v432, 112
    %v459 = vpop.permute.xlu0 %458
    %460 = vrot.lane.b32.xlu0 %v433, 112
    %v461 = vpop.permute.xlu0 %460
    %462 = vrot.lane.b32.xlu0 %v434, 112
    %v463 = vpop.permute.xlu0 %462
    %464 = vrot.lane.b32.xlu0 %v435, 112
    %v465 = vpop.permute.xlu0 %464
    %466 = vrot.lane.b32.xlu0 %v436, 112
    %v467 = vpop.permute.xlu0 %466
    %468 = vrot.lane.b32.xlu0 %v437, 112
    %v469 = vpop.permute.xlu0 %468
    %470 = vrot.lane.b32.xlu0 %v370, 112
    %v471 = vpop.permute.xlu0 %470
    %472 = vrot.lane.b32.xlu0 %v368, 112
    %v473 = vpop.permute.xlu0 %472
    %vm474 = vcmask 916480
    %v475 = vsel %vm474, %v455, %v457
    %v476 = vsel %vm474, %v459, %v461
    %v477 = vsel %vm474, %v463, %v465
    %v478 = vsel %vm474, %v467, %v469
    %v479 = vsel %vm474, %v471, %v473
    %489 = vset.pattern.permute.xlu0 0
    %490 = vperm.xlu0 %489, %v296
    %v491 = vpop.permute.xlu0 %490
    %494 = vset.pattern.permute.xlu0 0
    %495 = vperm.xlu0 %494, %v297
    %v496 = vpop.permute.xlu0 %495
    %499 = vset.pattern.permute.xlu0 0
    %500 = vperm.xlu0 %499, %v298
    %v501 = vpop.permute.xlu0 %500
    %504 = vset.pattern.permute.xlu0 0
    %505 = vperm.xlu0 %504, %v299
    %v506 = vpop.permute.xlu0 %505
    %vm508 = vcmask 818176
    %v510 = vsel %vm508, %v292, 0
    %v513 = vsel %vm508, %v293, 0
    %v516 = vsel %vm508, %v294, 0
    %v519 = vsel %vm508, %v295, 0
    %v521 = vsel %vm429, %v479, 0
    %v523 = vsel %vm429, %v473, 0
    %525 = vmatprep.subr.mxu0 %v431
    %526 = vmatpush1.msra.mxu0 %v430
    %527 = vmatprep.subr.mxu0 %v433
    %528 = vmatpush1.msra.mxu0 %v432
    %529 = vmatprep.subr.mxu0 %v435
    %530 = vmatpush1.msra.mxu0 %v434
    %531 = vmatprep.subr.mxu0 %v437
    %532 = vmatpush1.msra.mxu0 %v436
    %533 = vmatprep.subr.mxu0 %v439
    %534 = vmatpush1.msra.mxu0 %v438
    %535 = vmatprep.subr.mxu0 %v441
    %536 = vmatpush1.msra.mxu0 %v440
    %537 = vmatprep.subr.mxu0 %v443
    %538 = vmatpush1.msra.mxu0 %v442
    %539 = vmatprep.subr.mxu0 %v445
    %540 = vmatpush1.msra.mxu0 %v444
    %541 = vmatprep.subr.mxu0 %v457
    %542 = vmatpush1.msra.mxu0 %v475
    %543 = vmatprep.subr.mxu0 %v461
    %544 = vmatpush1.msra.mxu0 %v476
    %545 = vmatprep.subr.mxu0 %v465
    %546 = vmatpush1.msra.mxu0 %v477
    %547 = vmatprep.subr.mxu0 %v469
    %548 = vmatpush1.msra.mxu0 %v478
    %549 = vmatprep.subr.mxu0 %v523
    %550 = vmatpush1.msra.mxu0 %v521
    %551 = vmatprep.subr.mxu0 0.0
    %552 = vmatpush1.msra.mxu0 0.0
    %553 = vmatprep.subr.mxu0 0.0
    %554 = vmatpush1.msra.mxu0 0.0
    %555 = vmatprep.subr.mxu0 0.0
    %556 = vmatpush1.msra.mxu0 0.0
    %557 = vmatprep.subr.mxu0 0.0
    %558 = vmatpush1.msra.mxu0 0.0
    %559 = vmatprep.subr.mxu0 0.0
    %560 = vmatpush1.msra.mxu0 0.0
    %561 = vmatprep.subr.mxu0 0.0
    %562 = vmatpush1.msra.mxu0 0.0
    %563 = vmatprep.subr.mxu0 0.0
    %564 = vmatpush1.msra.mxu0 0.0
    %565 = vmatprep.subr.mxu0 0.0
    %566 = vmatpush1.msra.mxu0 0.0
    %567 = vmatprep.subr.mxu0 0.0
    %568 = vmatpush1.msra.mxu0 0.0
    %569 = vmatprep.subr.mxu0 0.0
    %570 = vmatpush1.msra.mxu0 0.0
    %571 = vmatprep.subr.mxu0 0.0
    %572 = vmatpush1.msra.mxu0 0.0
    %573 = vmatprep.subr.mxu0 0.0
    %574 = vmatpush1.msra.mxu0 0.0
    %575 = vmatprep.subr.mxu0 0.0
    %576 = vmatpush1.msra.mxu0 0.0
    %577 = vmatprep.subr.mxu0 0.0
    %578 = vmatpush1.msra.mxu0 0.0
    %579 = vmatprep.subr.mxu0 0.0
    %580 = vmatpush1.msra.mxu0 0.0
    %581 = vmatprep.subr.mxu0 0.0
    %582 = vmatpush1.msra.mxu0 0.0
    %583 = vmatprep.subr.mxu0 0.0
    %584 = vmatpush1.msra.mxu0 0.0
    %585 = vmatprep.subr.mxu0 0.0
    %586 = vmatpush1.msra.mxu0 0.0
    %587 = vmatprep.subr.mxu0 0.0
    %588 = vmatpush1.msra.mxu0 0.0
    %589 = vmatprep.mubr.f32.mxu0 0.0
    %590 = vmatmul.mubr.f32.gmra.mrb[0].mxu0 %v510
    %v591 = vpop.f32.mrb[0].mxu0
    %v592 = vadd.f32 %v491, %v591
    %v593 = vpop.f32.mrb[0].mxu0
    %v594 = vadd.f32 %v491, %v593
    %595 = vmatprep.mubr.f32.mxu0 0.0
    %596 = vmatmul.mubr.f32.gmra.mrb[0].mxu0 %v513
    %v597 = vpop.f32.mrb[0].mxu0
    %v598 = vadd.f32 %v496, %v597
    %v599 = vpop.f32.mrb[0].mxu0
    %v600 = vadd.f32 %v496, %v599
    %601 = vmatprep.mubr.f32.mxu0 0.0
    %602 = vmatmul.mubr.f32.gmra.mrb[0].mxu0 %v516
    %v603 = vpop.f32.mrb[0].mxu0
    %v604 = vadd.f32 %v501, %v603
    %v605 = vpop.f32.mrb[0].mxu0
    %v606 = vadd.f32 %v501, %v605
    %607 = vmatprep.mubr.f32.mxu0 0.0
    %608 = vmatmul.mubr.f32.gmra.mrb[0].mxu0 %v519
    %v609 = vpop.f32.mrb[0].mxu0
    %v610 = vadd.f32 %v506, %v609
    %v611 = vpop.f32.mrb[0].mxu0
    %v612 = vadd.f32 %v506, %v611
    %613 = vdwg.mxu0
    %615 = vset.pattern.permute.xlu0 0
    %616 = vperm.xlu0 %615, %v301
    %v617 = vpop.permute.xlu0 %616
    %vm619 = vcmask 261120
    %v621 = vsel %vm619, %v300, 0
    %623 = vmatprep.subr.mxu0 %v594
    %624 = vmatpush1.msra.mxu0 %v592
    %625 = vmatprep.subr.mxu0 %v600
    %626 = vmatpush1.msra.mxu0 %v598
    %627 = vmatprep.subr.mxu0 %v606
    %628 = vmatpush1.msra.mxu0 %v604
    %629 = vmatprep.subr.mxu0 %v612
    %630 = vmatpush1.msra.mxu0 %v610
    %631 = vmatprep.subr.mxu0 0.0
    %632 = vmatpush1.msra.mxu0 0.0
    %633 = vmatprep.subr.mxu0 0.0
    %634 = vmatpush1.msra.mxu0 0.0
    %635 = vmatprep.subr.mxu0 0.0
    %636 = vmatpush1.msra.mxu0 0.0
    %637 = vmatprep.subr.mxu0 0.0
    %638 = vmatpush1.msra.mxu0 0.0
    %639 = vmatprep.subr.mxu0 0.0
    %640 = vmatpush1.msra.mxu0 0.0
    %641 = vmatprep.subr.mxu0 0.0
    %642 = vmatpush1.msra.mxu0 0.0
    %643 = vmatprep.subr.mxu0 0.0
    %644 = vmatpush1.msra.mxu0 0.0
    %645 = vmatprep.subr.mxu0 0.0
    %646 = vmatpush1.msra.mxu0 0.0
    %647 = vmatprep.subr.mxu0 0.0
    %648 = vmatpush1.msra.mxu0 0.0
    %649 = vmatprep.subr.mxu0 0.0
    %650 = vmatpush1.msra.mxu0 0.0
    %651 = vmatprep.subr.mxu0 0.0
    %652 = vmatpush1.msra.mxu0 0.0
    %653 = vmatprep.subr.mxu0 0.0
    %654 = vmatpush1.msra.mxu0 0.0
    %655 = vmatprep.subr.mxu0 0.0
    %656 = vmatpush1.msra.mxu0 0.0
    %657 = vmatprep.subr.mxu0 0.0
    %658 = vmatpush1.msra.mxu0 0.0
    %659 = vmatprep.subr.mxu0 0.0
    %660 = vmatpush1.msra.mxu0 0.0
    %661 = vmatprep.subr.mxu0 0.0
    %662 = vmatpush1.msra.mxu0 0.0
    %663 = vmatprep.subr.mxu0 0.0
    %664 = vmatpush1.msra.mxu0 0.0
    %665 = vmatprep.subr.mxu0 0.0
    %666 = vmatpush1.msra.mxu0 0.0
    %667 = vmatprep.subr.mxu0 0.0
    %668 = vmatpush1.msra.mxu0 0.0
    %669 = vmatprep.subr.mxu0 0.0
    %670 = vmatpush1.msra.mxu0 0.0
    %671 = vmatprep.subr.mxu0 0.0
    %672 = vmatpush1.msra.mxu0 0.0
    %673 = vmatprep.subr.mxu0 0.0
    %674 = vmatpush1.msra.mxu0 0.0
    %675 = vmatprep.subr.mxu0 0.0
    %676 = vmatpush1.msra.mxu0 0.0
    %677 = vmatprep.subr.mxu0 0.0
    %678 = vmatpush1.msra.mxu0 0.0
    %679 = vmatprep.subr.mxu0 0.0
    %680 = vmatpush1.msra.mxu0 0.0
    %681 = vmatprep.subr.mxu0 0.0
    %682 = vmatpush1.msra.mxu0 0.0
    %683 = vmatprep.subr.mxu0 0.0
    %684 = vmatpush1.msra.mxu0 0.0
    %685 = vmatprep.subr.mxu0 0.0
    %686 = vmatpush1.msra.mxu0 0.0
    %687 = vmatprep.mubr.f32.mxu0 0.0
    %688 = vmatmul.mubr.f32.gmra.mrb[0].mxu0 %v621
    %v689 = vpop.f32.mrb[0].mxu0
    %v690 = vadd.f32 %v617, %v689
    %v691 = vpop.f32.mrb[0].mxu0
    %v692 = vadd.f32 %v617, %v691
    %693 = vdwg.mxu0
    %vm694 = vcmp.gt.f32.partialorder %v690, 0.0
    %vm695 = vcmp.gt.f32.partialorder %v692, 0.0
    %v696 = vmin.f32 %v690, 0.0
    %v697 = vmin.f32 %v692, 0.0
    %v698 = vmul.f32 %v696, 1.442695
    %v699 = vpow.pop %v698
    %v700 = vmul.f32 %v697, 1.442695
    %v701 = vpow.pop %v700
    %v702 = vsub.f32 %v699, 1.0
    %v703 = vsub.f32 %v701, 1.0
    %v704 = vsel %vm694, %v690, %v702
    %v705 = vsel %vm695, %v692, %v703
    %vm706 = vcmask 424960
    %v708 = vsel %vm706, %v291, 0
    %v711 = vsel %vm706, %v705, 0
    %713 = vmatprep.subr.mxu0 %v711
    %714 = vmatpush1.xpose.msra.mxu0 %v704
    %715 = vmatprep.subr.mxu0 0.0
    %716 = vmatpush1.xpose.msra.mxu0 0.0
    %717 = vmatprep.subr.mxu0 0.0
    %718 = vmatpush1.xpose.msra.mxu0 0.0
    %719 = vmatprep.subr.mxu0 0.0
    %720 = vmatpush1.xpose.msra.mxu0 0.0
    %721 = vmatprep.subr.mxu0 0.0
    %722 = vmatpush1.xpose.msra.mxu0 0.0
    %723 = vmatprep.subr.mxu0 0.0
    %724 = vmatpush1.xpose.msra.mxu0 0.0
    %725 = vmatprep.subr.mxu0 0.0
    %726 = vmatpush1.xpose.msra.mxu0 0.0
    %727 = vmatprep.subr.mxu0 0.0
    %728 = vmatpush1.xpose.msra.mxu0 0.0
    %729 = vmatprep.subr.mxu0 0.0
    %730 = vmatpush1.xpose.msra.mxu0 0.0
    %731 = vmatprep.subr.mxu0 0.0
    %732 = vmatpush1.xpose.msra.mxu0 0.0
    %733 = vmatprep.subr.mxu0 0.0
    %734 = vmatpush1.xpose.msra.mxu0 0.0
    %735 = vmatprep.subr.mxu0 0.0
    %736 = vmatpush1.xpose.msra.mxu0 0.0
    %737 = vmatprep.subr.mxu0 0.0
    %738 = vmatpush1.xpose.msra.mxu0 0.0
    %739 = vmatprep.subr.mxu0 0.0
    %740 = vmatpush1.xpose.msra.mxu0 0.0
    %741 = vmatprep.subr.mxu0 0.0
    %742 = vmatpush1.xpose.msra.mxu0 0.0
    %743 = vmatprep.subr.mxu0 0.0
    %744 = vmatpush1.xpose.msra.mxu0 0.0
    %745 = vmatprep.subr.mxu0 0.0
    %746 = vmatpush1.xpose.msra.mxu0 0.0
    %747 = vmatprep.subr.mxu0 0.0
    %748 = vmatpush1.xpose.msra.mxu0 0.0
    %749 = vmatprep.subr.mxu0 0.0
    %750 = vmatpush1.xpose.msra.mxu0 0.0
    %751 = vmatprep.subr.mxu0 0.0
    %752 = vmatpush1.xpose.msra.mxu0 0.0
    %753 = vmatprep.subr.mxu0 0.0
    %754 = vmatpush1.xpose.msra.mxu0 0.0
    %755 = vmatprep.subr.mxu0 0.0
    %756 = vmatpush1.xpose.msra.mxu0 0.0
    %757 = vmatprep.subr.mxu0 0.0
    %758 = vmatpush1.xpose.msra.mxu0 0.0
    %759 = vmatprep.subr.mxu0 0.0
    %760 = vmatpush1.xpose.msra.mxu0 0.0
    %761 = vmatprep.subr.mxu0 0.0
    %762 = vmatpush1.xpose.msra.mxu0 0.0
    %763 = vmatprep.subr.mxu0 0.0
    %764 = vmatpush1.xpose.msra.mxu0 0.0
    %765 = vmatprep.subr.mxu0 0.0
    %766 = vmatpush1.xpose.msra.mxu0 0.0
    %767 = vmatprep.subr.mxu0 0.0
    %768 = vmatpush1.xpose.msra.mxu0 0.0
    %769 = vmatprep.subr.mxu0 0.0
    %770 = vmatpush1.xpose.msra.mxu0 0.0
    %771 = vmatprep.subr.mxu0 0.0
    %772 = vmatpush1.xpose.msra.mxu0 0.0
    %773 = vmatprep.subr.mxu0 0.0
    %774 = vmatpush1.xpose.msra.mxu0 0.0
    %775 = vmatprep.subr.mxu0 0.0
    %776 = vmatpush1.xpose.msra.mxu0 0.0
    %777 = vmatprep.mubr.f32.mxu0 %v708
    %778 = vmatmul.mubr.f32.gmra.mrb[0].mxu0 %v290
    %v779 = vpop.f32.mrb[0].mxu0
    %v780 = vadd.f32 0.0, %v779
    %v781 = vpop.f32.mrb[0].mxu0
    %782 = vdwg.mxu0
    %v784 = vlaneseq
    %v785 = vshrl.u32 %v784, 7
    %v786 = vsub.s32 0, %v785
    %v787 = vrot.slane %v303, %v786
    %vm789 = vcmask 31744
    %v791 = vsel %vm789, %v780, 0
    %v794 = vsel %vm429, %v302, 0
    %796 = vmatprep.subr.mxu0 0.0
    %797 = vmatpush1.msra.mxu0 %v794
    %798 = vmatprep.subr.mxu0 0.0
    %799 = vmatpush1.msra.mxu0 0.0
    %800 = vmatprep.subr.mxu0 0.0
    %801 = vmatpush1.msra.mxu0 0.0
    %802 = vmatprep.subr.mxu0 0.0
    %803 = vmatpush1.msra.mxu0 0.0
    %804 = vmatprep.subr.mxu0 0.0
    %805 = vmatpush1.msra.mxu0 0.0
    %806 = vmatprep.subr.mxu0 0.0
    %807 = vmatpush1.msra.mxu0 0.0
    %808 = vmatprep.subr.mxu0 0.0
    %809 = vmatpush1.msra.mxu0 0.0
    %810 = vmatprep.subr.mxu0 0.0
    %811 = vmatpush1.msra.mxu0 0.0
    %812 = vmatprep.subr.mxu0 0.0
    %813 = vmatpush1.msra.mxu0 0.0
    %814 = vmatprep.subr.mxu0 0.0
    %815 = vmatpush1.msra.mxu0 0.0
    %816 = vmatprep.subr.mxu0 0.0
    %817 = vmatpush1.msra.mxu0 0.0
    %818 = vmatprep.subr.mxu0 0.0
    %819 = vmatpush1.msra.mxu0 0.0
    %820 = vmatprep.subr.mxu0 0.0
    %821 = vmatpush1.msra.mxu0 0.0
    %822 = vmatprep.subr.mxu0 0.0
    %823 = vmatpush1.msra.mxu0 0.0
    %824 = vmatprep.subr.mxu0 0.0
    %825 = vmatpush1.msra.mxu0 0.0
    %826 = vmatprep.subr.mxu0 0.0
    %827 = vmatpush1.msra.mxu0 0.0
    %828 = vmatprep.subr.mxu0 0.0
    %829 = vmatpush1.msra.mxu0 0.0
    %830 = vmatprep.subr.mxu0 0.0
    %831 = vmatpush1.msra.mxu0 0.0
    %832 = vmatprep.subr.mxu0 0.0
    %833 = vmatpush1.msra.mxu0 0.0
    %834 = vmatprep.subr.mxu0 0.0
    %835 = vmatpush1.msra.mxu0 0.0
    %836 = vmatprep.subr.mxu0 0.0
    %837 = vmatpush1.msra.mxu0 0.0
    %838 = vmatprep.subr.mxu0 0.0
    %839 = vmatpush1.msra.mxu0 0.0
    %840 = vmatprep.subr.mxu0 0.0
    %841 = vmatpush1.msra.mxu0 0.0
    %842 = vmatprep.subr.mxu0 0.0
    %843 = vmatpush1.msra.mxu0 0.0
    %844 = vmatprep.subr.mxu0 0.0
    %845 = vmatpush1.msra.mxu0 0.0
    %846 = vmatprep.subr.mxu0 0.0
    %847 = vmatpush1.msra.mxu0 0.0
    %848 = vmatprep.subr.mxu0 0.0
    %849 = vmatpush1.msra.mxu0 0.0
    %850 = vmatprep.subr.mxu0 0.0
    %851 = vmatpush1.msra.mxu0 0.0
    %852 = vmatprep.subr.mxu0 0.0
    %853 = vmatpush1.msra.mxu0 0.0
    %854 = vmatprep.subr.mxu0 0.0
    %855 = vmatpush1.msra.mxu0 0.0
    %856 = vmatprep.subr.mxu0 0.0
    %857 = vmatpush1.msra.mxu0 0.0
    %858 = vmatprep.subr.mxu0 0.0
    %859 = vmatpush1.msra.mxu0 0.0
    %860 = vmatprep.mubr.f32.mxu0 0.0
    %861 = vmatmul.mubr.f32.gmra.mrb[0].mxu0 %v791
    %v862 = vpop.f32.mrb[0].mxu0
    %v863 = vadd.f32 %v787, %v862
    %v864 = vpop.f32.mrb[0].mxu0
    %865 = vdwg.mxu0
    %s866 = scalar_lea.vmem [#allocation2], 8
    %v867 = vld [vmem:[%s866] sm:$0xff]
    %v869 = vcombine.high %v867, %v867
    %v871 = vcombine.low %v867, %v867
    %872 = vrot.lane.b32.xlu0 %v871, 127
    %v873 = vpop.permute.xlu0 %872
    %874 = vrot.lane.b32.xlu0 %v867, 127
    %v875 = vpop.permute.xlu0 %874
    %v876 = vsel %vm313, %v873, %v875
    %879 = vrot.lane.b32.xlu0 %v867, 126
    %v880 = vpop.permute.xlu0 %879
    %881 = vrot.lane.b32.xlu0 %v869, 126
    %v882 = vpop.permute.xlu0 %881
    %v883 = vsel %vm321, %v880, %v882
    %886 = vrot.lane.b32.xlu0 %v871, 125
    %v887 = vpop.permute.xlu0 %886
    %888 = vrot.lane.b32.xlu0 %v867, 125
    %v889 = vpop.permute.xlu0 %888
    %v890 = vsel %vm329, %v887, %v889
    %893 = vrot.lane.b32.xlu0 %v867, 124
    %v894 = vpop.permute.xlu0 %893
    %895 = vrot.lane.b32.xlu0 %v869, 124
    %v896 = vpop.permute.xlu0 %895
    %v897 = vsel %vm337, %v894, %v896
    %900 = vrot.lane.b32.xlu0 %v871, 123
    %v901 = vpop.permute.xlu0 %900
    %902 = vrot.lane.b32.xlu0 %v867, 123
    %v903 = vpop.permute.xlu0 %902
    %v904 = vsel %vm345, %v901, %v903
    %907 = vrot.lane.b32.xlu0 %v867, 122
    %v908 = vpop.permute.xlu0 %907
    %909 = vrot.lane.b32.xlu0 %v869, 122
    %v910 = vpop.permute.xlu0 %909
    %v911 = vsel %vm353, %v908, %v910
    %914 = vrot.lane.b32.xlu0 %v871, 121
    %v915 = vpop.permute.xlu0 %914
    %916 = vrot.lane.b32.xlu0 %v867, 121
    %v917 = vpop.permute.xlu0 %916
    %v918 = vsel %vm361, %v915, %v917
    %921 = vrot.lane.b32.xlu0 %v867, 120
    %v922 = vpop.permute.xlu0 %921
    %923 = vrot.lane.b32.xlu0 %v869, 120
    %v924 = vpop.permute.xlu0 %923
    %v925 = vsel %vm369, %v922, %v924
    %928 = vrot.lane.b32.xlu0 %v871, 119
    %v929 = vpop.permute.xlu0 %928
    %930 = vrot.lane.b32.xlu0 %v867, 119
    %v931 = vpop.permute.xlu0 %930
    %v932 = vsel %vm377, %v929, %v931
    %935 = vrot.lane.b32.xlu0 %v867, 118
    %v936 = vpop.permute.xlu0 %935
    %937 = vrot.lane.b32.xlu0 %v869, 118
    %v938 = vpop.permute.xlu0 %937
    %v939 = vsel %vm385, %v936, %v938
    %942 = vrot.lane.b32.xlu0 %v871, 117
    %v943 = vpop.permute.xlu0 %942
    %944 = vrot.lane.b32.xlu0 %v867, 117
    %v945 = vpop.permute.xlu0 %944
    %v946 = vsel %vm393, %v943, %v945
    %949 = vrot.lane.b32.xlu0 %v867, 116
    %v950 = vpop.permute.xlu0 %949
    %951 = vrot.lane.b32.xlu0 %v869, 116
    %v952 = vpop.permute.xlu0 %951
    %v953 = vsel %vm401, %v950, %v952
    %956 = vrot.lane.b32.xlu0 %v871, 115
    %v957 = vpop.permute.xlu0 %956
    %958 = vrot.lane.b32.xlu0 %v867, 115
    %v959 = vpop.permute.xlu0 %958
    %v960 = vsel %vm409, %v957, %v959
    %963 = vrot.lane.b32.xlu0 %v867, 114
    %v964 = vpop.permute.xlu0 %963
    %965 = vrot.lane.b32.xlu0 %v869, 114
    %v966 = vpop.permute.xlu0 %965
    %v967 = vsel %vm417, %v964, %v966
    %970 = vrot.lane.b32.xlu0 %v871, 113
    %v971 = vpop.permute.xlu0 %970
    %972 = vrot.lane.b32.xlu0 %v867, 113
    %v973 = vpop.permute.xlu0 %972
    %v974 = vsel %vm425, %v971, %v973
    %v977 = vsel %vm429, %v867, %v876
    %v978 = vsel %vm429, %v869, %v875
    %v979 = vsel %vm429, %v883, %v890
    %v980 = vsel %vm429, %v882, %v889
    %v981 = vsel %vm429, %v897, %v904
    %v982 = vsel %vm429, %v896, %v903
    %v983 = vsel %vm429, %v911, %v918
    %v984 = vsel %vm429, %v910, %v917
    %v985 = vsel %vm429, %v925, %v932
    %v986 = vsel %vm429, %v924, %v931
    %v987 = vsel %vm429, %v939, %v946
    %v988 = vsel %vm429, %v938, %v945
    %v989 = vsel %vm429, %v953, %v960
    %v990 = vsel %vm429, %v952, %v959
    %v991 = vsel %vm429, %v967, %v974
    %v992 = vsel %vm429, %v966, %v973
    %1001 = vrot.lane.b32.xlu0 %v977, 112
    %v1002 = vpop.permute.xlu0 %1001
    %1003 = vrot.lane.b32.xlu0 %v978, 112
    %v1004 = vpop.permute.xlu0 %1003
    %1005 = vrot.lane.b32.xlu0 %v979, 112
    %v1006 = vpop.permute.xlu0 %1005
    %1007 = vrot.lane.b32.xlu0 %v980, 112
    %v1008 = vpop.permute.xlu0 %1007
    %1009 = vrot.lane.b32.xlu0 %v981, 112
    %v1010 = vpop.permute.xlu0 %1009
    %1011 = vrot.lane.b32.xlu0 %v982, 112
    %v1012 = vpop.permute.xlu0 %1011
    %1013 = vrot.lane.b32.xlu0 %v983, 112
    %v1014 = vpop.permute.xlu0 %1013
    %1015 = vrot.lane.b32.xlu0 %v984, 112
    %v1016 = vpop.permute.xlu0 %1015
    %1017 = vrot.lane.b32.xlu0 %v925, 112
    %v1018 = vpop.permute.xlu0 %1017
    %1019 = vrot.lane.b32.xlu0 %v924, 112
    %v1020 = vpop.permute.xlu0 %1019
    %v1021 = vsel %vm474, %v1002, %v1004
    %v1022 = vsel %vm474, %v1006, %v1008
    %v1023 = vsel %vm474, %v1010, %v1012
    %v1024 = vsel %vm474, %v1014, %v1016
    %v1025 = vsel %vm474, %v1018, %v1020
    %v1034 = vsel %vm429, %v1025, 0
    %v1036 = vsel %vm429, %v1020, 0
    %1038 = vmatprep.subr.mxu0 %v978
    %1039 = vmatpush1.msra.mxu0 %v977
    %1040 = vmatprep.subr.mxu0 %v980
    %1041 = vmatpush1.msra.mxu0 %v979
    %1042 = vmatprep.subr.mxu0 %v982
    %1043 = vmatpush1.msra.mxu0 %v981
    %1044 = vmatprep.subr.mxu0 %v984
    %1045 = vmatpush1.msra.mxu0 %v983
    %1046 = vmatprep.subr.mxu0 %v986
    %1047 = vmatpush1.msra.mxu0 %v985
    %1048 = vmatprep.subr.mxu0 %v988
    %1049 = vmatpush1.msra.mxu0 %v987
    %1050 = vmatprep.subr.mxu0 %v990
    %1051 = vmatpush1.msra.mxu0 %v989
    %1052 = vmatprep.subr.mxu0 %v992
    %1053 = vmatpush1.msra.mxu0 %v991
    %1054 = vmatprep.subr.mxu0 %v1004
    %1055 = vmatpush1.msra.mxu0 %v1021
    %1056 = vmatprep.subr.mxu0 %v1008
    %1057 = vmatpush1.msra.mxu0 %v1022
    %1058 = vmatprep.subr.mxu0 %v1012
    %1059 = vmatpush1.msra.mxu0 %v1023
    %1060 = vmatprep.subr.mxu0 %v1016
    %1061 = vmatpush1.msra.mxu0 %v1024
    %1062 = vmatprep.subr.mxu0 %v1036
    %1063 = vmatpush1.msra.mxu0 %v1034
    %1064 = vmatprep.subr.mxu0 0.0
    %1065 = vmatpush1.msra.mxu0 0.0
    %1066 = vmatprep.subr.mxu0 0.0
    %1067 = vmatpush1.msra.mxu0 0.0
    %1068 = vmatprep.subr.mxu0 0.0
    %1069 = vmatpush1.msra.mxu0 0.0
    %1070 = vmatprep.subr.mxu0 0.0
    %1071 = vmatpush1.msra.mxu0 0.0
    %1072 = vmatprep.subr.mxu0 0.0
    %1073 = vmatpush1.msra.mxu0 0.0
    %1074 = vmatprep.subr.mxu0 0.0
    %1075 = vmatpush1.msra.mxu0 0.0
    %1076 = vmatprep.subr.mxu0 0.0
    %1077 = vmatpush1.msra.mxu0 0.0
    %1078 = vmatprep.subr.mxu0 0.0
    %1079 = vmatpush1.msra.mxu0 0.0
    %1080 = vmatprep.subr.mxu0 0.0
    %1081 = vmatpush1.msra.mxu0 0.0
    %1082 = vmatprep.subr.mxu0 0.0
    %1083 = vmatpush1.msra.mxu0 0.0
    %1084 = vmatprep.subr.mxu0 0.0
    %1085 = vmatpush1.msra.mxu0 0.0
    %1086 = vmatprep.subr.mxu0 0.0
    %1087 = vmatpush1.msra.mxu0 0.0
    %1088 = vmatprep.subr.mxu0 0.0
    %1089 = vmatpush1.msra.mxu0 0.0
    %1090 = vmatprep.subr.mxu0 0.0
    %1091 = vmatpush1.msra.mxu0 0.0
    %1092 = vmatprep.subr.mxu0 0.0
    %1093 = vmatpush1.msra.mxu0 0.0
    %1094 = vmatprep.subr.mxu0 0.0
    %1095 = vmatpush1.msra.mxu0 0.0
    %1096 = vmatprep.subr.mxu0 0.0
    %1097 = vmatpush1.msra.mxu0 0.0
    %1098 = vmatprep.subr.mxu0 0.0
    %1099 = vmatpush1.msra.mxu0 0.0
    %1100 = vmatprep.subr.mxu0 0.0
    %1101 = vmatpush1.msra.mxu0 0.0
    %1102 = vmatprep.mubr.f32.mxu0 0.0
    %1103 = vmatmul.mubr.f32.gmra.mrb[0].mxu0 %v510
    %v1104 = vpop.f32.mrb[0].mxu0
    %v1105 = vadd.f32 %v491, %v1104
    %v1106 = vpop.f32.mrb[0].mxu0
    %v1107 = vadd.f32 %v491, %v1106
    %1108 = vmatprep.mubr.f32.mxu0 0.0
    %1109 = vmatmul.mubr.f32.gmra.mrb[0].mxu0 %v513
    %v1110 = vpop.f32.mrb[0].mxu0
    %v1111 = vadd.f32 %v496, %v1110
    %v1112 = vpop.f32.mrb[0].mxu0
    %v1113 = vadd.f32 %v496, %v1112
    %1114 = vmatprep.mubr.f32.mxu0 0.0
    %1115 = vmatmul.mubr.f32.gmra.mrb[0].mxu0 %v516
    %v1116 = vpop.f32.mrb[0].mxu0
    %v1117 = vadd.f32 %v501, %v1116
    %v1118 = vpop.f32.mrb[0].mxu0
    %v1119 = vadd.f32 %v501, %v1118
    %1120 = vmatprep.mubr.f32.mxu0 0.0
    %1121 = vmatmul.mubr.f32.gmra.mrb[0].mxu0 %v519
    %v1122 = vpop.f32.mrb[0].mxu0
    %v1123 = vadd.f32 %v506, %v1122
    %v1124 = vpop.f32.mrb[0].mxu0
    %v1125 = vadd.f32 %v506, %v1124
    %1126 = vdwg.mxu0
    %1127 = vmatprep.subr.mxu0 %v1107
    %1128 = vmatpush1.msra.mxu0 %v1105
    %1129 = vmatprep.subr.mxu0 %v1113
    %1130 = vmatpush1.msra.mxu0 %v1111
    %1131 = vmatprep.subr.mxu0 %v1119
    %1132 = vmatpush1.msra.mxu0 %v1117
    %1133 = vmatprep.subr.mxu0 %v1125
    %1134 = vmatpush1.msra.mxu0 %v1123
    %1135 = vmatprep.subr.mxu0 0.0
    %1136 = vmatpush1.msra.mxu0 0.0
    %1137 = vmatprep.subr.mxu0 0.0
    %1138 = vmatpush1.msra.mxu0 0.0
    %1139 = vmatprep.subr.mxu0 0.0
    %1140 = vmatpush1.msra.mxu0 0.0
    %1141 = vmatprep.subr.mxu0 0.0
    %1142 = vmatpush1.msra.mxu0 0.0
    %1143 = vmatprep.subr.mxu0 0.0
    %1144 = vmatpush1.msra.mxu0 0.0
    %1145 = vmatprep.subr.mxu0 0.0
    %1146 = vmatpush1.msra.mxu0 0.0
    %1147 = vmatprep.subr.mxu0 0.0
    %1148 = vmatpush1.msra.mxu0 0.0
    %1149 = vmatprep.subr.mxu0 0.0
    %1150 = vmatpush1.msra.mxu0 0.0
    %1151 = vmatprep.subr.mxu0 0.0
    %1152 = vmatpush1.msra.mxu0 0.0
    %1153 = vmatprep.subr.mxu0 0.0
    %1154 = vmatpush1.msra.mxu0 0.0
    %1155 = vmatprep.subr.mxu0 0.0
    %1156 = vmatpush1.msra.mxu0 0.0
    %1157 = vmatprep.subr.mxu0 0.0
    %1158 = vmatpush1.msra.mxu0 0.0
    %1159 = vmatprep.subr.mxu0 0.0
    %1160 = vmatpush1.msra.mxu0 0.0
    %1161 = vmatprep.subr.mxu0 0.0
    %1162 = vmatpush1.msra.mxu0 0.0
    %1163 = vmatprep.subr.mxu0 0.0
    %1164 = vmatpush1.msra.mxu0 0.0
    %1165 = vmatprep.subr.mxu0 0.0
    %1166 = vmatpush1.msra.mxu0 0.0
    %1167 = vmatprep.subr.mxu0 0.0
    %1168 = vmatpush1.msra.mxu0 0.0
    %1169 = vmatprep.subr.mxu0 0.0
    %1170 = vmatpush1.msra.mxu0 0.0
    %1171 = vmatprep.subr.mxu0 0.0
    %1172 = vmatpush1.msra.mxu0 0.0
    %1173 = vmatprep.subr.mxu0 0.0
    %1174 = vmatpush1.msra.mxu0 0.0
    %1175 = vmatprep.subr.mxu0 0.0
    %1176 = vmatpush1.msra.mxu0 0.0
    %1177 = vmatprep.subr.mxu0 0.0
    %1178 = vmatpush1.msra.mxu0 0.0
    %1179 = vmatprep.subr.mxu0 0.0
    %1180 = vmatpush1.msra.mxu0 0.0
    %1181 = vmatprep.subr.mxu0 0.0
    %1182 = vmatpush1.msra.mxu0 0.0
    %1183 = vmatprep.subr.mxu0 0.0
    %1184 = vmatpush1.msra.mxu0 0.0
    %1185 = vmatprep.subr.mxu0 0.0
    %1186 = vmatpush1.msra.mxu0 0.0
    %1187 = vmatprep.subr.mxu0 0.0
    %1188 = vmatpush1.msra.mxu0 0.0
    %1189 = vmatprep.subr.mxu0 0.0
    %1190 = vmatpush1.msra.mxu0 0.0
    %1191 = vmatprep.mubr.f32.mxu0 0.0
    %1192 = vmatmul.mubr.f32.gmra.mrb[0].mxu0 %v621
    %v1193 = vpop.f32.mrb[0].mxu0
    %v1194 = vadd.f32 %v617, %v1193
    %v1195 = vpop.f32.mrb[0].mxu0
    %v1196 = vadd.f32 %v617, %v1195
    %1197 = vdwg.mxu0
    %vm1198 = vcmp.gt.f32.partialorder %v1194, 0.0
    %vm1199 = vcmp.gt.f32.partialorder %v1196, 0.0
    %v1200 = vmin.f32 %v1194, 0.0
    %v1201 = vmin.f32 %v1196, 0.0
    %v1202 = vmul.f32 %v1200, 1.442695
    %v1203 = vpow.pop %v1202
    %v1204 = vmul.f32 %v1201, 1.442695
    %v1205 = vpow.pop %v1204
    %v1206 = vsub.f32 %v1203, 1.0
    %v1207 = vsub.f32 %v1205, 1.0
    %v1208 = vsel %vm1198, %v1194, %v1206
    %v1209 = vsel %vm1199, %v1196, %v1207
    %v1211 = vsel %vm706, %v1209, 0
    %1213 = vmatprep.subr.mxu0 %v1211
    %1214 = vmatpush1.xpose.msra.mxu0 %v1208
    %1215 = vmatprep.subr.mxu0 0.0
    %1216 = vmatpush1.xpose.msra.mxu0 0.0
    %1217 = vmatprep.subr.mxu0 0.0
    %1218 = vmatpush1.xpose.msra.mxu0 0.0
    %1219 = vmatprep.subr.mxu0 0.0
    %1220 = vmatpush1.xpose.msra.mxu0 0.0
    %1221 = vmatprep.subr.mxu0 0.0
    %1222 = vmatpush1.xpose.msra.mxu0 0.0
    %1223 = vmatprep.subr.mxu0 0.0
    %1224 = vmatpush1.xpose.msra.mxu0 0.0
    %1225 = vmatprep.subr.mxu0 0.0
    %1226 = vmatpush1.xpose.msra.mxu0 0.0
    %1227 = vmatprep.subr.mxu0 0.0
    %1228 = vmatpush1.xpose.msra.mxu0 0.0
    %1229 = vmatprep.subr.mxu0 0.0
    %1230 = vmatpush1.xpose.msra.mxu0 0.0
    %1231 = vmatprep.subr.mxu0 0.0
    %1232 = vmatpush1.xpose.msra.mxu0 0.0
    %1233 = vmatprep.subr.mxu0 0.0
    %1234 = vmatpush1.xpose.msra.mxu0 0.0
    %1235 = vmatprep.subr.mxu0 0.0
    %1236 = vmatpush1.xpose.msra.mxu0 0.0
    %1237 = vmatprep.subr.mxu0 0.0
    %1238 = vmatpush1.xpose.msra.mxu0 0.0
    %1239 = vmatprep.subr.mxu0 0.0
    %1240 = vmatpush1.xpose.msra.mxu0 0.0
    %1241 = vmatprep.subr.mxu0 0.0
    %1242 = vmatpush1.xpose.msra.mxu0 0.0
    %1243 = vmatprep.subr.mxu0 0.0
    %1244 = vmatpush1.xpose.msra.mxu0 0.0
    %1245 = vmatprep.subr.mxu0 0.0
    %1246 = vmatpush1.xpose.msra.mxu0 0.0
    %1247 = vmatprep.subr.mxu0 0.0
    %1248 = vmatpush1.xpose.msra.mxu0 0.0
    %1249 = vmatprep.subr.mxu0 0.0
    %1250 = vmatpush1.xpose.msra.mxu0 0.0
    %1251 = vmatprep.subr.mxu0 0.0
    %1252 = vmatpush1.xpose.msra.mxu0 0.0
    %1253 = vmatprep.subr.mxu0 0.0
    %1254 = vmatpush1.xpose.msra.mxu0 0.0
    %1255 = vmatprep.subr.mxu0 0.0
    %1256 = vmatpush1.xpose.msra.mxu0 0.0
    %1257 = vmatprep.subr.mxu0 0.0
    %1258 = vmatpush1.xpose.msra.mxu0 0.0
    %1259 = vmatprep.subr.mxu0 0.0
    %1260 = vmatpush1.xpose.msra.mxu0 0.0
    %1261 = vmatprep.subr.mxu0 0.0
    %1262 = vmatpush1.xpose.msra.mxu0 0.0
    %1263 = vmatprep.subr.mxu0 0.0
    %1264 = vmatpush1.xpose.msra.mxu0 0.0
    %1265 = vmatprep.subr.mxu0 0.0
    %1266 = vmatpush1.xpose.msra.mxu0 0.0
    %1267 = vmatprep.subr.mxu0 0.0
    %1268 = vmatpush1.xpose.msra.mxu0 0.0
    %1269 = vmatprep.subr.mxu0 0.0
    %1270 = vmatpush1.xpose.msra.mxu0 0.0
    %1271 = vmatprep.subr.mxu0 0.0
    %1272 = vmatpush1.xpose.msra.mxu0 0.0
    %1273 = vmatprep.subr.mxu0 0.0
    %1274 = vmatpush1.xpose.msra.mxu0 0.0
    %1275 = vmatprep.subr.mxu0 0.0
    %1276 = vmatpush1.xpose.msra.mxu0 0.0
    %1277 = vmatprep.mubr.f32.mxu0 %v708
    %1278 = vmatmul.mubr.f32.gmra.mrb[0].mxu0 %v290
    %v1279 = vpop.f32.mrb[0].mxu0
    %v1280 = vadd.f32 0.0, %v1279
    %v1281 = vpop.f32.mrb[0].mxu0
    %1282 = vdwg.mxu0
    %v1284 = vsel %vm789, %v1280, 0
    %1286 = vmatprep.subr.mxu0 0.0
    %1287 = vmatpush1.msra.mxu0 %v794
    %1288 = vmatprep.subr.mxu0 0.0
    %1289 = vmatpush1.msra.mxu0 0.0
    %1290 = vmatprep.subr.mxu0 0.0
    %1291 = vmatpush1.msra.mxu0 0.0
    %1292 = vmatprep.subr.mxu0 0.0
    %1293 = vmatpush1.msra.mxu0 0.0
    %1294 = vmatprep.subr.mxu0 0.0
    %1295 = vmatpush1.msra.mxu0 0.0
    %1296 = vmatprep.subr.mxu0 0.0
    %1297 = vmatpush1.msra.mxu0 0.0
    %1298 = vmatprep.subr.mxu0 0.0
    %1299 = vmatpush1.msra.mxu0 0.0
    %1300 = vmatprep.subr.mxu0 0.0
    %1301 = vmatpush1.msra.mxu0 0.0
    %1302 = vmatprep.subr.mxu0 0.0
    %1303 = vmatpush1.msra.mxu0 0.0
    %1304 = vmatprep.subr.mxu0 0.0
    %1305 = vmatpush1.msra.mxu0 0.0
    %1306 = vmatprep.subr.mxu0 0.0
    %1307 = vmatpush1.msra.mxu0 0.0
    %1308 = vmatprep.subr.mxu0 0.0
    %1309 = vmatpush1.msra.mxu0 0.0
    %1310 = vmatprep.subr.mxu0 0.0
    %1311 = vmatpush1.msra.mxu0 0.0
    %1312 = vmatprep.subr.mxu0 0.0
    %1313 = vmatpush1.msra.mxu0 0.0
    %1314 = vmatprep.subr.mxu0 0.0
    %1315 = vmatpush1.msra.mxu0 0.0
    %1316 = vmatprep.subr.mxu0 0.0
    %1317 = vmatpush1.msra.mxu0 0.0
    %1318 = vmatprep.subr.mxu0 0.0
    %1319 = vmatpush1.msra.mxu0 0.0
    %1320 = vmatprep.subr.mxu0 0.0
    %1321 = vmatpush1.msra.mxu0 0.0
    %1322 = vmatprep.subr.mxu0 0.0
    %1323 = vmatpush1.msra.mxu0 0.0
    %1324 = vmatprep.subr.mxu0 0.0
    %1325 = vmatpush1.msra.mxu0 0.0
    %1326 = vmatprep.subr.mxu0 0.0
    %1327 = vmatpush1.msra.mxu0 0.0
    %1328 = vmatprep.subr.mxu0 0.0
    %1329 = vmatpush1.msra.mxu0 0.0
    %1330 = vmatprep.subr.mxu0 0.0
    %1331 = vmatpush1.msra.mxu0 0.0
    %1332 = vmatprep.subr.mxu0 0.0
    %1333 = vmatpush1.msra.mxu0 0.0
    %1334 = vmatprep.subr.mxu0 0.0
    %1335 = vmatpush1.msra.mxu0 0.0
    %1336 = vmatprep.subr.mxu0 0.0
    %1337 = vmatpush1.msra.mxu0 0.0
    %1338 = vmatprep.subr.mxu0 0.0
    %1339 = vmatpush1.msra.mxu0 0.0
    %1340 = vmatprep.subr.mxu0 0.0
    %1341 = vmatpush1.msra.mxu0 0.0
    %1342 = vmatprep.subr.mxu0 0.0
    %1343 = vmatpush1.msra.mxu0 0.0
    %1344 = vmatprep.subr.mxu0 0.0
    %1345 = vmatpush1.msra.mxu0 0.0
    %1346 = vmatprep.subr.mxu0 0.0
    %1347 = vmatpush1.msra.mxu0 0.0
    %1348 = vmatprep.subr.mxu0 0.0
    %1349 = vmatpush1.msra.mxu0 0.0
    %1350 = vmatprep.mubr.f32.mxu0 0.0
    %1351 = vmatmul.mubr.f32.gmra.mrb[0].mxu0 %v1284
    %v1352 = vpop.f32.mrb[0].mxu0
    %v1353 = vadd.f32 %v787, %v1352
    %v1354 = vpop.f32.mrb[0].mxu0
    %1355 = vdwg.mxu0
    %v1356 = vadd.s32 %v278, 8
    %v1357 = vsub.s32 %v278, %v280
    %v1358 = vsub.s32 %v1356, %v280
    %vm1359 = vcmp.eq.s32.totalorder %v1357, 0
    %vm1360 = vcmp.eq.s32.totalorder %v1358, 0
    %vm1361 = vcmp.eq.s32.totalorder %v1357, 8
    %vm1362 = vcmp.eq.s32.totalorder %v1358, 8
    %vm1363 = vmor %vm1359, %vm1361
    %vm1364 = vmor %vm1360, %vm1362
    %vm1365 = vcmp.eq.s32.totalorder %v1357, 4294967288
    %vm1366 = vcmp.eq.s32.totalorder %v1358, 4294967288
    %vm1367 = vmor %vm1363, %vm1365
    %vm1368 = vmor %vm1364, %vm1366
    %v1369 = vld [vmem:[%s7] sm:$0xff]
    %v1370 = vld [vmem:[%s7 + $0x8] sm:$0xff]
    %v1371 = vld [vmem:[#allocation8] sm:$0x1]
    %v1373 = vlaneseq
    %v1374 = vshrl.u32 %v1373, 7
    %v1375 = vsub.s32 0, %v1374
    %v1376 = vrot.slane %v1371, %v1375
    %vm1378 = vcmask 130048
    %v1380 = vsel %vm1378, %v863, 0
    %v1383 = vsel %vm1378, %v1353, 0
    %1385 = vmatprep.subr.mxu0 0.0
    %1386 = vmatpush1.msra.mxu0 %v1369
    %1387 = vmatprep.subr.mxu0 0.0
    %1388 = vmatpush1.msra.mxu0 %v1370
    %1389 = vmatprep.subr.mxu0 0.0
    %1390 = vmatpush1.msra.mxu0 0.0
    %1391 = vmatprep.subr.mxu0 0.0
    %1392 = vmatpush1.msra.mxu0 0.0
    %1393 = vmatprep.subr.mxu0 0.0
    %1394 = vmatpush1.msra.mxu0 0.0
    %1395 = vmatprep.subr.mxu0 0.0
    %1396 = vmatpush1.msra.mxu0 0.0
    %1397 = vmatprep.subr.mxu0 0.0
    %1398 = vmatpush1.msra.mxu0 0.0
    %1399 = vmatprep.subr.mxu0 0.0
    %1400 = vmatpush1.msra.mxu0 0.0
    %1401 = vmatprep.subr.mxu0 0.0
    %1402 = vmatpush1.msra.mxu0 0.0
    %1403 = vmatprep.subr.mxu0 0.0
    %1404 = vmatpush1.msra.mxu0 0.0
    %1405 = vmatprep.subr.mxu0 0.0
    %1406 = vmatpush1.msra.mxu0 0.0
    %1407 = vmatprep.subr.mxu0 0.0
    %1408 = vmatpush1.msra.mxu0 0.0
    %1409 = vmatprep.subr.mxu0 0.0
    %1410 = vmatpush1.msra.mxu0 0.0
    %1411 = vmatprep.subr.mxu0 0.0
    %1412 = vmatpush1.msra.mxu0 0.0
    %1413 = vmatprep.subr.mxu0 0.0
    %1414 = vmatpush1.msra.mxu0 0.0
    %1415 = vmatprep.subr.mxu0 0.0
    %1416 = vmatpush1.msra.mxu0 0.0
    %1417 = vmatprep.subr.mxu0 0.0
    %1418 = vmatpush1.msra.mxu0 0.0
    %1419 = vmatprep.subr.mxu0 0.0
    %1420 = vmatpush1.msra.mxu0 0.0
    %1421 = vmatprep.subr.mxu0 0.0
    %1422 = vmatpush1.msra.mxu0 0.0
    %1423 = vmatprep.subr.mxu0 0.0
    %1424 = vmatpush1.msra.mxu0 0.0
    %1425 = vmatprep.subr.mxu0 0.0
    %1426 = vmatpush1.msra.mxu0 0.0
    %1427 = vmatprep.subr.mxu0 0.0
    %1428 = vmatpush1.msra.mxu0 0.0
    %1429 = vmatprep.subr.mxu0 0.0
    %1430 = vmatpush1.msra.mxu0 0.0
    %1431 = vmatprep.subr.mxu0 0.0
    %1432 = vmatpush1.msra.mxu0 0.0
    %1433 = vmatprep.subr.mxu0 0.0
    %1434 = vmatpush1.msra.mxu0 0.0
    %1435 = vmatprep.subr.mxu0 0.0
    %1436 = vmatpush1.msra.mxu0 0.0
    %1437 = vmatprep.subr.mxu0 0.0
    %1438 = vmatpush1.msra.mxu0 0.0
    %1439 = vmatprep.subr.mxu0 0.0
    %1440 = vmatpush1.msra.mxu0 0.0
    %1441 = vmatprep.subr.mxu0 0.0
    %1442 = vmatpush1.msra.mxu0 0.0
    %1443 = vmatprep.subr.mxu0 0.0
    %1444 = vmatpush1.msra.mxu0 0.0
    %1445 = vmatprep.subr.mxu0 0.0
    %1446 = vmatpush1.msra.mxu0 0.0
    %1447 = vmatprep.subr.mxu0 0.0
    %1448 = vmatpush1.msra.mxu0 0.0
    %1449 = vmatprep.mubr.f32.mxu0 0.0
    %1450 = vmatmul.mubr.f32.gmra.mrb[0].mxu0 %v1380
    %v1451 = vpop.f32.mrb[0].mxu0
    %v1452 = vadd.f32 %v1376, %v1451
    %v1453 = vpop.f32.mrb[0].mxu0
    %1454 = vmatprep.mubr.f32.mxu0 0.0
    %1455 = vmatmul.mubr.f32.gmra.mrb[0].mxu0 %v1383
    %v1456 = vpop.f32.mrb[0].mxu0
    %v1457 = vadd.f32 %v1376, %v1456
    %v1458 = vpop.f32.mrb[0].mxu0
    %1459 = vdwg.mxu0
    %v1460 = vld [vmem:[%s8] sm:$0xff]
    %v1461 = vld [vmem:[%s8 + $0x8] sm:$0xff]
    %v1462 = vld [vmem:[#allocation10] sm:$0x1]
    %v1464 = vlaneseq
    %v1465 = vshrl.u32 %v1464, 7
    %v1466 = vsub.s32 0, %v1465
    %v1467 = vrot.slane %v1462, %v1466
    %1469 = vmatprep.subr.mxu0 0.0
    %1470 = vmatpush1.msra.mxu0 %v1460
    %1471 = vmatprep.subr.mxu0 0.0
    %1472 = vmatpush1.msra.mxu0 %v1461
    %1473 = vmatprep.subr.mxu0 0.0
    %1474 = vmatpush1.msra.mxu0 0.0
    %1475 = vmatprep.subr.mxu0 0.0
    %1476 = vmatpush1.msra.mxu0 0.0
    %1477 = vmatprep.subr.mxu0 0.0
    %1478 = vmatpush1.msra.mxu0 0.0
    %1479 = vmatprep.subr.mxu0 0.0
    %1480 = vmatpush1.msra.mxu0 0.0
    %1481 = vmatprep.subr.mxu0 0.0
    %1482 = vmatpush1.msra.mxu0 0.0
    %1483 = vmatprep.subr.mxu0 0.0
    %1484 = vmatpush1.msra.mxu0 0.0
    %1485 = vmatprep.subr.mxu0 0.0
    %1486 = vmatpush1.msra.mxu0 0.0
    %1487 = vmatprep.subr.mxu0 0.0
    %1488 = vmatpush1.msra.mxu0 0.0
    %1489 = vmatprep.subr.mxu0 0.0
    %1490 = vmatpush1.msra.mxu0 0.0
    %1491 = vmatprep.subr.mxu0 0.0
    %1492 = vmatpush1.msra.mxu0 0.0
    %1493 = vmatprep.subr.mxu0 0.0
    %1494 = vmatpush1.msra.mxu0 0.0
    %1495 = vmatprep.subr.mxu0 0.0
    %1496 = vmatpush1.msra.mxu0 0.0
    %1497 = vmatprep.subr.mxu0 0.0
    %1498 = vmatpush1.msra.mxu0 0.0
    %1499 = vmatprep.subr.mxu0 0.0
    %1500 = vmatpush1.msra.mxu0 0.0
    %1501 = vmatprep.subr.mxu0 0.0
    %1502 = vmatpush1.msra.mxu0 0.0
    %1503 = vmatprep.subr.mxu0 0.0
    %1504 = vmatpush1.msra.mxu0 0.0
    %1505 = vmatprep.subr.mxu0 0.0
    %1506 = vmatpush1.msra.mxu0 0.0
    %1507 = vmatprep.subr.mxu0 0.0
    %1508 = vmatpush1.msra.mxu0 0.0
    %1509 = vmatprep.subr.mxu0 0.0
    %1510 = vmatpush1.msra.mxu0 0.0
    %1511 = vmatprep.subr.mxu0 0.0
    %1512 = vmatpush1.msra.mxu0 0.0
    %1513 = vmatprep.subr.mxu0 0.0
    %1514 = vmatpush1.msra.mxu0 0.0
    %1515 = vmatprep.subr.mxu0 0.0
    %1516 = vmatpush1.msra.mxu0 0.0
    %1517 = vmatprep.subr.mxu0 0.0
    %1518 = vmatpush1.msra.mxu0 0.0
    %1519 = vmatprep.subr.mxu0 0.0
    %1520 = vmatpush1.msra.mxu0 0.0
    %1521 = vmatprep.subr.mxu0 0.0
    %1522 = vmatpush1.msra.mxu0 0.0
    %1523 = vmatprep.subr.mxu0 0.0
    %1524 = vmatpush1.msra.mxu0 0.0
    %1525 = vmatprep.subr.mxu0 0.0
    %1526 = vmatpush1.msra.mxu0 0.0
    %1527 = vmatprep.subr.mxu0 0.0
    %1528 = vmatpush1.msra.mxu0 0.0
    %1529 = vmatprep.subr.mxu0 0.0
    %1530 = vmatpush1.msra.mxu0 0.0
    %1531 = vmatprep.subr.mxu0 0.0
    %1532 = vmatpush1.msra.mxu0 0.0
    %1533 = vmatprep.mubr.f32.mxu0 0.0
    %1534 = vmatmul.mubr.f32.gmra.mrb[0].mxu0 %v1380
    %v1535 = vpop.f32.mrb[0].mxu0
    %v1536 = vadd.f32 %v1467, %v1535
    %v1537 = vpop.f32.mrb[0].mxu0
    %1538 = vmatprep.mubr.f32.mxu0 0.0
    %1539 = vmatmul.mubr.f32.gmra.mrb[0].mxu0 %v1383
    %v1540 = vpop.f32.mrb[0].mxu0
    %v1541 = vadd.f32 %v1467, %v1540
    %v1542 = vpop.f32.mrb[0].mxu0
    %1543 = vdwg.mxu0
    %v1544 = vld [vmem:[#allocation7] sm:$0xff]
    %v1545 = vld [vmem:[#allocation7 + $0x8] sm:$0xff]
    %v1546 = vld [vmem:[%s12] sm:$0x1]
    %v1548 = vlaneseq
    %v1549 = vshrl.u32 %v1548, 7
    %v1550 = vsub.s32 0, %v1549
    %v1551 = vrot.slane %v1546, %v1550
    %1553 = vmatprep.subr.mxu0 0.0
    %1554 = vmatpush1.msra.mxu0 %v1544
    %1555 = vmatprep.subr.mxu0 0.0
    %1556 = vmatpush1.msra.mxu0 %v1545
    %1557 = vmatprep.subr.mxu0 0.0
    %1558 = vmatpush1.msra.mxu0 0.0
    %1559 = vmatprep.subr.mxu0 0.0
    %1560 = vmatpush1.msra.mxu0 0.0
    %1561 = vmatprep.subr.mxu0 0.0
    %1562 = vmatpush1.msra.mxu0 0.0
    %1563 = vmatprep.subr.mxu0 0.0
    %1564 = vmatpush1.msra.mxu0 0.0
    %1565 = vmatprep.subr.mxu0 0.0
    %1566 = vmatpush1.msra.mxu0 0.0
    %1567 = vmatprep.subr.mxu0 0.0
    %1568 = vmatpush1.msra.mxu0 0.0
    %1569 = vmatprep.subr.mxu0 0.0
    %1570 = vmatpush1.msra.mxu0 0.0
    %1571 = vmatprep.subr.mxu0 0.0
    %1572 = vmatpush1.msra.mxu0 0.0
    %1573 = vmatprep.subr.mxu0 0.0
    %1574 = vmatpush1.msra.mxu0 0.0
    %1575 = vmatprep.subr.mxu0 0.0
    %1576 = vmatpush1.msra.mxu0 0.0
    %1577 = vmatprep.subr.mxu0 0.0
    %1578 = vmatpush1.msra.mxu0 0.0
    %1579 = vmatprep.subr.mxu0 0.0
    %1580 = vmatpush1.msra.mxu0 0.0
    %1581 = vmatprep.subr.mxu0 0.0
    %1582 = vmatpush1.msra.mxu0 0.0
    %1583 = vmatprep.subr.mxu0 0.0
    %1584 = vmatpush1.msra.mxu0 0.0
    %1585 = vmatprep.subr.mxu0 0.0
    %1586 = vmatpush1.msra.mxu0 0.0
    %1587 = vmatprep.subr.mxu0 0.0
    %1588 = vmatpush1.msra.mxu0 0.0
    %1589 = vmatprep.subr.mxu0 0.0
    %1590 = vmatpush1.msra.mxu0 0.0
    %1591 = vmatprep.subr.mxu0 0.0
    %1592 = vmatpush1.msra.mxu0 0.0
    %1593 = vmatprep.subr.mxu0 0.0
    %1594 = vmatpush1.msra.mxu0 0.0
    %1595 = vmatprep.subr.mxu0 0.0
    %1596 = vmatpush1.msra.mxu0 0.0
    %1597 = vmatprep.subr.mxu0 0.0
    %1598 = vmatpush1.msra.mxu0 0.0
    %1599 = vmatprep.subr.mxu0 0.0
    %1600 = vmatpush1.msra.mxu0 0.0
    %1601 = vmatprep.subr.mxu0 0.0
    %1602 = vmatpush1.msra.mxu0 0.0
    %1603 = vmatprep.subr.mxu0 0.0
    %1604 = vmatpush1.msra.mxu0 0.0
    %1605 = vmatprep.subr.mxu0 0.0
    %1606 = vmatpush1.msra.mxu0 0.0
    %1607 = vmatprep.subr.mxu0 0.0
    %1608 = vmatpush1.msra.mxu0 0.0
    %1609 = vmatprep.subr.mxu0 0.0
    %1610 = vmatpush1.msra.mxu0 0.0
    %1611 = vmatprep.subr.mxu0 0.0
    %1612 = vmatpush1.msra.mxu0 0.0
    %1613 = vmatprep.subr.mxu0 0.0
    %1614 = vmatpush1.msra.mxu0 0.0
    %1615 = vmatprep.subr.mxu0 0.0
    %1616 = vmatpush1.msra.mxu0 0.0
    %1617 = vmatprep.mubr.f32.mxu0 0.0
    %1618 = vmatmul.mubr.f32.gmra.mrb[0].mxu0 %v1380
    %v1619 = vpop.f32.mrb[0].mxu0
    %v1620 = vadd.f32 %v1551, %v1619
    %v1621 = vpop.f32.mrb[0].mxu0
    %1622 = vmatprep.mubr.f32.mxu0 0.0
    %1623 = vmatmul.mubr.f32.gmra.mrb[0].mxu0 %v1383
    %v1624 = vpop.f32.mrb[0].mxu0
    %v1625 = vadd.f32 %v1551, %v1624
    %v1626 = vpop.f32.mrb[0].mxu0
    %1627 = vdwg.mxu0
    %vm1628 = vcmask 64512
    %v1630 = vsel %vm1628, %v1452, 0
    %v1633 = vsel %vm1628, %v1457, 0
    %v1636 = vsel %vm1628, %v1536, 0
    %v1639 = vsel %vm1628, %v1541, 0
    %1641 = vmatprep.subr.mxu0 0.0
    %1642 = vmatpush1.xpose.msra.mxu0 %v1636
    %1643 = vmatprep.subr.mxu0 0.0
    %1644 = vmatpush1.xpose.msra.mxu0 %v1639
    %1645 = vmatprep.subr.mxu0 0.0
    %1646 = vmatpush1.xpose.msra.mxu0 0.0
    %1647 = vmatprep.subr.mxu0 0.0
    %1648 = vmatpush1.xpose.msra.mxu0 0.0
    %1649 = vmatprep.subr.mxu0 0.0
    %1650 = vmatpush1.xpose.msra.mxu0 0.0
    %1651 = vmatprep.subr.mxu0 0.0
    %1652 = vmatpush1.xpose.msra.mxu0 0.0
    %1653 = vmatprep.subr.mxu0 0.0
    %1654 = vmatpush1.xpose.msra.mxu0 0.0
    %1655 = vmatprep.subr.mxu0 0.0
    %1656 = vmatpush1.xpose.msra.mxu0 0.0
    %1657 = vmatprep.subr.mxu0 0.0
    %1658 = vmatpush1.xpose.msra.mxu0 0.0
    %1659 = vmatprep.subr.mxu0 0.0
    %1660 = vmatpush1.xpose.msra.mxu0 0.0
    %1661 = vmatprep.subr.mxu0 0.0
    %1662 = vmatpush1.xpose.msra.mxu0 0.0
    %1663 = vmatprep.subr.mxu0 0.0
    %1664 = vmatpush1.xpose.msra.mxu0 0.0
    %1665 = vmatprep.subr.mxu0 0.0
    %1666 = vmatpush1.xpose.msra.mxu0 0.0
    %1667 = vmatprep.subr.mxu0 0.0
    %1668 = vmatpush1.xpose.msra.mxu0 0.0
    %1669 = vmatprep.subr.mxu0 0.0
    %1670 = vmatpush1.xpose.msra.mxu0 0.0
    %1671 = vmatprep.subr.mxu0 0.0
    %1672 = vmatpush1.xpose.msra.mxu0 0.0
    %1673 = vmatprep.subr.mxu0 0.0
    %1674 = vmatpush1.xpose.msra.mxu0 0.0
    %1675 = vmatprep.subr.mxu0 0.0
    %1676 = vmatpush1.xpose.msra.mxu0 0.0
    %1677 = vmatprep.subr.mxu0 0.0
    %1678 = vmatpush1.xpose.msra.mxu0 0.0
    %1679 = vmatprep.subr.mxu0 0.0
    %1680 = vmatpush1.xpose.msra.mxu0 0.0
    %1681 = vmatprep.subr.mxu0 0.0
    %1682 = vmatpush1.xpose.msra.mxu0 0.0
    %1683 = vmatprep.subr.mxu0 0.0
    %1684 = vmatpush1.xpose.msra.mxu0 0.0
    %1685 = vmatprep.subr.mxu0 0.0
    %1686 = vmatpush1.xpose.msra.mxu0 0.0
    %1687 = vmatprep.subr.mxu0 0.0
    %1688 = vmatpush1.xpose.msra.mxu0 0.0
    %1689 = vmatprep.subr.mxu0 0.0
    %1690 = vmatpush1.xpose.msra.mxu0 0.0
    %1691 = vmatprep.subr.mxu0 0.0
    %1692 = vmatpush1.xpose.msra.mxu0 0.0
    %1693 = vmatprep.subr.mxu0 0.0
    %1694 = vmatpush1.xpose.msra.mxu0 0.0
    %1695 = vmatprep.subr.mxu0 0.0
    %1696 = vmatpush1.xpose.msra.mxu0 0.0
    %1697 = vmatprep.subr.mxu0 0.0
    %1698 = vmatpush1.xpose.msra.mxu0 0.0
    %1699 = vmatprep.subr.mxu0 0.0
    %1700 = vmatpush1.xpose.msra.mxu0 0.0
    %1701 = vmatprep.subr.mxu0 0.0
    %1702 = vmatpush1.xpose.msra.mxu0 0.0
    %1703 = vmatprep.subr.mxu0 0.0
    %1704 = vmatpush1.xpose.msra.mxu0 0.0
    %1705 = vmatprep.mubr.f32.mxu0 0.0
    %1706 = vmatmul.mubr.f32.gmra.mrb[0].mxu0 %v1630
    %v1707 = vpop.f32.mrb[0].mxu0
    %v1708 = vadd.f32 0.0, %v1707
    %v1709 = vpop.f32.mrb[0].mxu0
    %1710 = vmatprep.mubr.f32.mxu0 0.0
    %1711 = vmatmul.mubr.f32.gmra.mrb[0].mxu0 %v1633
    %v1712 = vpop.f32.mrb[0].mxu0
    %v1713 = vadd.f32 0.0, %v1712
    %v1714 = vpop.f32.mrb[0].mxu0
    %1715 = vdwg.mxu0
    %v1716 = vmul.f32 %v1708, 0.35355338
    %v1717 = vmul.f32 %v1713, 0.35355338
    %v1718 = vsel %vm1367, %v1716, -1e+30
    %v1719 = vsel %vm1368, %v1717, -1e+30
    %v1720 = vsel %vm1378, %v1718, -inf
    %1721 = vmax.xlane.f32.xlu0 %v1720
    %v1722 = vpop.xlane.xlu0 %1721
    %v1723 = vsel %vm1378, %v1719, -inf
    %1724 = vmax.xlane.f32.xlu0 %v1723
    %v1725 = vpop.xlane.xlu0 %1724
    %v1726 = vsub.f32 %v1718, %v1722
    %v1727 = vsub.f32 %v1719, %v1725
    %v1728 = vmul.f32 %v1726, 1.442695
    %v1729 = vpow.pop %v1728
    %v1730 = vmul.f32 %v1727, 1.442695
    %v1731 = vpow.pop %v1730
    %v1732 = vsel %vm1367, %v1729, 0.0
    %v1733 = vsel %vm1368, %v1731, 0.0
    %v1734 = vsel %vm1378, %v1732, 0.0
    %1735 = vadd.xlane.f32.xlu0 %v1734
    %v1736 = vpop.xlane.xlu0 %1735
    %v1737 = vsel %vm1378, %v1733, 0.0
    %1738 = vadd.xlane.f32.xlu0 %v1737
    %v1739 = vpop.xlane.xlu0 %1738
    %v1740 = vrcp.pop %v1736
    %v1741 = vrcp.pop %v1739
    %v1742 = vmul.f32 %v1732, %v1740
    %v1743 = vmul.f32 %v1733, %v1741
    %v1745 = vsel %vm1378, %v1742, 0
    %v1748 = vsel %vm1378, %v1743, 0
    %1750 = vmatprep.subr.mxu0 0.0
    %1751 = vmatpush1.msra.mxu0 %v1620
    %1752 = vmatprep.subr.mxu0 0.0
    %1753 = vmatpush1.msra.mxu0 %v1625
    %1754 = vmatprep.subr.mxu0 0.0
    %1755 = vmatpush1.msra.mxu0 0.0
    %1756 = vmatprep.subr.mxu0 0.0
    %1757 = vmatpush1.msra.mxu0 0.0
    %1758 = vmatprep.subr.mxu0 0.0
    %1759 = vmatpush1.msra.mxu0 0.0
    %1760 = vmatprep.subr.mxu0 0.0
    %1761 = vmatpush1.msra.mxu0 0.0
    %1762 = vmatprep.subr.mxu0 0.0
    %1763 = vmatpush1.msra.mxu0 0.0
    %1764 = vmatprep.subr.mxu0 0.0
    %1765 = vmatpush1.msra.mxu0 0.0
    %1766 = vmatprep.subr.mxu0 0.0
    %1767 = vmatpush1.msra.mxu0 0.0
    %1768 = vmatprep.subr.mxu0 0.0
    %1769 = vmatpush1.msra.mxu0 0.0
    %1770 = vmatprep.subr.mxu0 0.0
    %1771 = vmatpush1.msra.mxu0 0.0
    %1772 = vmatprep.subr.mxu0 0.0
    %1773 = vmatpush1.msra.mxu0 0.0
    %1774 = vmatprep.subr.mxu0 0.0
    %1775 = vmatpush1.msra.mxu0 0.0
    %1776 = vmatprep.subr.mxu0 0.0
    %1777 = vmatpush1.msra.mxu0 0.0
    %1778 = vmatprep.subr.mxu0 0.0
    %1779 = vmatpush1.msra.mxu0 0.0
    %1780 = vmatprep.subr.mxu0 0.0
    %1781 = vmatpush1.msra.mxu0 0.0
    %1782 = vmatprep.subr.mxu0 0.0
    %1783 = vmatpush1.msra.mxu0 0.0
    %1784 = vmatprep.subr.mxu0 0.0
    %1785 = vmatpush1.msra.mxu0 0.0
    %1786 = vmatprep.subr.mxu0 0.0
    %1787 = vmatpush1.msra.mxu0 0.0
    %1788 = vmatprep.subr.mxu0 0.0
    %1789 = vmatpush1.msra.mxu0 0.0
    %1790 = vmatprep.subr.mxu0 0.0
    %1791 = vmatpush1.msra.mxu0 0.0
    %1792 = vmatprep.subr.mxu0 0.0
    %1793 = vmatpush1.msra.mxu0 0.0
    %1794 = vmatprep.subr.mxu0 0.0
    %1795 = vmatpush1.msra.mxu0 0.0
    %1796 = vmatprep.subr.mxu0 0.0
    %1797 = vmatpush1.msra.mxu0 0.0
    %1798 = vmatprep.subr.mxu0 0.0
    %1799 = vmatpush1.msra.mxu0 0.0
    %1800 = vmatprep.subr.mxu0 0.0
    %1801 = vmatpush1.msra.mxu0 0.0
    %1802 = vmatprep.subr.mxu0 0.0
    %1803 = vmatpush1.msra.mxu0 0.0
    %1804 = vmatprep.subr.mxu0 0.0
    %1805 = vmatpush1.msra.mxu0 0.0
    %1806 = vmatprep.subr.mxu0 0.0
    %1807 = vmatpush1.msra.mxu0 0.0
    %1808 = vmatprep.subr.mxu0 0.0
    %1809 = vmatpush1.msra.mxu0 0.0
    %1810 = vmatprep.subr.mxu0 0.0
    %1811 = vmatpush1.msra.mxu0 0.0
    %1812 = vmatprep.subr.mxu0 0.0
    %1813 = vmatpush1.msra.mxu0 0.0
    %1814 = vmatprep.mubr.f32.mxu0 0.0
    %1815 = vmatmul.mubr.f32.gmra.mrb[0].mxu0 %v1745
    %v1816 = vpop.f32.mrb[0].mxu0
    %v1817 = vadd.f32 0.0, %v1816
    %v1818 = vpop.f32.mrb[0].mxu0
    %1819 = vmatprep.mubr.f32.mxu0 0.0
    %1820 = vmatmul.mubr.f32.gmra.mrb[0].mxu0 %v1748
    %v1821 = vpop.f32.mrb[0].mxu0
    %v1822 = vadd.f32 0.0, %v1821
    %v1823 = vpop.f32.mrb[0].mxu0
    %1824 = vdwg.mxu0
    %v1825 = vld [vmem:[#allocation11] sm:$0xff]
    %1826 = vrot.lane.b32.xlu0 %v1452, 120
    %v1827 = vpop.permute.xlu0 %1826
    %1828 = vrot.lane.b32.xlu0 %v1457, 120
    %v1829 = vpop.permute.xlu0 %1828
    %1830 = vrot.lane.b32.xlu0 %v1536, 120
    %v1831 = vpop.permute.xlu0 %1830
    %1832 = vrot.lane.b32.xlu0 %v1541, 120
    %v1833 = vpop.permute.xlu0 %1832
    %v1834 = vsel %vm1628, %v1827, 0
    %v1836 = vsel %vm1628, %v1829, 0
    %v1838 = vsel %vm1628, %v1831, 0
    %v1840 = vsel %vm1628, %v1833, 0
    %1842 = vmatprep.subr.mxu0 0.0
    %1843 = vmatpush1.xpose.msra.mxu0 %v1838
    %1844 = vmatprep.subr.mxu0 0.0
    %1845 = vmatpush1.xpose.msra.mxu0 %v1840
    %1846 = vmatprep.subr.mxu0 0.0
    %1847 = vmatpush1.xpose.msra.mxu0 0.0
    %1848 = vmatprep.subr.mxu0 0.0
    %1849 = vmatpush1.xpose.msra.mxu0 0.0
    %1850 = vmatprep.subr.mxu0 0.0
    %1851 = vmatpush1.xpose.msra.mxu0 0.0
    %1852 = vmatprep.subr.mxu0 0.0
    %1853 = vmatpush1.xpose.msra.mxu0 0.0
    %1854 = vmatprep.subr.mxu0 0.0
    %1855 = vmatpush1.xpose.msra.mxu0 0.0
    %1856 = vmatprep.subr.mxu0 0.0
    %1857 = vmatpush1.xpose.msra.mxu0 0.0
    %1858 = vmatprep.subr.mxu0 0.0
    %1859 = vmatpush1.xpose.msra.mxu0 0.0
    %1860 = vmatprep.subr.mxu0 0.0
    %1861 = vmatpush1.xpose.msra.mxu0 0.0
    %1862 = vmatprep.subr.mxu0 0.0
    %1863 = vmatpush1.xpose.msra.mxu0 0.0
    %1864 = vmatprep.subr.mxu0 0.0
    %1865 = vmatpush1.xpose.msra.mxu0 0.0
    %1866 = vmatprep.subr.mxu0 0.0
    %1867 = vmatpush1.xpose.msra.mxu0 0.0
    %1868 = vmatprep.subr.mxu0 0.0
    %1869 = vmatpush1.xpose.msra.mxu0 0.0
    %1870 = vmatprep.subr.mxu0 0.0
    %1871 = vmatpush1.xpose.msra.mxu0 0.0
    %1872 = vmatprep.subr.mxu0 0.0
    %1873 = vmatpush1.xpose.msra.mxu0 0.0
    %1874 = vmatprep.subr.mxu0 0.0
    %1875 = vmatpush1.xpose.msra.mxu0 0.0
    %1876 = vmatprep.subr.mxu0 0.0
    %1877 = vmatpush1.xpose.msra.mxu0 0.0
    %1878 = vmatprep.subr.mxu0 0.0
    %1879 = vmatpush1.xpose.msra.mxu0 0.0
    %1880 = vmatprep.subr.mxu0 0.0
    %1881 = vmatpush1.xpose.msra.mxu0 0.0
    %1882 = vmatprep.subr.mxu0 0.0
    %1883 = vmatpush1.xpose.msra.mxu0 0.0
    %1884 = vmatprep.subr.mxu0 0.0
    %1885 = vmatpush1.xpose.msra.mxu0 0.0
    %1886 = vmatprep.subr.mxu0 0.0
    %1887 = vmatpush1.xpose.msra.mxu0 0.0
    %1888 = vmatprep.subr.mxu0 0.0
    %1889 = vmatpush1.xpose.msra.mxu0 0.0
    %1890 = vmatprep.subr.mxu0 0.0
    %1891 = vmatpush1.xpose.msra.mxu0 0.0
    %1892 = vmatprep.subr.mxu0 0.0
    %1893 = vmatpush1.xpose.msra.mxu0 0.0
    %1894 = vmatprep.subr.mxu0 0.0
    %1895 = vmatpush1.xpose.msra.mxu0 0.0
    %1896 = vmatprep.subr.mxu0 0.0
    %1897 = vmatpush1.xpose.msra.mxu0 0.0
    %1898 = vmatprep.subr.mxu0 0.0
    %1899 = vmatpush1.xpose.msra.mxu0 0.0
    %1900 = vmatprep.subr.mxu0 0.0
    %1901 = vmatpush1.xpose.msra.mxu0 0.0
    %1902 = vmatprep.subr.mxu0 0.0
    %1903 = vmatpush1.xpose.msra.mxu0 0.0
    %1904 = vmatprep.subr.mxu0 0.0
    %1905 = vmatpush1.xpose.msra.mxu0 0.0
    %1906 = vmatprep.mubr.f32.mxu0 0.0
    %1907 = vmatmul.mubr.f32.gmra.mrb[0].mxu0 %v1834
    %v1908 = vpop.f32.mrb[0].mxu0
    %v1909 = vadd.f32 0.0, %v1908
    %v1910 = vpop.f32.mrb[0].mxu0
    %1911 = vmatprep.mubr.f32.mxu0 0.0
    %1912 = vmatmul.mubr.f32.gmra.mrb[0].mxu0 %v1836
    %v1913 = vpop.f32.mrb[0].mxu0
    %v1914 = vadd.f32 0.0, %v1913
    %v1915 = vpop.f32.mrb[0].mxu0
    %1916 = vdwg.mxu0
    %v1917 = vmul.f32 %v1909, 0.35355338
    %v1918 = vmul.f32 %v1914, 0.35355338
    %v1919 = vsel %vm1367, %v1917, -1e+30
    %v1920 = vsel %vm1368, %v1918, -1e+30
    %v1921 = vsel %vm1378, %v1919, -inf
    %1922 = vmax.xlane.f32.xlu0 %v1921
    %v1923 = vpop.xlane.xlu0 %1922
    %v1924 = vsel %vm1378, %v1920, -inf
    %1925 = vmax.xlane.f32.xlu0 %v1924
    %v1926 = vpop.xlane.xlu0 %1925
    %v1927 = vsub.f32 %v1919, %v1923
    %v1928 = vsub.f32 %v1920, %v1926
    %v1929 = vmul.f32 %v1927, 1.442695
    %v1930 = vpow.pop %v1929
    %v1931 = vmul.f32 %v1928, 1.442695
    %v1932 = vpow.pop %v1931
    %v1933 = vsel %vm1367, %v1930, 0.0
    %v1934 = vsel %vm1368, %v1932, 0.0
    %v1935 = vsel %vm1378, %v1933, 0.0
    %1936 = vadd.xlane.f32.xlu0 %v1935
    %v1937 = vpop.xlane.xlu0 %1936
    %v1938 = vsel %vm1378, %v1934, 0.0
    %1939 = vadd.xlane.f32.xlu0 %v1938
    %v1940 = vpop.xlane.xlu0 %1939
    %v1941 = vrcp.pop %v1937
    %v1942 = vrcp.pop %v1940
    %v1943 = vmul.f32 %v1933, %v1941
    %v1944 = vmul.f32 %v1934, %v1942
    %1947 = vrot.lane.b32.xlu0 %v1620, 120
    %v1948 = vpop.permute.xlu0 %1947
    %1949 = vrot.lane.b32.xlu0 %v1625, 120
    %v1950 = vpop.permute.xlu0 %1949
    %v1954 = vsel %vm1378, %v1943, 0
    %v1957 = vsel %vm1378, %v1944, 0
    %1959 = vmatprep.subr.mxu0 0.0
    %1960 = vmatpush1.msra.mxu0 %v1948
    %1961 = vmatprep.subr.mxu0 0.0
    %1962 = vmatpush1.msra.mxu0 %v1950
    %1963 = vmatprep.subr.mxu0 0.0
    %1964 = vmatpush1.msra.mxu0 0.0
    %1965 = vmatprep.subr.mxu0 0.0
    %1966 = vmatpush1.msra.mxu0 0.0
    %1967 = vmatprep.subr.mxu0 0.0
    %1968 = vmatpush1.msra.mxu0 0.0
    %1969 = vmatprep.subr.mxu0 0.0
    %1970 = vmatpush1.msra.mxu0 0.0
    %1971 = vmatprep.subr.mxu0 0.0
    %1972 = vmatpush1.msra.mxu0 0.0
    %1973 = vmatprep.subr.mxu0 0.0
    %1974 = vmatpush1.msra.mxu0 0.0
    %1975 = vmatprep.subr.mxu0 0.0
    %1976 = vmatpush1.msra.mxu0 0.0
    %1977 = vmatprep.subr.mxu0 0.0
    %1978 = vmatpush1.msra.mxu0 0.0
    %1979 = vmatprep.subr.mxu0 0.0
    %1980 = vmatpush1.msra.mxu0 0.0
    %1981 = vmatprep.subr.mxu0 0.0
    %1982 = vmatpush1.msra.mxu0 0.0
    %1983 = vmatprep.subr.mxu0 0.0
    %1984 = vmatpush1.msra.mxu0 0.0
    %1985 = vmatprep.subr.mxu0 0.0
    %1986 = vmatpush1.msra.mxu0 0.0
    %1987 = vmatprep.subr.mxu0 0.0
    %1988 = vmatpush1.msra.mxu0 0.0
    %1989 = vmatprep.subr.mxu0 0.0
    %1990 = vmatpush1.msra.mxu0 0.0
    %1991 = vmatprep.subr.mxu0 0.0
    %1992 = vmatpush1.msra.mxu0 0.0
    %1993 = vmatprep.subr.mxu0 0.0
    %1994 = vmatpush1.msra.mxu0 0.0
    %1995 = vmatprep.subr.mxu0 0.0
    %1996 = vmatpush1.msra.mxu0 0.0
    %1997 = vmatprep.subr.mxu0 0.0
    %1998 = vmatpush1.msra.mxu0 0.0
    %1999 = vmatprep.subr.mxu0 0.0
    %2000 = vmatpush1.msra.mxu0 0.0
    %2001 = vmatprep.subr.mxu0 0.0
    %2002 = vmatpush1.msra.mxu0 0.0
    %2003 = vmatprep.subr.mxu0 0.0
    %2004 = vmatpush1.msra.mxu0 0.0
    %2005 = vmatprep.subr.mxu0 0.0
    %2006 = vmatpush1.msra.mxu0 0.0
    %2007 = vmatprep.subr.mxu0 0.0
    %2008 = vmatpush1.msra.mxu0 0.0
    %2009 = vmatprep.subr.mxu0 0.0
    %2010 = vmatpush1.msra.mxu0 0.0
    %2011 = vmatprep.subr.mxu0 0.0
    %2012 = vmatpush1.msra.mxu0 0.0
    %2013 = vmatprep.subr.mxu0 0.0
    %2014 = vmatpush1.msra.mxu0 0.0
    %2015 = vmatprep.subr.mxu0 0.0
    %2016 = vmatpush1.msra.mxu0 0.0
    %2017 = vmatprep.subr.mxu0 0.0
    %2018 = vmatpush1.msra.mxu0 0.0
    %2019 = vmatprep.subr.mxu0 0.0
    %2020 = vmatpush1.msra.mxu0 0.0
    %2021 = vmatprep.subr.mxu0 0.0
    %2022 = vmatpush1.msra.mxu0 0.0
    %2023 = vmatprep.mubr.f32.mxu0 0.0
    %2024 = vmatmul.mubr.f32.gmra.mrb[0].mxu0 %v1954
    %v2025 = vpop.f32.mrb[0].mxu0
    %v2026 = vadd.f32 0.0, %v2025
    %v2027 = vpop.f32.mrb[0].mxu0
    %2028 = vmatprep.mubr.f32.mxu0 0.0
    %2029 = vmatmul.mubr.f32.gmra.mrb[0].mxu0 %v1957
    %v2030 = vpop.f32.mrb[0].mxu0
    %v2031 = vadd.f32 0.0, %v2030
    %v2032 = vpop.f32.mrb[0].mxu0
    %2033 = vdwg.mxu0
    %s2034 = scalar_lea.vmem [#allocation11], 8
    %v2035 = vld [vmem:[%s2034] sm:$0xff]
    %v2037 = vsel %vm1628, %v2026, 0
    %v2040 = vsel %vm1628, %v2031, 0
    %2042 = vmatprep.subr.mxu0 0.0
    %2043 = vmatpush1.msra.mxu0 %v2035
    %2044 = vmatprep.subr.mxu0 0.0
    %2045 = vmatpush1.msra.mxu0 0.0
    %2046 = vmatprep.subr.mxu0 0.0
    %2047 = vmatpush1.msra.mxu0 0.0
    %2048 = vmatprep.subr.mxu0 0.0
    %2049 = vmatpush1.msra.mxu0 0.0
    %2050 = vmatprep.subr.mxu0 0.0
    %2051 = vmatpush1.msra.mxu0 0.0
    %2052 = vmatprep.subr.mxu0 0.0
    %2053 = vmatpush1.msra.mxu0 0.0
    %2054 = vmatprep.subr.mxu0 0.0
    %2055 = vmatpush1.msra.mxu0 0.0
    %2056 = vmatprep.subr.mxu0 0.0
    %2057 = vmatpush1.msra.mxu0 0.0
    %2058 = vmatprep.subr.mxu0 0.0
    %2059 = vmatpush1.msra.mxu0 0.0
    %2060 = vmatprep.subr.mxu0 0.0
    %2061 = vmatpush1.msra.mxu0 0.0
    %2062 = vmatprep.subr.mxu0 0.0
    %2063 = vmatpush1.msra.mxu0 0.0
    %2064 = vmatprep.subr.mxu0 0.0
    %2065 = vmatpush1.msra.mxu0 0.0
    %2066 = vmatprep.subr.mxu0 0.0
    %2067 = vmatpush1.msra.mxu0 0.0
    %2068 = vmatprep.subr.mxu0 0.0
    %2069 = vmatpush1.msra.mxu0 0.0
    %2070 = vmatprep.subr.mxu0 0.0
    %2071 = vmatpush1.msra.mxu0 0.0
    %2072 = vmatprep.subr.mxu0 0.0
    %2073 = vmatpush1.msra.mxu0 0.0
    %2074 = vmatprep.subr.mxu0 0.0
    %2075 = vmatpush1.msra.mxu0 0.0
    %2076 = vmatprep.subr.mxu0 0.0
    %2077 = vmatpush1.msra.mxu0 0.0
    %2078 = vmatprep.subr.mxu0 0.0
    %2079 = vmatpush1.msra.mxu0 0.0
    %2080 = vmatprep.subr.mxu0 0.0
    %2081 = vmatpush1.msra.mxu0 0.0
    %2082 = vmatprep.subr.mxu0 0.0
    %2083 = vmatpush1.msra.mxu0 0.0
    %2084 = vmatprep.subr.mxu0 0.0
    %2085 = vmatpush1.msra.mxu0 0.0
    %2086 = vmatprep.subr.mxu0 0.0
    %2087 = vmatpush1.msra.mxu0 0.0
    %2088 = vmatprep.subr.mxu0 0.0
    %2089 = vmatpush1.msra.mxu0 0.0
    %2090 = vmatprep.subr.mxu0 0.0
    %2091 = vmatpush1.msra.mxu0 0.0
    %2092 = vmatprep.subr.mxu0 0.0
    %2093 = vmatpush1.msra.mxu0 0.0
    %2094 = vmatprep.subr.mxu0 0.0
    %2095 = vmatpush1.msra.mxu0 0.0
    %2096 = vmatprep.subr.mxu0 0.0
    %2097 = vmatpush1.msra.mxu0 0.0
    %2098 = vmatprep.subr.mxu0 0.0
    %2099 = vmatpush1.msra.mxu0 0.0
    %2100 = vmatprep.subr.mxu0 0.0
    %2101 = vmatpush1.msra.mxu0 0.0
    %2102 = vmatprep.subr.mxu0 0.0
    %2103 = vmatpush1.msra.mxu0 0.0
    %2104 = vmatprep.subr.mxu0 0.0
    %2105 = vmatpush1.msra.mxu0 0.0
    %2106 = vmatprep.mubr.f32.mxu0 0.0
    %2107 = vmatmul.mubr.f32.gmra.mrb[0].mxu0 %v2037
    %v2108 = vpop.f32.mrb[0].mxu0
    %v2109 = vadd.f32 0.0, %v2108
    %v2110 = vpop.f32.mrb[0].mxu0
    %2111 = vmatprep.mubr.f32.mxu0 0.0
    %2112 = vmatmul.mubr.f32.gmra.mrb[0].mxu0 %v2040
    %v2113 = vpop.f32.mrb[0].mxu0
    %v2114 = vadd.f32 0.0, %v2113
    %v2115 = vpop.f32.mrb[0].mxu0
    %2116 = vdwg.mxu0
    %v2118 = vsel %vm1628, %v1817, 0
    %v2121 = vsel %vm1628, %v1822, 0
    %2123 = vmatprep.subr.mxu0 0.0
    %2124 = vmatpush1.msra.mxu0 %v1825
    %2125 = vmatprep.subr.mxu0 0.0
    %2126 = vmatpush1.msra.mxu0 0.0
    %2127 = vmatprep.subr.mxu0 0.0
    %2128 = vmatpush1.msra.mxu0 0.0
    %2129 = vmatprep.subr.mxu0 0.0
    %2130 = vmatpush1.msra.mxu0 0.0
    %2131 = vmatprep.subr.mxu0 0.0
    %2132 = vmatpush1.msra.mxu0 0.0
    %2133 = vmatprep.subr.mxu0 0.0
    %2134 = vmatpush1.msra.mxu0 0.0
    %2135 = vmatprep.subr.mxu0 0.0
    %2136 = vmatpush1.msra.mxu0 0.0
    %2137 = vmatprep.subr.mxu0 0.0
    %2138 = vmatpush1.msra.mxu0 0.0
    %2139 = vmatprep.subr.mxu0 0.0
    %2140 = vmatpush1.msra.mxu0 0.0
    %2141 = vmatprep.subr.mxu0 0.0
    %2142 = vmatpush1.msra.mxu0 0.0
    %2143 = vmatprep.subr.mxu0 0.0
    %2144 = vmatpush1.msra.mxu0 0.0
    %2145 = vmatprep.subr.mxu0 0.0
    %2146 = vmatpush1.msra.mxu0 0.0
    %2147 = vmatprep.subr.mxu0 0.0
    %2148 = vmatpush1.msra.mxu0 0.0
    %2149 = vmatprep.subr.mxu0 0.0
    %2150 = vmatpush1.msra.mxu0 0.0
    %2151 = vmatprep.subr.mxu0 0.0
    %2152 = vmatpush1.msra.mxu0 0.0
    %2153 = vmatprep.subr.mxu0 0.0
    %2154 = vmatpush1.msra.mxu0 0.0
    %2155 = vmatprep.subr.mxu0 0.0
    %2156 = vmatpush1.msra.mxu0 0.0
    %2157 = vmatprep.subr.mxu0 0.0
    %2158 = vmatpush1.msra.mxu0 0.0
    %2159 = vmatprep.subr.mxu0 0.0
    %2160 = vmatpush1.msra.mxu0 0.0
    %2161 = vmatprep.subr.mxu0 0.0
    %2162 = vmatpush1.msra.mxu0 0.0
    %2163 = vmatprep.subr.mxu0 0.0
    %2164 = vmatpush1.msra.mxu0 0.0
    %2165 = vmatprep.subr.mxu0 0.0
    %2166 = vmatpush1.msra.mxu0 0.0
    %2167 = vmatprep.subr.mxu0 0.0
    %2168 = vmatpush1.msra.mxu0 0.0
    %2169 = vmatprep.subr.mxu0 0.0
    %2170 = vmatpush1.msra.mxu0 0.0
    %2171 = vmatprep.subr.mxu0 0.0
    %2172 = vmatpush1.msra.mxu0 0.0
    %2173 = vmatprep.subr.mxu0 0.0
    %2174 = vmatpush1.msra.mxu0 0.0
    %2175 = vmatprep.subr.mxu0 0.0
    %2176 = vmatpush1.msra.mxu0 0.0
    %2177 = vmatprep.subr.mxu0 0.0
    %2178 = vmatpush1.msra.mxu0 0.0
    %2179 = vmatprep.subr.mxu0 0.0
    %2180 = vmatpush1.msra.mxu0 0.0
    %2181 = vmatprep.subr.mxu0 0.0
    %2182 = vmatpush1.msra.mxu0 0.0
    %2183 = vmatprep.subr.mxu0 0.0
    %2184 = vmatpush1.msra.mxu0 0.0
    %2185 = vmatprep.subr.mxu0 0.0
    %2186 = vmatpush1.msra.mxu0 0.0
    %2187 = vmatprep.mubr.f32.mxu0 0.0
    %2188 = vmatmul.mubr.f32.gmra.mrb[0].mxu0 %v2118
    %v2189 = vpop.f32.mrb[0].mxu0
    %v2190 = vadd.f32 %v2109, %v2189
    %v2191 = vpop.f32.mrb[0].mxu0
    %2192 = vmatprep.mubr.f32.mxu0 0.0
    %2193 = vmatmul.mubr.f32.gmra.mrb[0].mxu0 %v2121
    %v2194 = vpop.f32.mrb[0].mxu0
    %v2195 = vadd.f32 %v2114, %v2194
    %v2196 = vpop.f32.mrb[0].mxu0
    %2197 = vdwg.mxu0
    %v2198 = vld [vmem:[#allocation13] sm:$0x1]
    %v2200 = vlaneseq
    %v2201 = vshrl.u32 %v2200, 7
    %v2202 = vsub.s32 0, %v2201
    %v2203 = vrot.slane %v2198, %v2202
    %v2205 = vadd.f32 %v2190, %v2203
    %v2206 = vadd.f32 %v2195, %v2203
    %v2207 = vadd.f32 %v863, %v2205
    %v2208 = vadd.f32 %v1353, %v2206
    %v2209 = vld [vmem:[#allocation14] sm:$0x1]
    %v2210 = vld [vmem:[#allocation16] sm:$0x1]
    %v2211 = vsel %vm1378, %v2207, 0.0
    %2212 = vadd.xlane.f32.xlu0 %v2211
    %v2213 = vpop.xlane.xlu0 %2212
    %v2214 = vsel %vm1378, %v2208, 0.0
    %2215 = vadd.xlane.f32.xlu0 %v2214
    %v2216 = vpop.xlane.xlu0 %2215
    %v2217 = vrcp.pop 16.0
    %v2218 = vmul.f32 %v2213, %v2217
    %v2219 = vmul.f32 %v2216, %v2217
    %v2220 = vsub.f32 %v2207, %v2218
    %v2221 = vsub.f32 %v2208, %v2219
    %v2222 = vmul.f32 %v2220, %v2220
    %v2223 = vmul.f32 %v2221, %v2221
    %v2224 = vsel %vm1378, %v2222, 0.0
    %2225 = vadd.xlane.f32.xlu0 %v2224
    %v2226 = vpop.xlane.xlu0 %2225
    %v2227 = vsel %vm1378, %v2223, 0.0
    %2228 = vadd.xlane.f32.xlu0 %v2227
    %v2229 = vpop.xlane.xlu0 %2228
    %v2230 = vmul.f32 %v2226, %v2217
    %v2231 = vmul.f32 %v2229, %v2217
    %v2232 = vadd.f32 %v2230, 1e-05
    %v2233 = vadd.f32 %v2231, 1e-05
    %v2234 = vrsqrt.pop %v2232
    %v2235 = vrsqrt.pop %v2233
    %v2236 = vmul.f32 %v2220, %v2234
    %v2237 = vmul.f32 %v2221, %v2235
    %v2239 = vlaneseq
    %v2240 = vshrl.u32 %v2239, 7
    %v2241 = vsub.s32 0, %v2240
    %v2242 = vrot.slane %v2209, %v2241
    %v2244 = vmul.f32 %v2236, %v2242
    %v2245 = vmul.f32 %v2237, %v2242
    %v2247 = vlaneseq
    %v2248 = vshrl.u32 %v2247, 7
    %v2249 = vsub.s32 0, %v2248
    %v2250 = vrot.slane %v2210, %v2249
    %v2252 = vadd.f32 %v2244, %v2250
    %v2253 = vadd.f32 %v2245, %v2250
    %v2254 = vpack.c.bf16 %v2253, %v2252
    %v2255 = vld [vmem:[#allocation17] sm:$0xff]
    %v2256 = vld [vmem:[#allocation17 + $0x8] sm:$0xff]
    %v2257 = vld [vmem:[#allocation17 + $0x10] sm:$0xff]
    %v2258 = vld [vmem:[#allocation17 + $0x18] sm:$0xff]
    %v2259 = vld [vmem:[#allocation17 + $0x20] sm:$0xff]
    %v2260 = vld [vmem:[#allocation17 + $0x28] sm:$0xff]
    %v2261 = vld [vmem:[#allocation17 + $0x30] sm:$0xff]
    %v2262 = vld [vmem:[#allocation17 + $0x38] sm:$0xff]
    %v2263 = vld [vmem:[#allocation17 + $0x40] sm:$0xff]
    %v2264 = vld [vmem:[#allocation17 + $0x48] sm:$0xff]
    %v2265 = vld [vmem:[#allocation17 + $0x50] sm:$0xff]
    %v2266 = vld [vmem:[#allocation17 + $0x58] sm:$0xff]
    %v2267 = vld [vmem:[#allocation17 + $0x60] sm:$0xff]
    %v2268 = vld [vmem:[#allocation17 + $0x68] sm:$0xff]
    %v2269 = vld [vmem:[#allocation17 + $0x70] sm:$0xff]
    %v2270 = vld [vmem:[#allocation17 + $0x78] sm:$0xff]
    %v2271 = vld [vmem:[#allocation19] sm:$0xff]
    %v2272 = vld [vmem:[#allocation19 + $0x8] sm:$0xff]
    %v2275 = vlaneseq
    %v2276 = vshrl.u32 %v2275, 7
    %v2277 = vsub.s32 0, %v2276
    %v2278 = vrot.slane %v2271, %v2277
    %v2279 = vlaneseq
    %v2280 = vshrl.u32 %v2279, 7
    %v2281 = vsub.s32 1, %v2280
    %v2282 = vrot.slane %v2271, %v2281
    %v2283 = vlaneseq
    %v2284 = vshrl.u32 %v2283, 7
    %v2285 = vsub.s32 2, %v2284
    %v2286 = vrot.slane %v2271, %v2285
    %v2287 = vlaneseq
    %v2288 = vshrl.u32 %v2287, 7
    %v2289 = vsub.s32 3, %v2288
    %v2290 = vrot.slane %v2271, %v2289
    %v2291 = vlaneseq
    %v2292 = vshrl.u32 %v2291, 7
    %v2293 = vsub.s32 4, %v2292
    %v2294 = vrot.slane %v2271, %v2293
    %v2295 = vlaneseq
    %v2296 = vshrl.u32 %v2295, 7
    %v2297 = vsub.s32 5, %v2296
    %v2298 = vrot.slane %v2271, %v2297
    %v2299 = vlaneseq
    %v2300 = vshrl.u32 %v2299, 7
    %v2301 = vsub.s32 6, %v2300
    %v2302 = vrot.slane %v2271, %v2301
    %v2303 = vlaneseq
    %v2304 = vshrl.u32 %v2303, 7
    %v2305 = vsub.s32 7, %v2304
    %v2306 = vrot.slane %v2271, %v2305
    %v2307 = vlaneseq
    %v2308 = vshrl.u32 %v2307, 7
    %v2309 = vsub.s32 0, %v2308
    %v2310 = vrot.slane %v2272, %v2309
    %v2311 = vlaneseq
    %v2312 = vshrl.u32 %v2311, 7
    %v2313 = vsub.s32 1, %v2312
    %v2314 = vrot.slane %v2272, %v2313
    %v2315 = vlaneseq
    %v2316 = vshrl.u32 %v2315, 7
    %v2317 = vsub.s32 2, %v2316
    %v2318 = vrot.slane %v2272, %v2317
    %v2319 = vlaneseq
    %v2320 = vshrl.u32 %v2319, 7
    %v2321 = vsub.s32 3, %v2320
    %v2322 = vrot.slane %v2272, %v2321
    %v2323 = vlaneseq
    %v2324 = vshrl.u32 %v2323, 7
    %v2325 = vsub.s32 4, %v2324
    %v2326 = vrot.slane %v2272, %v2325
    %v2327 = vlaneseq
    %v2328 = vshrl.u32 %v2327, 7
    %v2329 = vsub.s32 5, %v2328
    %v2330 = vrot.slane %v2272, %v2329
    %v2331 = vlaneseq
    %v2332 = vshrl.u32 %v2331, 7
    %v2333 = vsub.s32 6, %v2332
    %v2334 = vrot.slane %v2272, %v2333
    %v2335 = vlaneseq
    %v2336 = vshrl.u32 %v2335, 7
    %v2337 = vsub.s32 7, %v2336
    %v2338 = vrot.slane %v2272, %v2337
    %v2371 = vunpack.c.l.b16 %v2255
    %v2372 = vunpack.c.h.b16 %v2255
    %v2373 = vunpack.c.l.b16 %v2256
    %v2374 = vunpack.c.h.b16 %v2256
    %v2375 = vunpack.c.l.b16 %v2257
    %v2376 = vunpack.c.h.b16 %v2257
    %v2377 = vunpack.c.l.b16 %v2258
    %v2378 = vunpack.c.h.b16 %v2258
    %v2379 = vunpack.c.l.b16 %v2259
    %v2380 = vunpack.c.h.b16 %v2259
    %v2381 = vunpack.c.l.b16 %v2260
    %v2382 = vunpack.c.h.b16 %v2260
    %v2383 = vunpack.c.l.b16 %v2261
    %v2384 = vunpack.c.h.b16 %v2261
    %v2385 = vunpack.c.l.b16 %v2262
    %v2386 = vunpack.c.h.b16 %v2262
    %v2387 = vunpack.c.l.b16 %v2263
    %v2388 = vunpack.c.h.b16 %v2263
    %v2389 = vunpack.c.l.b16 %v2264
    %v2390 = vunpack.c.h.b16 %v2264
    %v2391 = vunpack.c.l.b16 %v2265
    %v2392 = vunpack.c.h.b16 %v2265
    %v2393 = vunpack.c.l.b16 %v2266
    %v2394 = vunpack.c.h.b16 %v2266
    %v2395 = vunpack.c.l.b16 %v2267
    %v2396 = vunpack.c.h.b16 %v2267
    %v2397 = vunpack.c.l.b16 %v2268
    %v2398 = vunpack.c.h.b16 %v2268
    %v2399 = vunpack.c.l.b16 %v2269
    %v2400 = vunpack.c.h.b16 %v2269
    %v2401 = vunpack.c.l.b16 %v2270
    %v2402 = vunpack.c.h.b16 %v2270
    %v2403 = vpack.c.b16 %v2387, %v2371
    %v2404 = vpack.c.b16 %v2388, %v2372
    %v2405 = vpack.c.b16 %v2389, %v2373
    %v2406 = vpack.c.b16 %v2390, %v2374
    %v2407 = vpack.c.b16 %v2391, %v2375
    %v2408 = vpack.c.b16 %v2392, %v2376
    %v2409 = vpack.c.b16 %v2393, %v2377
    %v2410 = vpack.c.b16 %v2394, %v2378
    %v2411 = vpack.c.b16 %v2395, %v2379
    %v2412 = vpack.c.b16 %v2396, %v2380
    %v2413 = vpack.c.b16 %v2397, %v2381
    %v2414 = vpack.c.b16 %v2398, %v2382
    %v2415 = vpack.c.b16 %v2399, %v2383
    %v2416 = vpack.c.b16 %v2400, %v2384
    %v2417 = vpack.c.b16 %v2401, %v2385
    %v2418 = vpack.c.b16 %v2402, %v2386
    %v2436 = vsel %vm1378, %v2254, 0
    %2438 = vmatprep.subr.bf16.mxu0 %v2404
    %2439 = vmatpush1.bf16.msra.mxu0 %v2403
    %2440 = vmatprep.subr.bf16.mxu0 0
    %2441 = vmatpush1.bf16.msra.mxu0 0
    %2442 = vmatprep.subr.bf16.mxu0 0
    %2443 = vmatpush1.bf16.msra.mxu0 0
    %2444 = vmatprep.subr.bf16.mxu0 0
    %2445 = vmatpush1.bf16.msra.mxu0 0
    %2446 = vmatprep.subr.bf16.mxu0 0
    %2447 = vmatpush1.bf16.msra.mxu0 0
    %2448 = vmatprep.subr.bf16.mxu0 0
    %2449 = vmatpush1.bf16.msra.mxu0 0
    %2450 = vmatprep.subr.bf16.mxu0 0
    %2451 = vmatpush1.bf16.msra.mxu0 0
    %2452 = vmatprep.subr.bf16.mxu0 0
    %2453 = vmatpush1.bf16.msra.mxu0 0
    %2454 = vmatprep.subr.bf16.mxu0 0
    %2455 = vmatpush1.bf16.msra.mxu0 0
    %2456 = vmatprep.subr.bf16.mxu0 0
    %2457 = vmatpush1.bf16.msra.mxu0 0
    %2458 = vmatprep.subr.bf16.mxu0 0
    %2459 = vmatpush1.bf16.msra.mxu0 0
    %2460 = vmatprep.subr.bf16.mxu0 0
    %2461 = vmatpush1.bf16.msra.mxu0 0
    %2462 = vmatprep.subr.bf16.mxu0 0
    %2463 = vmatpush1.bf16.msra.mxu0 0
    %2464 = vmatprep.subr.bf16.mxu0 0
    %2465 = vmatpush1.bf16.msra.mxu0 0
    %2466 = vmatprep.subr.bf16.mxu0 0
    %2467 = vmatpush1.bf16.msra.mxu0 0
    %2468 = vmatprep.subr.bf16.mxu0 0
    %2469 = vmatpush1.bf16.msra.mxu0 0
    %2470 = vmatprep.mubr.bf16.mxu0 0
    %2471 = vmatmul.mubr.bf16.gmra.mrb[0].mxu0 %v2436
    %v2472 = vpop.f32.mrb[0].mxu0
    %v2473 = vadd.f32 %v2278, %v2472
    %v2474 = vpop.f32.mrb[0].mxu0
    %v2475 = vadd.f32 %v2282, %v2474
    %v2476 = vpop.f32.mrb[0].mxu0
    %v2477 = vadd.f32 %v2278, %v2476
    %v2478 = vpop.f32.mrb[0].mxu0
    %v2479 = vadd.f32 %v2282, %v2478
    %2480 = vdwg.mxu0
    %2481 = vmatprep.subr.bf16.mxu0 %v2406
    %2482 = vmatpush1.bf16.msra.mxu0 %v2405
    %2483 = vmatprep.subr.bf16.mxu0 0
    %2484 = vmatpush1.bf16.msra.mxu0 0
    %2485 = vmatprep.subr.bf16.mxu0 0
    %2486 = vmatpush1.bf16.msra.mxu0 0
    %2487 = vmatprep.subr.bf16.mxu0 0
    %2488 = vmatpush1.bf16.msra.mxu0 0
    %2489 = vmatprep.subr.bf16.mxu0 0
    %2490 = vmatpush1.bf16.msra.mxu0 0
    %2491 = vmatprep.subr.bf16.mxu0 0
    %2492 = vmatpush1.bf16.msra.mxu0 0
    %2493 = vmatprep.subr.bf16.mxu0 0
    %2494 = vmatpush1.bf16.msra.mxu0 0
    %2495 = vmatprep.subr.bf16.mxu0 0
    %2496 = vmatpush1.bf16.msra.mxu0 0
    %2497 = vmatprep.subr.bf16.mxu0 0
    %2498 = vmatpush1.bf16.msra.mxu0 0
    %2499 = vmatprep.subr.bf16.mxu0 0
    %2500 = vmatpush1.bf16.msra.mxu0 0
    %2501 = vmatprep.subr.bf16.mxu0 0
    %2502 = vmatpush1.bf16.msra.mxu0 0
    %2503 = vmatprep.subr.bf16.mxu0 0
    %2504 = vmatpush1.bf16.msra.mxu0 0
    %2505 = vmatprep.subr.bf16.mxu0 0
    %2506 = vmatpush1.bf16.msra.mxu0 0
    %2507 = vmatprep.subr.bf16.mxu0 0
    %2508 = vmatpush1.bf16.msra.mxu0 0
    %2509 = vmatprep.subr.bf16.mxu0 0
    %2510 = vmatpush1.bf16.msra.mxu0 0
    %2511 = vmatprep.subr.bf16.mxu0 0
    %2512 = vmatpush1.bf16.msra.mxu0 0
    %2513 = vmatprep.mubr.bf16.mxu0 0
    %2514 = vmatmul.mubr.bf16.gmra.mrb[0].mxu0 %v2436
    %v2515 = vpop.f32.mrb[0].mxu0
    %v2516 = vadd.f32 %v2286, %v2515
    %v2517 = vpop.f32.mrb[0].mxu0
    %v2518 = vadd.f32 %v2290, %v2517
    %v2519 = vpop.f32.mrb[0].mxu0
    %v2520 = vadd.f32 %v2286, %v2519
    %v2521 = vpop.f32.mrb[0].mxu0
    %v2522 = vadd.f32 %v2290, %v2521
    %2523 = vdwg.mxu0
    %2524 = vmatprep.subr.bf16.mxu0 %v2408
    %2525 = vmatpush1.bf16.msra.mxu0 %v2407
    %2526 = vmatprep.subr.bf16.mxu0 0
    %2527 = vmatpush1.bf16.msra.mxu0 0
    %2528 = vmatprep.subr.bf16.mxu0 0
    %2529 = vmatpush1.bf16.msra.mxu0 0
    %2530 = vmatprep.subr.bf16.mxu0 0
    %2531 = vmatpush1.bf16.msra.mxu0 0
    %2532 = vmatprep.subr.bf16.mxu0 0
    %2533 = vmatpush1.bf16.msra.mxu0 0
    %2534 = vmatprep.subr.bf16.mxu0 0
    %2535 = vmatpush1.bf16.msra.mxu0 0
    %2536 = vmatprep.subr.bf16.mxu0 0
    %2537 = vmatpush1.bf16.msra.mxu0 0
    %2538 = vmatprep.subr.bf16.mxu0 0
    %2539 = vmatpush1.bf16.msra.mxu0 0
    %2540 = vmatprep.subr.bf16.mxu0 0
    %2541 = vmatpush1.bf16.msra.mxu0 0
    %2542 = vmatprep.subr.bf16.mxu0 0
    %2543 = vmatpush1.bf16.msra.mxu0 0
    %2544 = vmatprep.subr.bf16.mxu0 0
    %2545 = vmatpush1.bf16.msra.mxu0 0
    %2546 = vmatprep.subr.bf16.mxu0 0
    %2547 = vmatpush1.bf16.msra.mxu0 0
    %2548 = vmatprep.subr.bf16.mxu0 0
    %2549 = vmatpush1.bf16.msra.mxu0 0
    %2550 = vmatprep.subr.bf16.mxu0 0
    %2551 = vmatpush1.bf16.msra.mxu0 0
    %2552 = vmatprep.subr.bf16.mxu0 0
    %2553 = vmatpush1.bf16.msra.mxu0 0
    %2554 = vmatprep.subr.bf16.mxu0 0
    %2555 = vmatpush1.bf16.msra.mxu0 0
    %2556 = vmatprep.mubr.bf16.mxu0 0
    %2557 = vmatmul.mubr.bf16.gmra.mrb[0].mxu0 %v2436
    %v2558 = vpop.f32.mrb[0].mxu0
    %v2559 = vadd.f32 %v2294, %v2558
    %v2560 = vpop.f32.mrb[0].mxu0
    %v2561 = vadd.f32 %v2298, %v2560
    %v2562 = vpop.f32.mrb[0].mxu0
    %v2563 = vadd.f32 %v2294, %v2562
    %v2564 = vpop.f32.mrb[0].mxu0
    %v2565 = vadd.f32 %v2298, %v2564
    %2566 = vdwg.mxu0
    %2567 = vmatprep.subr.bf16.mxu0 %v2410
    %2568 = vmatpush1.bf16.msra.mxu0 %v2409
    %2569 = vmatprep.subr.bf16.mxu0 0
    %2570 = vmatpush1.bf16.msra.mxu0 0
    %2571 = vmatprep.subr.bf16.mxu0 0
    %2572 = vmatpush1.bf16.msra.mxu0 0
    %2573 = vmatprep.subr.bf16.mxu0 0
    %2574 = vmatpush1.bf16.msra.mxu0 0
    %2575 = vmatprep.subr.bf16.mxu0 0
    %2576 = vmatpush1.bf16.msra.mxu0 0
    %2577 = vmatprep.subr.bf16.mxu0 0
    %2578 = vmatpush1.bf16.msra.mxu0 0
    %2579 = vmatprep.subr.bf16.mxu0 0
    %2580 = vmatpush1.bf16.msra.mxu0 0
    %2581 = vmatprep.subr.bf16.mxu0 0
    %2582 = vmatpush1.bf16.msra.mxu0 0
    %2583 = vmatprep.subr.bf16.mxu0 0
    %2584 = vmatpush1.bf16.msra.mxu0 0
    %2585 = vmatprep.subr.bf16.mxu0 0
    %2586 = vmatpush1.bf16.msra.mxu0 0
    %2587 = vmatprep.subr.bf16.mxu0 0
    %2588 = vmatpush1.bf16.msra.mxu0 0
    %2589 = vmatprep.subr.bf16.mxu0 0
    %2590 = vmatpush1.bf16.msra.mxu0 0
    %2591 = vmatprep.subr.bf16.mxu0 0
    %2592 = vmatpush1.bf16.msra.mxu0 0
    %2593 = vmatprep.subr.bf16.mxu0 0
    %2594 = vmatpush1.bf16.msra.mxu0 0
    %2595 = vmatprep.subr.bf16.mxu0 0
    %2596 = vmatpush1.bf16.msra.mxu0 0
    %2597 = vmatprep.subr.bf16.mxu0 0
    %2598 = vmatpush1.bf16.msra.mxu0 0
    %2599 = vmatprep.mubr.bf16.mxu0 0
    %2600 = vmatmul.mubr.bf16.gmra.mrb[0].mxu0 %v2436
    %v2601 = vpop.f32.mrb[0].mxu0
    %v2602 = vadd.f32 %v2302, %v2601
    %v2603 = vpop.f32.mrb[0].mxu0
    %v2604 = vadd.f32 %v2306, %v2603
    %v2605 = vpop.f32.mrb[0].mxu0
    %v2606 = vadd.f32 %v2302, %v2605
    %v2607 = vpop.f32.mrb[0].mxu0
    %v2608 = vadd.f32 %v2306, %v2607
    %2609 = vdwg.mxu0
    %2610 = vmatprep.subr.bf16.mxu0 %v2412
    %2611 = vmatpush1.bf16.msra.mxu0 %v2411
    %2612 = vmatprep.subr.bf16.mxu0 0
    %2613 = vmatpush1.bf16.msra.mxu0 0
    %2614 = vmatprep.subr.bf16.mxu0 0
    %2615 = vmatpush1.bf16.msra.mxu0 0
    %2616 = vmatprep.subr.bf16.mxu0 0
    %2617 = vmatpush1.bf16.msra.mxu0 0
    %2618 = vmatprep.subr.bf16.mxu0 0
    %2619 = vmatpush1.bf16.msra.mxu0 0
    %2620 = vmatprep.subr.bf16.mxu0 0
    %2621 = vmatpush1.bf16.msra.mxu0 0
    %2622 = vmatprep.subr.bf16.mxu0 0
    %2623 = vmatpush1.bf16.msra.mxu0 0
    %2624 = vmatprep.subr.bf16.mxu0 0
    %2625 = vmatpush1.bf16.msra.mxu0 0
    %2626 = vmatprep.subr.bf16.mxu0 0
    %2627 = vmatpush1.bf16.msra.mxu0 0
    %2628 = vmatprep.subr.bf16.mxu0 0
    %2629 = vmatpush1.bf16.msra.mxu0 0
    %2630 = vmatprep.subr.bf16.mxu0 0
    %2631 = vmatpush1.bf16.msra.mxu0 0
    %2632 = vmatprep.subr.bf16.mxu0 0
    %2633 = vmatpush1.bf16.msra.mxu0 0
    %2634 = vmatprep.subr.bf16.mxu0 0
    %2635 = vmatpush1.bf16.msra.mxu0 0
    %2636 = vmatprep.subr.bf16.mxu0 0
    %2637 = vmatpush1.bf16.msra.mxu0 0
    %2638 = vmatprep.subr.bf16.mxu0 0
    %2639 = vmatpush1.bf16.msra.mxu0 0
    %2640 = vmatprep.subr.bf16.mxu0 0
    %2641 = vmatpush1.bf16.msra.mxu0 0
    %2642 = vmatprep.mubr.bf16.mxu0 0
    %2643 = vmatmul.mubr.bf16.gmra.mrb[0].mxu0 %v2436
    %v2644 = vpop.f32.mrb[0].mxu0
    %v2645 = vadd.f32 %v2310, %v2644
    %v2646 = vpop.f32.mrb[0].mxu0
    %v2647 = vadd.f32 %v2314, %v2646
    %v2648 = vpop.f32.mrb[0].mxu0
    %v2649 = vadd.f32 %v2310, %v2648
    %v2650 = vpop.f32.mrb[0].mxu0
    %v2651 = vadd.f32 %v2314, %v2650
    %2652 = vdwg.mxu0
    %2653 = vmatprep.subr.bf16.mxu0 %v2414
    %2654 = vmatpush1.bf16.msra.mxu0 %v2413
    %2655 = vmatprep.subr.bf16.mxu0 0
    %2656 = vmatpush1.bf16.msra.mxu0 0
    %2657 = vmatprep.subr.bf16.mxu0 0
    %2658 = vmatpush1.bf16.msra.mxu0 0
    %2659 = vmatprep.subr.bf16.mxu0 0
    %2660 = vmatpush1.bf16.msra.mxu0 0
    %2661 = vmatprep.subr.bf16.mxu0 0
    %2662 = vmatpush1.bf16.msra.mxu0 0
    %2663 = vmatprep.subr.bf16.mxu0 0
    %2664 = vmatpush1.bf16.msra.mxu0 0
    %2665 = vmatprep.subr.bf16.mxu0 0
    %2666 = vmatpush1.bf16.msra.mxu0 0
    %2667 = vmatprep.subr.bf16.mxu0 0
    %2668 = vmatpush1.bf16.msra.mxu0 0
    %2669 = vmatprep.subr.bf16.mxu0 0
    %2670 = vmatpush1.bf16.msra.mxu0 0
    %2671 = vmatprep.subr.bf16.mxu0 0
    %2672 = vmatpush1.bf16.msra.mxu0 0
    %2673 = vmatprep.subr.bf16.mxu0 0
    %2674 = vmatpush1.bf16.msra.mxu0 0
    %2675 = vmatprep.subr.bf16.mxu0 0
    %2676 = vmatpush1.bf16.msra.mxu0 0
    %2677 = vmatprep.subr.bf16.mxu0 0
    %2678 = vmatpush1.bf16.msra.mxu0 0
    %2679 = vmatprep.subr.bf16.mxu0 0
    %2680 = vmatpush1.bf16.msra.mxu0 0
    %2681 = vmatprep.subr.bf16.mxu0 0
    %2682 = vmatpush1.bf16.msra.mxu0 0
    %2683 = vmatprep.subr.bf16.mxu0 0
    %2684 = vmatpush1.bf16.msra.mxu0 0
    %2685 = vmatprep.mubr.bf16.mxu0 0
    %2686 = vmatmul.mubr.bf16.gmra.mrb[0].mxu0 %v2436
    %v2687 = vpop.f32.mrb[0].mxu0
    %v2688 = vadd.f32 %v2318, %v2687
    %v2689 = vpop.f32.mrb[0].mxu0
    %v2690 = vadd.f32 %v2322, %v2689
    %v2691 = vpop.f32.mrb[0].mxu0
    %v2692 = vadd.f32 %v2318, %v2691
    %v2693 = vpop.f32.mrb[0].mxu0
    %v2694 = vadd.f32 %v2322, %v2693
    %2695 = vdwg.mxu0
    %2696 = vmatprep.subr.bf16.mxu0 %v2416
    %2697 = vmatpush1.bf16.msra.mxu0 %v2415
    %2698 = vmatprep.subr.bf16.mxu0 0
    %2699 = vmatpush1.bf16.msra.mxu0 0
    %2700 = vmatprep.subr.bf16.mxu0 0
    %2701 = vmatpush1.bf16.msra.mxu0 0
    %2702 = vmatprep.subr.bf16.mxu0 0
    %2703 = vmatpush1.bf16.msra.mxu0 0
    %2704 = vmatprep.subr.bf16.mxu0 0
    %2705 = vmatpush1.bf16.msra.mxu0 0
    %2706 = vmatprep.subr.bf16.mxu0 0
    %2707 = vmatpush1.bf16.msra.mxu0 0
    %2708 = vmatprep.subr.bf16.mxu0 0
    %2709 = vmatpush1.bf16.msra.mxu0 0
    %2710 = vmatprep.subr.bf16.mxu0 0
    %2711 = vmatpush1.bf16.msra.mxu0 0
    %2712 = vmatprep.subr.bf16.mxu0 0
    %2713 = vmatpush1.bf16.msra.mxu0 0
    %2714 = vmatprep.subr.bf16.mxu0 0
    %2715 = vmatpush1.bf16.msra.mxu0 0
    %2716 = vmatprep.subr.bf16.mxu0 0
    %2717 = vmatpush1.bf16.msra.mxu0 0
    %2718 = vmatprep.subr.bf16.mxu0 0
    %2719 = vmatpush1.bf16.msra.mxu0 0
    %2720 = vmatprep.subr.bf16.mxu0 0
    %2721 = vmatpush1.bf16.msra.mxu0 0
    %2722 = vmatprep.subr.bf16.mxu0 0
    %2723 = vmatpush1.bf16.msra.mxu0 0
    %2724 = vmatprep.subr.bf16.mxu0 0
    %2725 = vmatpush1.bf16.msra.mxu0 0
    %2726 = vmatprep.subr.bf16.mxu0 0
    %2727 = vmatpush1.bf16.msra.mxu0 0
    %2728 = vmatprep.mubr.bf16.mxu0 0
    %2729 = vmatmul.mubr.bf16.gmra.mrb[0].mxu0 %v2436
    %v2730 = vpop.f32.mrb[0].mxu0
    %v2731 = vadd.f32 %v2326, %v2730
    %v2732 = vpop.f32.mrb[0].mxu0
    %v2733 = vadd.f32 %v2330, %v2732
    %v2734 = vpop.f32.mrb[0].mxu0
    %v2735 = vadd.f32 %v2326, %v2734
    %v2736 = vpop.f32.mrb[0].mxu0
    %v2737 = vadd.f32 %v2330, %v2736
    %2738 = vdwg.mxu0
    %2739 = vmatprep.subr.bf16.mxu0 %v2418
    %2740 = vmatpush1.bf16.msra.mxu0 %v2417
    %2741 = vmatprep.subr.bf16.mxu0 0
    %2742 = vmatpush1.bf16.msra.mxu0 0
    %2743 = vmatprep.subr.bf16.mxu0 0
    %2744 = vmatpush1.bf16.msra.mxu0 0
    %2745 = vmatprep.subr.bf16.mxu0 0
    %2746 = vmatpush1.bf16.msra.mxu0 0
    %2747 = vmatprep.subr.bf16.mxu0 0
    %2748 = vmatpush1.bf16.msra.mxu0 0
    %2749 = vmatprep.subr.bf16.mxu0 0
    %2750 = vmatpush1.bf16.msra.mxu0 0
    %2751 = vmatprep.subr.bf16.mxu0 0
    %2752 = vmatpush1.bf16.msra.mxu0 0
    %2753 = vmatprep.subr.bf16.mxu0 0
    %2754 = vmatpush1.bf16.msra.mxu0 0
    %2755 = vmatprep.subr.bf16.mxu0 0
    %2756 = vmatpush1.bf16.msra.mxu0 0
    %2757 = vmatprep.subr.bf16.mxu0 0
    %2758 = vmatpush1.bf16.msra.mxu0 0
    %2759 = vmatprep.subr.bf16.mxu0 0
    %2760 = vmatpush1.bf16.msra.mxu0 0
    %2761 = vmatprep.subr.bf16.mxu0 0
    %2762 = vmatpush1.bf16.msra.mxu0 0
    %2763 = vmatprep.subr.bf16.mxu0 0
    %2764 = vmatpush1.bf16.msra.mxu0 0
    %2765 = vmatprep.subr.bf16.mxu0 0
    %2766 = vmatpush1.bf16.msra.mxu0 0
    %2767 = vmatprep.subr.bf16.mxu0 0
    %2768 = vmatpush1.bf16.msra.mxu0 0
    %2769 = vmatprep.subr.bf16.mxu0 0
    %2770 = vmatpush1.bf16.msra.mxu0 0
    %2771 = vmatprep.mubr.bf16.mxu0 0
    %2772 = vmatmul.mubr.bf16.gmra.mrb[0].mxu0 %v2436
    %v2773 = vpop.f32.mrb[0].mxu0
    %v2774 = vadd.f32 %v2334, %v2773
    %v2775 = vpop.f32.mrb[0].mxu0
    %v2776 = vadd.f32 %v2338, %v2775
    %v2777 = vpop.f32.mrb[0].mxu0
    %v2778 = vadd.f32 %v2334, %v2777
    %v2779 = vpop.f32.mrb[0].mxu0
    %v2780 = vadd.f32 %v2338, %v2779
    %2781 = vdwg.mxu0
    %v2782 = vmax.f32 %v2473, 0.0
    %v2783 = vmax.f32 %v2475, 0.0
    %v2784 = vmax.f32 %v2516, 0.0
    %v2785 = vmax.f32 %v2518, 0.0
    %v2786 = vmax.f32 %v2559, 0.0
    %v2787 = vmax.f32 %v2561, 0.0
    %v2788 = vmax.f32 %v2602, 0.0
    %v2789 = vmax.f32 %v2604, 0.0
    %v2790 = vmax.f32 %v2645, 0.0
    %v2791 = vmax.f32 %v2647, 0.0
    %v2792 = vmax.f32 %v2688, 0.0
    %v2793 = vmax.f32 %v2690, 0.0
    %v2794 = vmax.f32 %v2731, 0.0
    %v2795 = vmax.f32 %v2733, 0.0
    %v2796 = vmax.f32 %v2774, 0.0
    %v2797 = vmax.f32 %v2776, 0.0
    %v2798 = vmax.f32 %v2477, 0.0
    %v2799 = vmax.f32 %v2479, 0.0
    %v2800 = vmax.f32 %v2520, 0.0
    %v2801 = vmax.f32 %v2522, 0.0
    %v2802 = vmax.f32 %v2563, 0.0
    %v2803 = vmax.f32 %v2565, 0.0
    %v2804 = vmax.f32 %v2606, 0.0
    %v2805 = vmax.f32 %v2608, 0.0
    %v2806 = vmax.f32 %v2649, 0.0
    %v2807 = vmax.f32 %v2651, 0.0
    %v2808 = vmax.f32 %v2692, 0.0
    %v2809 = vmax.f32 %v2694, 0.0
    %v2810 = vmax.f32 %v2735, 0.0
    %v2811 = vmax.f32 %v2737, 0.0
    %v2812 = vmax.f32 %v2778, 0.0
    %v2813 = vmax.f32 %v2780, 0.0
    %v2814 = vpack.c.bf16 %v2798, %v2782
    %v2815 = vpack.c.bf16 %v2799, %v2783
    %v2816 = vpack.c.bf16 %v2800, %v2784
    %v2817 = vpack.c.bf16 %v2801, %v2785
    %v2818 = vpack.c.bf16 %v2802, %v2786
    %v2819 = vpack.c.bf16 %v2803, %v2787
    %v2820 = vpack.c.bf16 %v2804, %v2788
    %v2821 = vpack.c.bf16 %v2805, %v2789
    %v2822 = vpack.c.bf16 %v2806, %v2790
    %v2823 = vpack.c.bf16 %v2807, %v2791
    %v2824 = vpack.c.bf16 %v2808, %v2792
    %v2825 = vpack.c.bf16 %v2809, %v2793
    %v2826 = vpack.c.bf16 %v2810, %v2794
    %v2827 = vpack.c.bf16 %v2811, %v2795
    %v2828 = vpack.c.bf16 %v2812, %v2796
    %v2829 = vpack.c.bf16 %v2813, %v2797
    %v2830 = vld [vmem:[#allocation20] sm:$0xff]
    %v2831 = vld [vmem:[#allocation20 + $0x8] sm:$0xff]
    %v2832 = vld [vmem:[#allocation20 + $0x10] sm:$0xff]
    %v2833 = vld [vmem:[#allocation20 + $0x18] sm:$0xff]
    %v2834 = vld [vmem:[#allocation20 + $0x20] sm:$0xff]
    %v2835 = vld [vmem:[#allocation20 + $0x28] sm:$0xff]
    %v2836 = vld [vmem:[#allocation20 + $0x30] sm:$0xff]
    %v2837 = vld [vmem:[#allocation20 + $0x38] sm:$0xff]
    %v2838 = vld [vmem:[#allocation20 + $0x40] sm:$0xff]
    %v2839 = vld [vmem:[#allocation20 + $0x48] sm:$0xff]
    %v2840 = vld [vmem:[#allocation20 + $0x50] sm:$0xff]
    %v2841 = vld [vmem:[#allocation20 + $0x58] sm:$0xff]
    %v2842 = vld [vmem:[#allocation20 + $0x60] sm:$0xff]
    %v2843 = vld [vmem:[#allocation20 + $0x68] sm:$0xff]
    %v2844 = vld [vmem:[#allocation20 + $0x70] sm:$0xff]
    %v2845 = vld [vmem:[#allocation20 + $0x78] sm:$0xff]
    %v2846 = vld [vmem:[#allocation22] sm:$0x1]
    %v2848 = vlaneseq
    %v2849 = vshrl.u32 %v2848, 7
    %v2850 = vsub.s32 0, %v2849
    %v2851 = vrot.slane %v2846, %v2850
    %v2869 = vunpack.c.l.b16 %v2830
    %v2870 = vunpack.c.h.b16 %v2830
    %v2871 = vunpack.c.l.b16 %v2831
    %v2872 = vunpack.c.h.b16 %v2831
    %v2873 = vunpack.c.l.b16 %v2832
    %v2874 = vunpack.c.h.b16 %v2832
    %v2875 = vunpack.c.l.b16 %v2833
    %v2876 = vunpack.c.h.b16 %v2833
    %v2877 = vunpack.c.l.b16 %v2834
    %v2878 = vunpack.c.h.b16 %v2834
    %v2879 = vunpack.c.l.b16 %v2835
    %v2880 = vunpack.c.h.b16 %v2835
    %v2881 = vunpack.c.l.b16 %v2836
    %v2882 = vunpack.c.h.b16 %v2836
    %v2883 = vunpack.c.l.b16 %v2837
    %v2884 = vunpack.c.h.b16 %v2837
    %v2885 = vunpack.c.l.b16 %v2838
    %v2886 = vunpack.c.h.b16 %v2838
    %v2887 = vunpack.c.l.b16 %v2839
    %v2888 = vunpack.c.h.b16 %v2839
    %v2889 = vunpack.c.l.b16 %v2840
    %v2890 = vunpack.c.h.b16 %v2840
    %v2891 = vunpack.c.l.b16 %v2841
    %v2892 = vunpack.c.h.b16 %v2841
    %v2893 = vunpack.c.l.b16 %v2842
    %v2894 = vunpack.c.h.b16 %v2842
    %v2895 = vunpack.c.l.b16 %v2843
    %v2896 = vunpack.c.h.b16 %v2843
    %v2897 = vunpack.c.l.b16 %v2844
    %v2898 = vunpack.c.h.b16 %v2844
    %v2899 = vunpack.c.l.b16 %v2845
    %v2900 = vunpack.c.h.b16 %v2845
    %v2901 = vpack.c.b16 %v2885, %v2869
    %v2902 = vpack.c.b16 %v2886, %v2870
    %v2903 = vpack.c.b16 %v2887, %v2871
    %v2904 = vpack.c.b16 %v2888, %v2872
    %v2905 = vpack.c.b16 %v2889, %v2873
    %v2906 = vpack.c.b16 %v2890, %v2874
    %v2907 = vpack.c.b16 %v2891, %v2875
    %v2908 = vpack.c.b16 %v2892, %v2876
    %v2909 = vpack.c.b16 %v2893, %v2877
    %v2910 = vpack.c.b16 %v2894, %v2878
    %v2911 = vpack.c.b16 %v2895, %v2879
    %v2912 = vpack.c.b16 %v2896, %v2880
    %v2913 = vpack.c.b16 %v2897, %v2881
    %v2914 = vpack.c.b16 %v2898, %v2882
    %v2915 = vpack.c.b16 %v2899, %v2883
    %v2916 = vpack.c.b16 %v2900, %v2884
    %2933 = vmatprep.subr.bf16.mxu0 %v2902
    %2934 = vmatpush1.bf16.xpose.msra.mxu0 %v2901
    %2935 = vmatprep.subr.bf16.mxu0 0
    %2936 = vmatpush1.bf16.xpose.msra.mxu0 0
    %2937 = vmatprep.subr.bf16.mxu0 0
    %2938 = vmatpush1.bf16.xpose.msra.mxu0 0
    %2939 = vmatprep.subr.bf16.mxu0 0
    %2940 = vmatpush1.bf16.xpose.msra.mxu0 0
    %2941 = vmatprep.subr.bf16.mxu0 0
    %2942 = vmatpush1.bf16.xpose.msra.mxu0 0
    %2943 = vmatprep.subr.bf16.mxu0 0
    %2944 = vmatpush1.bf16.xpose.msra.mxu0 0
    %2945 = vmatprep.subr.bf16.mxu0 0
    %2946 = vmatpush1.bf16.xpose.msra.mxu0 0
    %2947 = vmatprep.subr.bf16.mxu0 0
    %2948 = vmatpush1.bf16.xpose.msra.mxu0 0
    %2949 = vmatprep.subr.bf16.mxu0 0
    %2950 = vmatpush1.bf16.xpose.msra.mxu0 0
    %2951 = vmatprep.subr.bf16.mxu0 0
    %2952 = vmatpush1.bf16.xpose.msra.mxu0 0
    %2953 = vmatprep.subr.bf16.mxu0 0
    %2954 = vmatpush1.bf16.xpose.msra.mxu0 0
    %2955 = vmatprep.subr.bf16.mxu0 0
    %2956 = vmatpush1.bf16.xpose.msra.mxu0 0
    %2957 = vmatprep.subr.bf16.mxu0 0
    %2958 = vmatpush1.bf16.xpose.msra.mxu0 0
    %2959 = vmatprep.subr.bf16.mxu0 0
    %2960 = vmatpush1.bf16.xpose.msra.mxu0 0
    %2961 = vmatprep.subr.bf16.mxu0 0
    %2962 = vmatpush1.bf16.xpose.msra.mxu0 0
    %2963 = vmatprep.subr.bf16.mxu0 0
    %2964 = vmatpush1.bf16.xpose.msra.mxu0 0
    %2965 = vmatprep.mubr.bf16.mxu0 %v2815
    %2966 = vmatmul.mubr.bf16.gmra.mrb[0].mxu0 %v2814
    %v2967 = vpop.f32.mrb[0].mxu0
    %v2968 = vadd.f32 %v2851, %v2967
    %v2969 = vpop.f32.mrb[0].mxu0
    %v2970 = vpop.f32.mrb[0].mxu0
    %v2971 = vadd.f32 %v2851, %v2970
    %v2972 = vpop.f32.mrb[0].mxu0
    %2973 = vdwg.mxu0
    %2974 = vmatprep.subr.bf16.mxu0 %v2904
    %2975 = vmatpush1.bf16.xpose.msra.mxu0 %v2903
    %2976 = vmatprep.subr.bf16.mxu0 0
    %2977 = vmatpush1.bf16.xpose.msra.mxu0 0
    %2978 = vmatprep.subr.bf16.mxu0 0
    %2979 = vmatpush1.bf16.xpose.msra.mxu0 0
    %2980 = vmatprep.subr.bf16.mxu0 0
    %2981 = vmatpush1.bf16.xpose.msra.mxu0 0
    %2982 = vmatprep.subr.bf16.mxu0 0
    %2983 = vmatpush1.bf16.xpose.msra.mxu0 0
    %2984 = vmatprep.subr.bf16.mxu0 0
    %2985 = vmatpush1.bf16.xpose.msra.mxu0 0
    %2986 = vmatprep.subr.bf16.mxu0 0
    %2987 = vmatpush1.bf16.xpose.msra.mxu0 0
    %2988 = vmatprep.subr.bf16.mxu0 0
    %2989 = vmatpush1.bf16.xpose.msra.mxu0 0
    %2990 = vmatprep.subr.bf16.mxu0 0
    %2991 = vmatpush1.bf16.xpose.msra.mxu0 0
    %2992 = vmatprep.subr.bf16.mxu0 0
    %2993 = vmatpush1.bf16.xpose.msra.mxu0 0
    %2994 = vmatprep.subr.bf16.mxu0 0
    %2995 = vmatpush1.bf16.xpose.msra.mxu0 0
    %2996 = vmatprep.subr.bf16.mxu0 0
    %2997 = vmatpush1.bf16.xpose.msra.mxu0 0
    %2998 = vmatprep.subr.bf16.mxu0 0
    %2999 = vmatpush1.bf16.xpose.msra.mxu0 0
    %3000 = vmatprep.subr.bf16.mxu0 0
    %3001 = vmatpush1.bf16.xpose.msra.mxu0 0
    %3002 = vmatprep.subr.bf16.mxu0 0
    %3003 = vmatpush1.bf16.xpose.msra.mxu0 0
    %3004 = vmatprep.subr.bf16.mxu0 0
    %3005 = vmatpush1.bf16.xpose.msra.mxu0 0
    %3006 = vmatprep.mubr.bf16.mxu0 %v2817
    %3007 = vmatmul.mubr.bf16.gmra.mrb[0].mxu0 %v2816
    %v3008 = vpop.f32.mrb[0].mxu0
    %v3009 = vadd.f32 %v2968, %v3008
    %v3010 = vpop.f32.mrb[0].mxu0
    %v3011 = vpop.f32.mrb[0].mxu0
    %v3012 = vadd.f32 %v2971, %v3011
    %v3013 = vpop.f32.mrb[0].mxu0
    %3014 = vdwg.mxu0
    %3015 = vmatprep.subr.bf16.mxu0 %v2906
    %3016 = vmatpush1.bf16.xpose.msra.mxu0 %v2905
    %3017 = vmatprep.subr.bf16.mxu0 0
    %3018 = vmatpush1.bf16.xpose.msra.mxu0 0
    %3019 = vmatprep.subr.bf16.mxu0 0
    %3020 = vmatpush1.bf16.xpose.msra.mxu0 0
    %3021 = vmatprep.subr.bf16.mxu0 0
    %3022 = vmatpush1.bf16.xpose.msra.mxu0 0
    %3023 = vmatprep.subr.bf16.mxu0 0
    %3024 = vmatpush1.bf16.xpose.msra.mxu0 0
    %3025 = vmatprep.subr.bf16.mxu0 0
    %3026 = vmatpush1.bf16.xpose.msra.mxu0 0
    %3027 = vmatprep.subr.bf16.mxu0 0
    %3028 = vmatpush1.bf16.xpose.msra.mxu0 0
    %3029 = vmatprep.subr.bf16.mxu0 0
    %3030 = vmatpush1.bf16.xpose.msra.mxu0 0
    %3031 = vmatprep.subr.bf16.mxu0 0
    %3032 = vmatpush1.bf16.xpose.msra.mxu0 0
    %3033 = vmatprep.subr.bf16.mxu0 0
    %3034 = vmatpush1.bf16.xpose.msra.mxu0 0
    %3035 = vmatprep.subr.bf16.mxu0 0
    %3036 = vmatpush1.bf16.xpose.msra.mxu0 0
    %3037 = vmatprep.subr.bf16.mxu0 0
    %3038 = vmatpush1.bf16.xpose.msra.mxu0 0
    %3039 = vmatprep.subr.bf16.mxu0 0
    %3040 = vmatpush1.bf16.xpose.msra.mxu0 0
    %3041 = vmatprep.subr.bf16.mxu0 0
    %3042 = vmatpush1.bf16.xpose.msra.mxu0 0
    %3043 = vmatprep.subr.bf16.mxu0 0
    %3044 = vmatpush1.bf16.xpose.msra.mxu0 0
    %3045 = vmatprep.subr.bf16.mxu0 0
    %3046 = vmatpush1.bf16.xpose.msra.mxu0 0
    %3047 = vmatprep.mubr.bf16.mxu0 %v2819
    %3048 = vmatmul.mubr.bf16.gmra.mrb[0].mxu0 %v2818
    %v3049 = vpop.f32.mrb[0].mxu0
    %v3050 = vadd.f32 %v3009, %v3049
    %v3051 = vpop.f32.mrb[0].mxu0
    %v3052 = vpop.f32.mrb[0].mxu0
    %v3053 = vadd.f32 %v3012, %v3052
    %v3054 = vpop.f32.mrb[0].mxu0
    %3055 = vdwg.mxu0
    %3056 = vmatprep.subr.bf16.mxu0 %v2908
    %3057 = vmatpush1.bf16.xpose.msra.mxu0 %v2907
    %3058 = vmatprep.subr.bf16.mxu0 0
    %3059 = vmatpush1.bf16.xpose.msra.mxu0 0
    %3060 = vmatprep.subr.bf16.mxu0 0
    %3061 = vmatpush1.bf16.xpose.msra.mxu0 0
    %3062 = vmatprep.subr.bf16.mxu0 0
    %3063 = vmatpush1.bf16.xpose.msra.mxu0 0
    %3064 = vmatprep.subr.bf16.mxu0 0
    %3065 = vmatpush1.bf16.xpose.msra.mxu0 0
    %3066 = vmatprep.subr.bf16.mxu0 0
    %3067 = vmatpush1.bf16.xpose.msra.mxu0 0
    %3068 = vmatprep.subr.bf16.mxu0 0
    %3069 = vmatpush1.bf16.xpose.msra.mxu0 0
    %3070 = vmatprep.subr.bf16.mxu0 0
    %3071 = vmatpush1.bf16.xpose.msra.mxu0 0
    %3072 = vmatprep.subr.bf16.mxu0 0
    %3073 = vmatpush1.bf16.xpose.msra.mxu0 0
    %3074 = vmatprep.subr.bf16.mxu0 0
    %3075 = vmatpush1.bf16.xpose.msra.mxu0 0
    %3076 = vmatprep.subr.bf16.mxu0 0
    %3077 = vmatpush1.bf16.xpose.msra.mxu0 0
    %3078 = vmatprep.subr.bf16.mxu0 0
    %3079 = vmatpush1.bf16.xpose.msra.mxu0 0
    %3080 = vmatprep.subr.bf16.mxu0 0
    %3081 = vmatpush1.bf16.xpose.msra.mxu0 0
    %3082 = vmatprep.subr.bf16.mxu0 0
    %3083 = vmatpush1.bf16.xpose.msra.mxu0 0
    %3084 = vmatprep.subr.bf16.mxu0 0
    %3085 = vmatpush1.bf16.xpose.msra.mxu0 0
    %3086 = vmatprep.subr.bf16.mxu0 0
    %3087 = vmatpush1.bf16.xpose.msra.mxu0 0
    %3088 = vmatprep.mubr.bf16.mxu0 %v2821
    %3089 = vmatmul.mubr.bf16.gmra.mrb[0].mxu0 %v2820
    %v3090 = vpop.f32.mrb[0].mxu0
    %v3091 = vadd.f32 %v3050, %v3090
    %v3092 = vpop.f32.mrb[0].mxu0
    %v3093 = vpop.f32.mrb[0].mxu0
    %v3094 = vadd.f32 %v3053, %v3093
    %v3095 = vpop.f32.mrb[0].mxu0
    %3096 = vdwg.mxu0
    %3097 = vmatprep.subr.bf16.mxu0 %v2910
    %3098 = vmatpush1.bf16.xpose.msra.mxu0 %v2909
    %3099 = vmatprep.subr.bf16.mxu0 0
    %3100 = vmatpush1.bf16.xpose.msra.mxu0 0
    %3101 = vmatprep.subr.bf16.mxu0 0
    %3102 = vmatpush1.bf16.xpose.msra.mxu0 0
    %3103 = vmatprep.subr.bf16.mxu0 0
    %3104 = vmatpush1.bf16.xpose.msra.mxu0 0
    %3105 = vmatprep.subr.bf16.mxu0 0
    %3106 = vmatpush1.bf16.xpose.msra.mxu0 0
    %3107 = vmatprep.subr.bf16.mxu0 0
    %3108 = vmatpush1.bf16.xpose.msra.mxu0 0
    %3109 = vmatprep.subr.bf16.mxu0 0
    %3110 = vmatpush1.bf16.xpose.msra.mxu0 0
    %3111 = vmatprep.subr.bf16.mxu0 0
    %3112 = vmatpush1.bf16.xpose.msra.mxu0 0
    %3113 = vmatprep.subr.bf16.mxu0 0
    %3114 = vmatpush1.bf16.xpose.msra.mxu0 0
    %3115 = vmatprep.subr.bf16.mxu0 0
    %3116 = vmatpush1.bf16.xpose.msra.mxu0 0
    %3117 = vmatprep.subr.bf16.mxu0 0
    %3118 = vmatpush1.bf16.xpose.msra.mxu0 0
    %3119 = vmatprep.subr.bf16.mxu0 0
    %3120 = vmatpush1.bf16.xpose.msra.mxu0 0
    %3121 = vmatprep.subr.bf16.mxu0 0
    %3122 = vmatpush1.bf16.xpose.msra.mxu0 0
    %3123 = vmatprep.subr.bf16.mxu0 0
    %3124 = vmatpush1.bf16.xpose.msra.mxu0 0
    %3125 = vmatprep.subr.bf16.mxu0 0
    %3126 = vmatpush1.bf16.xpose.msra.mxu0 0
    %3127 = vmatprep.subr.bf16.mxu0 0
    %3128 = vmatpush1.bf16.xpose.msra.mxu0 0
    %3129 = vmatprep.mubr.bf16.mxu0 %v2823
    %3130 = vmatmul.mubr.bf16.gmra.mrb[0].mxu0 %v2822
    %v3131 = vpop.f32.mrb[0].mxu0
    %v3132 = vadd.f32 %v3091, %v3131
    %v3133 = vpop.f32.mrb[0].mxu0
    %v3134 = vpop.f32.mrb[0].mxu0
    %v3135 = vadd.f32 %v3094, %v3134
    %v3136 = vpop.f32.mrb[0].mxu0
    %3137 = vdwg.mxu0
    %3138 = vmatprep.subr.bf16.mxu0 %v2912
    %3139 = vmatpush1.bf16.xpose.msra.mxu0 %v2911
    %3140 = vmatprep.subr.bf16.mxu0 0
    %3141 = vmatpush1.bf16.xpose.msra.mxu0 0
    %3142 = vmatprep.subr.bf16.mxu0 0
    %3143 = vmatpush1.bf16.xpose.msra.mxu0 0
    %3144 = vmatprep.subr.bf16.mxu0 0
    %3145 = vmatpush1.bf16.xpose.msra.mxu0 0
    %3146 = vmatprep.subr.bf16.mxu0 0
    %3147 = vmatpush1.bf16.xpose.msra.mxu0 0
    %3148 = vmatprep.subr.bf16.mxu0 0
    %3149 = vmatpush1.bf16.xpose.msra.mxu0 0
    %3150 = vmatprep.subr.bf16.mxu0 0
    %3151 = vmatpush1.bf16.xpose.msra.mxu0 0
    %3152 = vmatprep.subr.bf16.mxu0 0
    %3153 = vmatpush1.bf16.xpose.msra.mxu0 0
    %3154 = vmatprep.subr.bf16.mxu0 0
    %3155 = vmatpush1.bf16.xpose.msra.mxu0 0
    %3156 = vmatprep.subr.bf16.mxu0 0
    %3157 = vmatpush1.bf16.xpose.msra.mxu0 0
    %3158 = vmatprep.subr.bf16.mxu0 0
    %3159 = vmatpush1.bf16.xpose.msra.mxu0 0
    %3160 = vmatprep.subr.bf16.mxu0 0
    %3161 = vmatpush1.bf16.xpose.msra.mxu0 0
    %3162 = vmatprep.subr.bf16.mxu0 0
    %3163 = vmatpush1.bf16.xpose.msra.mxu0 0
    %3164 = vmatprep.subr.bf16.mxu0 0
    %3165 = vmatpush1.bf16.xpose.msra.mxu0 0
    %3166 = vmatprep.subr.bf16.mxu0 0
    %3167 = vmatpush1.bf16.xpose.msra.mxu0 0
    %3168 = vmatprep.subr.bf16.mxu0 0
    %3169 = vmatpush1.bf16.xpose.msra.mxu0 0
    %3170 = vmatprep.mubr.bf16.mxu0 %v2825
    %3171 = vmatmul.mubr.bf16.gmra.mrb[0].mxu0 %v2824
    %v3172 = vpop.f32.mrb[0].mxu0
    %v3173 = vadd.f32 %v3132, %v3172
    %v3174 = vpop.f32.mrb[0].mxu0
    %v3175 = vpop.f32.mrb[0].mxu0
    %v3176 = vadd.f32 %v3135, %v3175
    %v3177 = vpop.f32.mrb[0].mxu0
    %3178 = vdwg.mxu0
    %3179 = vmatprep.subr.bf16.mxu0 %v2914
    %3180 = vmatpush1.bf16.xpose.msra.mxu0 %v2913
    %3181 = vmatprep.subr.bf16.mxu0 0
    %3182 = vmatpush1.bf16.xpose.msra.mxu0 0
    %3183 = vmatprep.subr.bf16.mxu0 0
    %3184 = vmatpush1.bf16.xpose.msra.mxu0 0
    %3185 = vmatprep.subr.bf16.mxu0 0
    %3186 = vmatpush1.bf16.xpose.msra.mxu0 0
    %3187 = vmatprep.subr.bf16.mxu0 0
    %3188 = vmatpush1.bf16.xpose.msra.mxu0 0
    %3189 = vmatprep.subr.bf16.mxu0 0
    %3190 = vmatpush1.bf16.xpose.msra.mxu0 0
    %3191 = vmatprep.subr.bf16.mxu0 0
    %3192 = vmatpush1.bf16.xpose.msra.mxu0 0
    %3193 = vmatprep.subr.bf16.mxu0 0
    %3194 = vmatpush1.bf16.xpose.msra.mxu0 0
    %3195 = vmatprep.subr.bf16.mxu0 0
    %3196 = vmatpush1.bf16.xpose.msra.mxu0 0
    %3197 = vmatprep.subr.bf16.mxu0 0
    %3198 = vmatpush1.bf16.xpose.msra.mxu0 0
    %3199 = vmatprep.subr.bf16.mxu0 0
    %3200 = vmatpush1.bf16.xpose.msra.mxu0 0
    %3201 = vmatprep.subr.bf16.mxu0 0
    %3202 = vmatpush1.bf16.xpose.msra.mxu0 0
    %3203 = vmatprep.subr.bf16.mxu0 0
    %3204 = vmatpush1.bf16.xpose.msra.mxu0 0
    %3205 = vmatprep.subr.bf16.mxu0 0
    %3206 = vmatpush1.bf16.xpose.msra.mxu0 0
    %3207 = vmatprep.subr.bf16.mxu0 0
    %3208 = vmatpush1.bf16.xpose.msra.mxu0 0
    %3209 = vmatprep.subr.bf16.mxu0 0
    %3210 = vmatpush1.bf16.xpose.msra.mxu0 0
    %3211 = vmatprep.mubr.bf16.mxu0 %v2827
    %3212 = vmatmul.mubr.bf16.gmra.mrb[0].mxu0 %v2826
    %v3213 = vpop.f32.mrb[0].mxu0
    %v3214 = vadd.f32 %v3173, %v3213
    %v3215 = vpop.f32.mrb[0].mxu0
    %v3216 = vpop.f32.mrb[0].mxu0
    %v3217 = vadd.f32 %v3176, %v3216
    %v3218 = vpop.f32.mrb[0].mxu0
    %3219 = vdwg.mxu0
    %3220 = vmatprep.subr.bf16.mxu0 %v2916
    %3221 = vmatpush1.bf16.xpose.msra.mxu0 %v2915
    %3222 = vmatprep.subr.bf16.mxu0 0
    %3223 = vmatpush1.bf16.xpose.msra.mxu0 0
    %3224 = vmatprep.subr.bf16.mxu0 0
    %3225 = vmatpush1.bf16.xpose.msra.mxu0 0
    %3226 = vmatprep.subr.bf16.mxu0 0
    %3227 = vmatpush1.bf16.xpose.msra.mxu0 0
    %3228 = vmatprep.subr.bf16.mxu0 0
    %3229 = vmatpush1.bf16.xpose.msra.mxu0 0
    %3230 = vmatprep.subr.bf16.mxu0 0
    %3231 = vmatpush1.bf16.xpose.msra.mxu0 0
    %3232 = vmatprep.subr.bf16.mxu0 0
    %3233 = vmatpush1.bf16.xpose.msra.mxu0 0
    %3234 = vmatprep.subr.bf16.mxu0 0
    %3235 = vmatpush1.bf16.xpose.msra.mxu0 0
    %3236 = vmatprep.subr.bf16.mxu0 0
    %3237 = vmatpush1.bf16.xpose.msra.mxu0 0
    %3238 = vmatprep.subr.bf16.mxu0 0
    %3239 = vmatpush1.bf16.xpose.msra.mxu0 0
    %3240 = vmatprep.subr.bf16.mxu0 0
    %3241 = vmatpush1.bf16.xpose.msra.mxu0 0
    %3242 = vmatprep.subr.bf16.mxu0 0
    %3243 = vmatpush1.bf16.xpose.msra.mxu0 0
    %3244 = vmatprep.subr.bf16.mxu0 0
    %3245 = vmatpush1.bf16.xpose.msra.mxu0 0
    %3246 = vmatprep.subr.bf16.mxu0 0
    %3247 = vmatpush1.bf16.xpose.msra.mxu0 0
    %3248 = vmatprep.subr.bf16.mxu0 0
    %3249 = vmatpush1.bf16.xpose.msra.mxu0 0
    %3250 = vmatprep.subr.bf16.mxu0 0
    %3251 = vmatpush1.bf16.xpose.msra.mxu0 0
    %3252 = vmatprep.mubr.bf16.mxu0 %v2829
    %3253 = vmatmul.mubr.bf16.gmra.mrb[0].mxu0 %v2828
    %v3254 = vpop.f32.mrb[0].mxu0
    %v3255 = vadd.f32 %v3214, %v3254
    %v3256 = vpop.f32.mrb[0].mxu0
    %v3257 = vpop.f32.mrb[0].mxu0
    %v3258 = vadd.f32 %v3217, %v3257
    %v3259 = vpop.f32.mrb[0].mxu0
    %3260 = vdwg.mxu0
    %v3261 = vadd.f32 %v2252, %v3255
    %v3262 = vadd.f32 %v2253, %v3258
    %v3263 = vld [vmem:[#allocation23] sm:$0x1]
    %v3264 = vld [vmem:[#allocation25] sm:$0x1]
    %v3265 = vsel %vm1378, %v3261, 0.0
    %3266 = vadd.xlane.f32.xlu0 %v3265
    %v3267 = vpop.xlane.xlu0 %3266
    %v3268 = vsel %vm1378, %v3262, 0.0
    %3269 = vadd.xlane.f32.xlu0 %v3268
    %v3270 = vpop.xlane.xlu0 %3269
    %v3271 = vmul.f32 %v3267, %v2217
    %v3272 = vmul.f32 %v3270, %v2217
    %v3273 = vsub.f32 %v3261, %v3271
    %v3274 = vsub.f32 %v3262, %v3272
    %v3275 = vmul.f32 %v3273, %v3273
    %v3276 = vmul.f32 %v3274, %v3274
    %v3277 = vsel %vm1378, %v3275, 0.0
    %3278 = vadd.xlane.f32.xlu0 %v3277
    %v3279 = vpop.xlane.xlu0 %3278
    %v3280 = vsel %vm1378, %v3276, 0.0
    %3281 = vadd.xlane.f32.xlu0 %v3280
    %v3282 = vpop.xlane.xlu0 %3281
    %v3283 = vmul.f32 %v3279, %v2217
    %v3284 = vmul.f32 %v3282, %v2217
    %v3285 = vadd.f32 %v3283, 1e-05
    %v3286 = vadd.f32 %v3284, 1e-05
    %v3287 = vrsqrt.pop %v3285
    %v3288 = vrsqrt.pop %v3286
    %v3289 = vmul.f32 %v3273, %v3287
    %v3290 = vmul.f32 %v3274, %v3288
    %v3292 = vlaneseq
    %v3293 = vshrl.u32 %v3292, 7
    %v3294 = vsub.s32 0, %v3293
    %v3295 = vrot.slane %v3263, %v3294
    %v3297 = vmul.f32 %v3289, %v3295
    %v3298 = vmul.f32 %v3290, %v3295
    %v3300 = vlaneseq
    %v3301 = vshrl.u32 %v3300, 7
    %v3302 = vsub.s32 0, %v3301
    %v3303 = vrot.slane %v3264, %v3302
    %v3305 = vadd.f32 %v3297, %v3303
    %v3306 = vadd.f32 %v3298, %v3303
    %s3307 = scalar_lea.vmem %s7, 16
    %v3308 = vld [vmem:[%s3307] sm:$0xff]
    %v3309 = vld [vmem:[%s3307 + $0x8] sm:$0xff]
    %s3310 = scalar_lea.vmem [#allocation8], 1
    %v3311 = vld [vmem:[%s3310] sm:$0x1]
    %v3313 = vlaneseq
    %v3314 = vshrl.u32 %v3313, 7
    %v3315 = vsub.s32 0, %v3314
    %v3316 = vrot.slane %v3311, %v3315
    %v3319 = vsel %vm1378, %v3305, 0
    %v3322 = vsel %vm1378, %v3306, 0
    %3324 = vmatprep.subr.mxu0 0.0
    %3325 = vmatpush1.msra.mxu0 %v3308
    %3326 = vmatprep.subr.mxu0 0.0
    %3327 = vmatpush1.msra.mxu0 %v3309
    %3328 = vmatprep.subr.mxu0 0.0
    %3329 = vmatpush1.msra.mxu0 0.0
    %3330 = vmatprep.subr.mxu0 0.0
    %3331 = vmatpush1.msra.mxu0 0.0
    %3332 = vmatprep.subr.mxu0 0.0
    %3333 = vmatpush1.msra.mxu0 0.0
    %3334 = vmatprep.subr.mxu0 0.0
    %3335 = vmatpush1.msra.mxu0 0.0
    %3336 = vmatprep.subr.mxu0 0.0
    %3337 = vmatpush1.msra.mxu0 0.0
    %3338 = vmatprep.subr.mxu0 0.0
    %3339 = vmatpush1.msra.mxu0 0.0
    %3340 = vmatprep.subr.mxu0 0.0
    %3341 = vmatpush1.msra.mxu0 0.0
    %3342 = vmatprep.subr.mxu0 0.0
    %3343 = vmatpush1.msra.mxu0 0.0
    %3344 = vmatprep.subr.mxu0 0.0
    %3345 = vmatpush1.msra.mxu0 0.0
    %3346 = vmatprep.subr.mxu0 0.0
    %3347 = vmatpush1.msra.mxu0 0.0
    %3348 = vmatprep.subr.mxu0 0.0
    %3349 = vmatpush1.msra.mxu0 0.0
    %3350 = vmatprep.subr.mxu0 0.0
    %3351 = vmatpush1.msra.mxu0 0.0
    %3352 = vmatprep.subr.mxu0 0.0
    %3353 = vmatpush1.msra.mxu0 0.0
    %3354 = vmatprep.subr.mxu0 0.0
    %3355 = vmatpush1.msra.mxu0 0.0
    %3356 = vmatprep.subr.mxu0 0.0
    %3357 = vmatpush1.msra.mxu0 0.0
    %3358 = vmatprep.subr.mxu0 0.0
    %3359 = vmatpush1.msra.mxu0 0.0
    %3360 = vmatprep.subr.mxu0 0.0
    %3361 = vmatpush1.msra.mxu0 0.0
    %3362 = vmatprep.subr.mxu0 0.0
    %3363 = vmatpush1.msra.mxu0 0.0
    %3364 = vmatprep.subr.mxu0 0.0
    %3365 = vmatpush1.msra.mxu0 0.0
    %3366 = vmatprep.subr.mxu0 0.0
    %3367 = vmatpush1.msra.mxu0 0.0
    %3368 = vmatprep.subr.mxu0 0.0
    %3369 = vmatpush1.msra.mxu0 0.0
    %3370 = vmatprep.subr.mxu0 0.0
    %3371 = vmatpush1.msra.mxu0 0.0
    %3372 = vmatprep.subr.mxu0 0.0
    %3373 = vmatpush1.msra.mxu0 0.0
    %3374 = vmatprep.subr.mxu0 0.0
    %3375 = vmatpush1.msra.mxu0 0.0
    %3376 = vmatprep.subr.mxu0 0.0
    %3377 = vmatpush1.msra.mxu0 0.0
    %3378 = vmatprep.subr.mxu0 0.0
    %3379 = vmatpush1.msra.mxu0 0.0
    %3380 = vmatprep.subr.mxu0 0.0
    %3381 = vmatpush1.msra.mxu0 0.0
    %3382 = vmatprep.subr.mxu0 0.0
    %3383 = vmatpush1.msra.mxu0 0.0
    %3384 = vmatprep.subr.mxu0 0.0
    %3385 = vmatpush1.msra.mxu0 0.0
    %3386 = vmatprep.subr.mxu0 0.0
    %3387 = vmatpush1.msra.mxu0 0.0
    %3388 = vmatprep.mubr.f32.mxu0 0.0
    %3389 = vmatmul.mubr.f32.gmra.mrb[0].mxu0 %v3319
    %v3390 = vpop.f32.mrb[0].mxu0
    %v3391 = vadd.f32 %v3316, %v3390
    %v3392 = vpop.f32.mrb[0].mxu0
    %3393 = vmatprep.mubr.f32.mxu0 0.0
    %3394 = vmatmul.mubr.f32.gmra.mrb[0].mxu0 %v3322
    %v3395 = vpop.f32.mrb[0].mxu0
    %v3396 = vadd.f32 %v3316, %v3395
    %v3397 = vpop.f32.mrb[0].mxu0
    %3398 = vdwg.mxu0
    %s3399 = scalar_lea.vmem %s8, 16
    %v3400 = vld [vmem:[%s3399] sm:$0xff]
    %v3401 = vld [vmem:[%s3399 + $0x8] sm:$0xff]
    %s3402 = scalar_lea.vmem [#allocation10], 1
    %v3403 = vld [vmem:[%s3402] sm:$0x1]
    %v3405 = vlaneseq
    %v3406 = vshrl.u32 %v3405, 7
    %v3407 = vsub.s32 0, %v3406
    %v3408 = vrot.slane %v3403, %v3407
    %3410 = vmatprep.subr.mxu0 0.0
    %3411 = vmatpush1.msra.mxu0 %v3400
    %3412 = vmatprep.subr.mxu0 0.0
    %3413 = vmatpush1.msra.mxu0 %v3401
    %3414 = vmatprep.subr.mxu0 0.0
    %3415 = vmatpush1.msra.mxu0 0.0
    %3416 = vmatprep.subr.mxu0 0.0
    %3417 = vmatpush1.msra.mxu0 0.0
    %3418 = vmatprep.subr.mxu0 0.0
    %3419 = vmatpush1.msra.mxu0 0.0
    %3420 = vmatprep.subr.mxu0 0.0
    %3421 = vmatpush1.msra.mxu0 0.0
    %3422 = vmatprep.subr.mxu0 0.0
    %3423 = vmatpush1.msra.mxu0 0.0
    %3424 = vmatprep.subr.mxu0 0.0
    %3425 = vmatpush1.msra.mxu0 0.0
    %3426 = vmatprep.subr.mxu0 0.0
    %3427 = vmatpush1.msra.mxu0 0.0
    %3428 = vmatprep.subr.mxu0 0.0
    %3429 = vmatpush1.msra.mxu0 0.0
    %3430 = vmatprep.subr.mxu0 0.0
    %3431 = vmatpush1.msra.mxu0 0.0
    %3432 = vmatprep.subr.mxu0 0.0
    %3433 = vmatpush1.msra.mxu0 0.0
    %3434 = vmatprep.subr.mxu0 0.0
    %3435 = vmatpush1.msra.mxu0 0.0
    %3436 = vmatprep.subr.mxu0 0.0
    %3437 = vmatpush1.msra.mxu0 0.0
    %3438 = vmatprep.subr.mxu0 0.0
    %3439 = vmatpush1.msra.mxu0 0.0
    %3440 = vmatprep.subr.mxu0 0.0
    %3441 = vmatpush1.msra.mxu0 0.0
    %3442 = vmatprep.subr.mxu0 0.0
    %3443 = vmatpush1.msra.mxu0 0.0
    %3444 = vmatprep.subr.mxu0 0.0
    %3445 = vmatpush1.msra.mxu0 0.0
    %3446 = vmatprep.subr.mxu0 0.0
    %3447 = vmatpush1.msra.mxu0 0.0
    %3448 = vmatprep.subr.mxu0 0.0
    %3449 = vmatpush1.msra.mxu0 0.0
    %3450 = vmatprep.subr.mxu0 0.0
    %3451 = vmatpush1.msra.mxu0 0.0
    %3452 = vmatprep.subr.mxu0 0.0
    %3453 = vmatpush1.msra.mxu0 0.0
    %3454 = vmatprep.subr.mxu0 0.0
    %3455 = vmatpush1.msra.mxu0 0.0
    %3456 = vmatprep.subr.mxu0 0.0
    %3457 = vmatpush1.msra.mxu0 0.0
    %3458 = vmatprep.subr.mxu0 0.0
    %3459 = vmatpush1.msra.mxu0 0.0
    %3460 = vmatprep.subr.mxu0 0.0
    %3461 = vmatpush1.msra.mxu0 0.0
    %3462 = vmatprep.subr.mxu0 0.0
    %3463 = vmatpush1.msra.mxu0 0.0
    %3464 = vmatprep.subr.mxu0 0.0
    %3465 = vmatpush1.msra.mxu0 0.0
    %3466 = vmatprep.subr.mxu0 0.0
    %3467 = vmatpush1.msra.mxu0 0.0
    %3468 = vmatprep.subr.mxu0 0.0
    %3469 = vmatpush1.msra.mxu0 0.0
    %3470 = vmatprep.subr.mxu0 0.0
    %3471 = vmatpush1.msra.mxu0 0.0
    %3472 = vmatprep.subr.mxu0 0.0
    %3473 = vmatpush1.msra.mxu0 0.0
    %3474 = vmatprep.mubr.f32.mxu0 0.0
    %3475 = vmatmul.mubr.f32.gmra.mrb[0].mxu0 %v3319
    %v3476 = vpop.f32.mrb[0].mxu0
    %v3477 = vadd.f32 %v3408, %v3476
    %v3478 = vpop.f32.mrb[0].mxu0
    %3479 = vmatprep.mubr.f32.mxu0 0.0
    %3480 = vmatmul.mubr.f32.gmra.mrb[0].mxu0 %v3322
    %v3481 = vpop.f32.mrb[0].mxu0
    %v3482 = vadd.f32 %v3408, %v3481
    %v3483 = vpop.f32.mrb[0].mxu0
    %3484 = vdwg.mxu0
    %s3485 = scalar_lea.vmem [#allocation7], 16
    %v3486 = vld [vmem:[%s3485] sm:$0xff]
    %v3487 = vld [vmem:[%s3485 + $0x8] sm:$0xff]
    %s3488 = scalar_lea.vmem %s12, 1
    %v3489 = vld [vmem:[%s3488] sm:$0x1]
    %v3491 = vlaneseq
    %v3492 = vshrl.u32 %v3491, 7
    %v3493 = vsub.s32 0, %v3492
    %v3494 = vrot.slane %v3489, %v3493
    %3496 = vmatprep.subr.mxu0 0.0
    %3497 = vmatpush1.msra.mxu0 %v3486
    %3498 = vmatprep.subr.mxu0 0.0
    %3499 = vmatpush1.msra.mxu0 %v3487
    %3500 = vmatprep.subr.mxu0 0.0
    %3501 = vmatpush1.msra.mxu0 0.0
    %3502 = vmatprep.subr.mxu0 0.0
    %3503 = vmatpush1.msra.mxu0 0.0
    %3504 = vmatprep.subr.mxu0 0.0
    %3505 = vmatpush1.msra.mxu0 0.0
    %3506 = vmatprep.subr.mxu0 0.0
    %3507 = vmatpush1.msra.mxu0 0.0
    %3508 = vmatprep.subr.mxu0 0.0
    %3509 = vmatpush1.msra.mxu0 0.0
    %3510 = vmatprep.subr.mxu0 0.0
    %3511 = vmatpush1.msra.mxu0 0.0
    %3512 = vmatprep.subr.mxu0 0.0
    %3513 = vmatpush1.msra.mxu0 0.0
    %3514 = vmatprep.subr.mxu0 0.0
    %3515 = vmatpush1.msra.mxu0 0.0
    %3516 = vmatprep.subr.mxu0 0.0
    %3517 = vmatpush1.msra.mxu0 0.0
    %3518 = vmatprep.subr.mxu0 0.0
    %3519 = vmatpush1.msra.mxu0 0.0
    %3520 = vmatprep.subr.mxu0 0.0
    %3521 = vmatpush1.msra.mxu0 0.0
    %3522 = vmatprep.subr.mxu0 0.0
    %3523 = vmatpush1.msra.mxu0 0.0
    %3524 = vmatprep.subr.mxu0 0.0
    %3525 = vmatpush1.msra.mxu0 0.0
    %3526 = vmatprep.subr.mxu0 0.0
    %3527 = vmatpush1.msra.mxu0 0.0
    %3528 = vmatprep.subr.mxu0 0.0
    %3529 = vmatpush1.msra.mxu0 0.0
    %3530 = vmatprep.subr.mxu0 0.0
    %3531 = vmatpush1.msra.mxu0 0.0
    %3532 = vmatprep.subr.mxu0 0.0
    %3533 = vmatpush1.msra.mxu0 0.0
    %3534 = vmatprep.subr.mxu0 0.0
    %3535 = vmatpush1.msra.mxu0 0.0
    %3536 = vmatprep.subr.mxu0 0.0
    %3537 = vmatpush1.msra.mxu0 0.0
    %3538 = vmatprep.subr.mxu0 0.0
    %3539 = vmatpush1.msra.mxu0 0.0
    %3540 = vmatprep.subr.mxu0 0.0
    %3541 = vmatpush1.msra.mxu0 0.0
    %3542 = vmatprep.subr.mxu0 0.0
    %3543 = vmatpush1.msra.mxu0 0.0
    %3544 = vmatprep.subr.mxu0 0.0
    %3545 = vmatpush1.msra.mxu0 0.0
    %3546 = vmatprep.subr.mxu0 0.0
    %3547 = vmatpush1.msra.mxu0 0.0
    %3548 = vmatprep.subr.mxu0 0.0
    %3549 = vmatpush1.msra.mxu0 0.0
    %3550 = vmatprep.subr.mxu0 0.0
    %3551 = vmatpush1.msra.mxu0 0.0
    %3552 = vmatprep.subr.mxu0 0.0
    %3553 = vmatpush1.msra.mxu0 0.0
    %3554 = vmatprep.subr.mxu0 0.0
    %3555 = vmatpush1.msra.mxu0 0.0
    %3556 = vmatprep.subr.mxu0 0.0
    %3557 = vmatpush1.msra.mxu0 0.0
    %3558 = vmatprep.subr.mxu0 0.0
    %3559 = vmatpush1.msra.mxu0 0.0
    %3560 = vmatprep.mubr.f32.mxu0 0.0
    %3561 = vmatmul.mubr.f32.gmra.mrb[0].mxu0 %v3319
    %v3562 = vpop.f32.mrb[0].mxu0
    %v3563 = vadd.f32 %v3494, %v3562
    %v3564 = vpop.f32.mrb[0].mxu0
    %3565 = vmatprep.mubr.f32.mxu0 0.0
    %3566 = vmatmul.mubr.f32.gmra.mrb[0].mxu0 %v3322
    %v3567 = vpop.f32.mrb[0].mxu0
    %v3568 = vadd.f32 %v3494, %v3567
    %v3569 = vpop.f32.mrb[0].mxu0
    %3570 = vdwg.mxu0
    %v3572 = vsel %vm1628, %v3391, 0
    %v3575 = vsel %vm1628, %v3396, 0
    %v3578 = vsel %vm1628, %v3477, 0
    %v3581 = vsel %vm1628, %v3482, 0
    %3583 = vmatprep.subr.mxu0 0.0
    %3584 = vmatpush1.xpose.msra.mxu0 %v3578
    %3585 = vmatprep.subr.mxu0 0.0
    %3586 = vmatpush1.xpose.msra.mxu0 %v3581
    %3587 = vmatprep.subr.mxu0 0.0
    %3588 = vmatpush1.xpose.msra.mxu0 0.0
    %3589 = vmatprep.subr.mxu0 0.0
    %3590 = vmatpush1.xpose.msra.mxu0 0.0
    %3591 = vmatprep.subr.mxu0 0.0
    %3592 = vmatpush1.xpose.msra.mxu0 0.0
    %3593 = vmatprep.subr.mxu0 0.0
    %3594 = vmatpush1.xpose.msra.mxu0 0.0
    %3595 = vmatprep.subr.mxu0 0.0
    %3596 = vmatpush1.xpose.msra.mxu0 0.0
    %3597 = vmatprep.subr.mxu0 0.0
    %3598 = vmatpush1.xpose.msra.mxu0 0.0
    %3599 = vmatprep.subr.mxu0 0.0
    %3600 = vmatpush1.xpose.msra.mxu0 0.0
    %3601 = vmatprep.subr.mxu0 0.0
    %3602 = vmatpush1.xpose.msra.mxu0 0.0
    %3603 = vmatprep.subr.mxu0 0.0
    %3604 = vmatpush1.xpose.msra.mxu0 0.0
    %3605 = vmatprep.subr.mxu0 0.0
    %3606 = vmatpush1.xpose.msra.mxu0 0.0
    %3607 = vmatprep.subr.mxu0 0.0
    %3608 = vmatpush1.xpose.msra.mxu0 0.0
    %3609 = vmatprep.subr.mxu0 0.0
    %3610 = vmatpush1.xpose.msra.mxu0 0.0
    %3611 = vmatprep.subr.mxu0 0.0
    %3612 = vmatpush1.xpose.msra.mxu0 0.0
    %3613 = vmatprep.subr.mxu0 0.0
    %3614 = vmatpush1.xpose.msra.mxu0 0.0
    %3615 = vmatprep.subr.mxu0 0.0
    %3616 = vmatpush1.xpose.msra.mxu0 0.0
    %3617 = vmatprep.subr.mxu0 0.0
    %3618 = vmatpush1.xpose.msra.mxu0 0.0
    %3619 = vmatprep.subr.mxu0 0.0
    %3620 = vmatpush1.xpose.msra.mxu0 0.0
    %3621 = vmatprep.subr.mxu0 0.0
    %3622 = vmatpush1.xpose.msra.mxu0 0.0
    %3623 = vmatprep.subr.mxu0 0.0
    %3624 = vmatpush1.xpose.msra.mxu0 0.0
    %3625 = vmatprep.subr.mxu0 0.0
    %3626 = vmatpush1.xpose.msra.mxu0 0.0
    %3627 = vmatprep.subr.mxu0 0.0
    %3628 = vmatpush1.xpose.msra.mxu0 0.0
    %3629 = vmatprep.subr.mxu0 0.0
    %3630 = vmatpush1.xpose.msra.mxu0 0.0
    %3631 = vmatprep.subr.mxu0 0.0
    %3632 = vmatpush1.xpose.msra.mxu0 0.0
    %3633 = vmatprep.subr.mxu0 0.0
    %3634 = vmatpush1.xpose.msra.mxu0 0.0
    %3635 = vmatprep.subr.mxu0 0.0
    %3636 = vmatpush1.xpose.msra.mxu0 0.0
    %3637 = vmatprep.subr.mxu0 0.0
    %3638 = vmatpush1.xpose.msra.mxu0 0.0
    %3639 = vmatprep.subr.mxu0 0.0
    %3640 = vmatpush1.xpose.msra.mxu0 0.0
    %3641 = vmatprep.subr.mxu0 0.0
    %3642 = vmatpush1.xpose.msra.mxu0 0.0
    %3643 = vmatprep.subr.mxu0 0.0
    %3644 = vmatpush1.xpose.msra.mxu0 0.0
    %3645 = vmatprep.subr.mxu0 0.0
    %3646 = vmatpush1.xpose.msra.mxu0 0.0
    %3647 = vmatprep.mubr.f32.mxu0 0.0
    %3648 = vmatmul.mubr.f32.gmra.mrb[0].mxu0 %v3572
    %v3649 = vpop.f32.mrb[0].mxu0
    %v3650 = vadd.f32 0.0, %v3649
    %v3651 = vpop.f32.mrb[0].mxu0
    %3652 = vmatprep.mubr.f32.mxu0 0.0
    %3653 = vmatmul.mubr.f32.gmra.mrb[0].mxu0 %v3575
    %v3654 = vpop.f32.mrb[0].mxu0
    %v3655 = vadd.f32 0.0, %v3654
    %v3656 = vpop.f32.mrb[0].mxu0
    %3657 = vdwg.mxu0
    %v3658 = vmul.f32 %v3650, 0.35355338
    %v3659 = vmul.f32 %v3655, 0.35355338
    %v3660 = vsel %vm1367, %v3658, -1e+30
    %v3661 = vsel %vm1368, %v3659, -1e+30
    %v3662 = vsel %vm1378, %v3660, -inf
    %3663 = vmax.xlane.f32.xlu0 %v3662
    %v3664 = vpop.xlane.xlu0 %3663
    %v3665 = vsel %vm1378, %v3661, -inf
    %3666 = vmax.xlane.f32.xlu0 %v3665
    %v3667 = vpop.xlane.xlu0 %3666
    %v3668 = vsub.f32 %v3660, %v3664
    %v3669 = vsub.f32 %v3661, %v3667
    %v3670 = vmul.f32 %v3668, 1.442695
    %v3671 = vpow.pop %v3670
    %v3672 = vmul.f32 %v3669, 1.442695
    %v3673 = vpow.pop %v3672
    %v3674 = vsel %vm1367, %v3671, 0.0
    %v3675 = vsel %vm1368, %v3673, 0.0
    %v3676 = vsel %vm1378, %v3674, 0.0
    %3677 = vadd.xlane.f32.xlu0 %v3676
    %v3678 = vpop.xlane.xlu0 %3677
    %v3679 = vsel %vm1378, %v3675, 0.0
    %3680 = vadd.xlane.f32.xlu0 %v3679
    %v3681 = vpop.xlane.xlu0 %3680
    %v3682 = vrcp.pop %v3678
    %v3683 = vrcp.pop %v3681
    %v3684 = vmul.f32 %v3674, %v3682
    %v3685 = vmul.f32 %v3675, %v3683
    %v3687 = vsel %vm1378, %v3684, 0
    %v3690 = vsel %vm1378, %v3685, 0
    %3692 = vmatprep.subr.mxu0 0.0
    %3693 = vmatpush1.msra.mxu0 %v3563
    %3694 = vmatprep.subr.mxu0 0.0
    %3695 = vmatpush1.msra.mxu0 %v3568
    %3696 = vmatprep.subr.mxu0 0.0
    %3697 = vmatpush1.msra.mxu0 0.0
    %3698 = vmatprep.subr.mxu0 0.0
    %3699 = vmatpush1.msra.mxu0 0.0
    %3700 = vmatprep.subr.mxu0 0.0
    %3701 = vmatpush1.msra.mxu0 0.0
    %3702 = vmatprep.subr.mxu0 0.0
    %3703 = vmatpush1.msra.mxu0 0.0
    %3704 = vmatprep.subr.mxu0 0.0
    %3705 = vmatpush1.msra.mxu0 0.0
    %3706 = vmatprep.subr.mxu0 0.0
    %3707 = vmatpush1.msra.mxu0 0.0
    %3708 = vmatprep.subr.mxu0 0.0
    %3709 = vmatpush1.msra.mxu0 0.0
    %3710 = vmatprep.subr.mxu0 0.0
    %3711 = vmatpush1.msra.mxu0 0.0
    %3712 = vmatprep.subr.mxu0 0.0
    %3713 = vmatpush1.msra.mxu0 0.0
    %3714 = vmatprep.subr.mxu0 0.0
    %3715 = vmatpush1.msra.mxu0 0.0
    %3716 = vmatprep.subr.mxu0 0.0
    %3717 = vmatpush1.msra.mxu0 0.0
    %3718 = vmatprep.subr.mxu0 0.0
    %3719 = vmatpush1.msra.mxu0 0.0
    %3720 = vmatprep.subr.mxu0 0.0
    %3721 = vmatpush1.msra.mxu0 0.0
    %3722 = vmatprep.subr.mxu0 0.0
    %3723 = vmatpush1.msra.mxu0 0.0
    %3724 = vmatprep.subr.mxu0 0.0
    %3725 = vmatpush1.msra.mxu0 0.0
    %3726 = vmatprep.subr.mxu0 0.0
    %3727 = vmatpush1.msra.mxu0 0.0
    %3728 = vmatprep.subr.mxu0 0.0
    %3729 = vmatpush1.msra.mxu0 0.0
    %3730 = vmatprep.subr.mxu0 0.0
    %3731 = vmatpush1.msra.mxu0 0.0
    %3732 = vmatprep.subr.mxu0 0.0
    %3733 = vmatpush1.msra.mxu0 0.0
    %3734 = vmatprep.subr.mxu0 0.0
    %3735 = vmatpush1.msra.mxu0 0.0
    %3736 = vmatprep.subr.mxu0 0.0
    %3737 = vmatpush1.msra.mxu0 0.0
    %3738 = vmatprep.subr.mxu0 0.0
    %3739 = vmatpush1.msra.mxu0 0.0
    %3740 = vmatprep.subr.mxu0 0.0
    %3741 = vmatpush1.msra.mxu0 0.0
    %3742 = vmatprep.subr.mxu0 0.0
    %3743 = vmatpush1.msra.mxu0 0.0
    %3744 = vmatprep.subr.mxu0 0.0
    %3745 = vmatpush1.msra.mxu0 0.0
    %3746 = vmatprep.subr.mxu0 0.0
    %3747 = vmatpush1.msra.mxu0 0.0
    %3748 = vmatprep.subr.mxu0 0.0
    %3749 = vmatpush1.msra.mxu0 0.0
    %3750 = vmatprep.subr.mxu0 0.0
    %3751 = vmatpush1.msra.mxu0 0.0
    %3752 = vmatprep.subr.mxu0 0.0
    %3753 = vmatpush1.msra.mxu0 0.0
    %3754 = vmatprep.subr.mxu0 0.0
    %3755 = vmatpush1.msra.mxu0 0.0
    %3756 = vmatprep.mubr.f32.mxu0 0.0
    %3757 = vmatmul.mubr.f32.gmra.mrb[0].mxu0 %v3687
    %v3758 = vpop.f32.mrb[0].mxu0
    %v3759 = vadd.f32 0.0, %v3758
    %v3760 = vpop.f32.mrb[0].mxu0
    %3761 = vmatprep.mubr.f32.mxu0 0.0
    %3762 = vmatmul.mubr.f32.gmra.mrb[0].mxu0 %v3690
    %v3763 = vpop.f32.mrb[0].mxu0
    %v3764 = vadd.f32 0.0, %v3763
    %v3765 = vpop.f32.mrb[0].mxu0
    %3766 = vdwg.mxu0
    %s3767 = scalar_lea.vmem [#allocation11], 16
    %v3768 = vld [vmem:[%s3767] sm:$0xff]
    %3769 = vrot.lane.b32.xlu0 %v3391, 120
    %v3770 = vpop.permute.xlu0 %3769
    %3771 = vrot.lane.b32.xlu0 %v3396, 120
    %v3772 = vpop.permute.xlu0 %3771
    %3773 = vrot.lane.b32.xlu0 %v3477, 120
    %v3774 = vpop.permute.xlu0 %3773
    %3775 = vrot.lane.b32.xlu0 %v3482, 120
    %v3776 = vpop.permute.xlu0 %3775
    %v3777 = vsel %vm1628, %v3770, 0
    %v3779 = vsel %vm1628, %v3772, 0
    %v3781 = vsel %vm1628, %v3774, 0
    %v3783 = vsel %vm1628, %v3776, 0
    %3785 = vmatprep.subr.mxu0 0.0
    %3786 = vmatpush1.xpose.msra.mxu0 %v3781
    %3787 = vmatprep.subr.mxu0 0.0
    %3788 = vmatpush1.xpose.msra.mxu0 %v3783
    %3789 = vmatprep.subr.mxu0 0.0
    %3790 = vmatpush1.xpose.msra.mxu0 0.0
    %3791 = vmatprep.subr.mxu0 0.0
    %3792 = vmatpush1.xpose.msra.mxu0 0.0
    %3793 = vmatprep.subr.mxu0 0.0
    %3794 = vmatpush1.xpose.msra.mxu0 0.0
    %3795 = vmatprep.subr.mxu0 0.0
    %3796 = vmatpush1.xpose.msra.mxu0 0.0
    %3797 = vmatprep.subr.mxu0 0.0
    %3798 = vmatpush1.xpose.msra.mxu0 0.0
    %3799 = vmatprep.subr.mxu0 0.0
    %3800 = vmatpush1.xpose.msra.mxu0 0.0
    %3801 = vmatprep.subr.mxu0 0.0
    %3802 = vmatpush1.xpose.msra.mxu0 0.0
    %3803 = vmatprep.subr.mxu0 0.0
    %3804 = vmatpush1.xpose.msra.mxu0 0.0
    %3805 = vmatprep.subr.mxu0 0.0
    %3806 = vmatpush1.xpose.msra.mxu0 0.0
    %3807 = vmatprep.subr.mxu0 0.0
    %3808 = vmatpush1.xpose.msra.mxu0 0.0
    %3809 = vmatprep.subr.mxu0 0.0
    %3810 = vmatpush1.xpose.msra.mxu0 0.0
    %3811 = vmatprep.subr.mxu0 0.0
    %3812 = vmatpush1.xpose.msra.mxu0 0.0
    %3813 = vmatprep.subr.mxu0 0.0
    %3814 = vmatpush1.xpose.msra.mxu0 0.0
    %3815 = vmatprep.subr.mxu0 0.0
    %3816 = vmatpush1.xpose.msra.mxu0 0.0
    %3817 = vmatprep.subr.mxu0 0.0
    %3818 = vmatpush1.xpose.msra.mxu0 0.0
    %3819 = vmatprep.subr.mxu0 0.0
    %3820 = vmatpush1.xpose.msra.mxu0 0.0
    %3821 = vmatprep.subr.mxu0 0.0
    %3822 = vmatpush1.xpose.msra.mxu0 0.0
    %3823 = vmatprep.subr.mxu0 0.0
    %3824 = vmatpush1.xpose.msra.mxu0 0.0
    %3825 = vmatprep.subr.mxu0 0.0
    %3826 = vmatpush1.xpose.msra.mxu0 0.0
    %3827 = vmatprep.subr.mxu0 0.0
    %3828 = vmatpush1.xpose.msra.mxu0 0.0
    %3829 = vmatprep.subr.mxu0 0.0
    %3830 = vmatpush1.xpose.msra.mxu0 0.0
    %3831 = vmatprep.subr.mxu0 0.0
    %3832 = vmatpush1.xpose.msra.mxu0 0.0
    %3833 = vmatprep.subr.mxu0 0.0
    %3834 = vmatpush1.xpose.msra.mxu0 0.0
    %3835 = vmatprep.subr.mxu0 0.0
    %3836 = vmatpush1.xpose.msra.mxu0 0.0
    %3837 = vmatprep.subr.mxu0 0.0
    %3838 = vmatpush1.xpose.msra.mxu0 0.0
    %3839 = vmatprep.subr.mxu0 0.0
    %3840 = vmatpush1.xpose.msra.mxu0 0.0
    %3841 = vmatprep.subr.mxu0 0.0
    %3842 = vmatpush1.xpose.msra.mxu0 0.0
    %3843 = vmatprep.subr.mxu0 0.0
    %3844 = vmatpush1.xpose.msra.mxu0 0.0
    %3845 = vmatprep.subr.mxu0 0.0
    %3846 = vmatpush1.xpose.msra.mxu0 0.0
    %3847 = vmatprep.subr.mxu0 0.0
    %3848 = vmatpush1.xpose.msra.mxu0 0.0
    %3849 = vmatprep.mubr.f32.mxu0 0.0
    %3850 = vmatmul.mubr.f32.gmra.mrb[0].mxu0 %v3777
    %v3851 = vpop.f32.mrb[0].mxu0
    %v3852 = vadd.f32 0.0, %v3851
    %v3853 = vpop.f32.mrb[0].mxu0
    %3854 = vmatprep.mubr.f32.mxu0 0.0
    %3855 = vmatmul.mubr.f32.gmra.mrb[0].mxu0 %v3779
    %v3856 = vpop.f32.mrb[0].mxu0
    %v3857 = vadd.f32 0.0, %v3856
    %v3858 = vpop.f32.mrb[0].mxu0
    %3859 = vdwg.mxu0
    %v3860 = vmul.f32 %v3852, 0.35355338
    %v3861 = vmul.f32 %v3857, 0.35355338
    %v3862 = vsel %vm1367, %v3860, -1e+30
    %v3863 = vsel %vm1368, %v3861, -1e+30
    %v3864 = vsel %vm1378, %v3862, -inf
    %3865 = vmax.xlane.f32.xlu0 %v3864
    %v3866 = vpop.xlane.xlu0 %3865
    %v3867 = vsel %vm1378, %v3863, -inf
    %3868 = vmax.xlane.f32.xlu0 %v3867
    %v3869 = vpop.xlane.xlu0 %3868
    %v3870 = vsub.f32 %v3862, %v3866
    %v3871 = vsub.f32 %v3863, %v3869
    %v3872 = vmul.f32 %v3870, 1.442695
    %v3873 = vpow.pop %v3872
    %v3874 = vmul.f32 %v3871, 1.442695
    %v3875 = vpow.pop %v3874
    %v3876 = vsel %vm1367, %v3873, 0.0
    %v3877 = vsel %vm1368, %v3875, 0.0
    %v3878 = vsel %vm1378, %v3876, 0.0
    %3879 = vadd.xlane.f32.xlu0 %v3878
    %v3880 = vpop.xlane.xlu0 %3879
    %v3881 = vsel %vm1378, %v3877, 0.0
    %3882 = vadd.xlane.f32.xlu0 %v3881
    %v3883 = vpop.xlane.xlu0 %3882
    %v3884 = vrcp.pop %v3880
    %v3885 = vrcp.pop %v3883
    %v3886 = vmul.f32 %v3876, %v3884
    %v3887 = vmul.f32 %v3877, %v3885
    %3890 = vrot.lane.b32.xlu0 %v3563, 120
    %v3891 = vpop.permute.xlu0 %3890
    %3892 = vrot.lane.b32.xlu0 %v3568, 120
    %v3893 = vpop.permute.xlu0 %3892
    %v3897 = vsel %vm1378, %v3886, 0
    %v3900 = vsel %vm1378, %v3887, 0
    %3902 = vmatprep.subr.mxu0 0.0
    %3903 = vmatpush1.msra.mxu0 %v3891
    %3904 = vmatprep.subr.mxu0 0.0
    %3905 = vmatpush1.msra.mxu0 %v3893
    %3906 = vmatprep.subr.mxu0 0.0
    %3907 = vmatpush1.msra.mxu0 0.0
    %3908 = vmatprep.subr.mxu0 0.0
    %3909 = vmatpush1.msra.mxu0 0.0
    %3910 = vmatprep.subr.mxu0 0.0
    %3911 = vmatpush1.msra.mxu0 0.0
    %3912 = vmatprep.subr.mxu0 0.0
    %3913 = vmatpush1.msra.mxu0 0.0
    %3914 = vmatprep.subr.mxu0 0.0
    %3915 = vmatpush1.msra.mxu0 0.0
    %3916 = vmatprep.subr.mxu0 0.0
    %3917 = vmatpush1.msra.mxu0 0.0
    %3918 = vmatprep.subr.mxu0 0.0
    %3919 = vmatpush1.msra.mxu0 0.0
    %3920 = vmatprep.subr.mxu0 0.0
    %3921 = vmatpush1.msra.mxu0 0.0
    %3922 = vmatprep.subr.mxu0 0.0
    %3923 = vmatpush1.msra.mxu0 0.0
    %3924 = vmatprep.subr.mxu0 0.0
    %3925 = vmatpush1.msra.mxu0 0.0
    %3926 = vmatprep.subr.mxu0 0.0
    %3927 = vmatpush1.msra.mxu0 0.0
    %3928 = vmatprep.subr.mxu0 0.0
    %3929 = vmatpush1.msra.mxu0 0.0
    %3930 = vmatprep.subr.mxu0 0.0
    %3931 = vmatpush1.msra.mxu0 0.0
    %3932 = vmatprep.subr.mxu0 0.0
    %3933 = vmatpush1.msra.mxu0 0.0
    %3934 = vmatprep.subr.mxu0 0.0
    %3935 = vmatpush1.msra.mxu0 0.0
    %3936 = vmatprep.subr.mxu0 0.0
    %3937 = vmatpush1.msra.mxu0 0.0
    %3938 = vmatprep.subr.mxu0 0.0
    %3939 = vmatpush1.msra.mxu0 0.0
    %3940 = vmatprep.subr.mxu0 0.0
    %3941 = vmatpush1.msra.mxu0 0.0
    %3942 = vmatprep.subr.mxu0 0.0
    %3943 = vmatpush1.msra.mxu0 0.0
    %3944 = vmatprep.subr.mxu0 0.0
    %3945 = vmatpush1.msra.mxu0 0.0
    %3946 = vmatprep.subr.mxu0 0.0
    %3947 = vmatpush1.msra.mxu0 0.0
    %3948 = vmatprep.subr.mxu0 0.0
    %3949 = vmatpush1.msra.mxu0 0.0
    %3950 = vmatprep.subr.mxu0 0.0
    %3951 = vmatpush1.msra.mxu0 0.0
    %3952 = vmatprep.subr.mxu0 0.0
    %3953 = vmatpush1.msra.mxu0 0.0
    %3954 = vmatprep.subr.mxu0 0.0
    %3955 = vmatpush1.msra.mxu0 0.0
    %3956 = vmatprep.subr.mxu0 0.0
    %3957 = vmatpush1.msra.mxu0 0.0
    %3958 = vmatprep.subr.mxu0 0.0
    %3959 = vmatpush1.msra.mxu0 0.0
    %3960 = vmatprep.subr.mxu0 0.0
    %3961 = vmatpush1.msra.mxu0 0.0
    %3962 = vmatprep.subr.mxu0 0.0
    %3963 = vmatpush1.msra.mxu0 0.0
    %3964 = vmatprep.subr.mxu0 0.0
    %3965 = vmatpush1.msra.mxu0 0.0
    %3966 = vmatprep.mubr.f32.mxu0 0.0
    %3967 = vmatmul.mubr.f32.gmra.mrb[0].mxu0 %v3897
    %v3968 = vpop.f32.mrb[0].mxu0
    %v3969 = vadd.f32 0.0, %v3968
    %v3970 = vpop.f32.mrb[0].mxu0
    %3971 = vmatprep.mubr.f32.mxu0 0.0
    %3972 = vmatmul.mubr.f32.gmra.mrb[0].mxu0 %v3900
    %v3973 = vpop.f32.mrb[0].mxu0
    %v3974 = vadd.f32 0.0, %v3973
    %v3975 = vpop.f32.mrb[0].mxu0
    %3976 = vdwg.mxu0
    %s3977 = scalar_lea.vmem [#allocation11], 24
    %v3978 = vld [vmem:[%s3977] sm:$0xff]
    %v3980 = vsel %vm1628, %v3969, 0
    %v3983 = vsel %vm1628, %v3974, 0
    %3985 = vmatprep.subr.mxu0 0.0
    %3986 = vmatpush1.msra.mxu0 %v3978
    %3987 = vmatprep.subr.mxu0 0.0
    %3988 = vmatpush1.msra.mxu0 0.0
    %3989 = vmatprep.subr.mxu0 0.0
    %3990 = vmatpush1.msra.mxu0 0.0
    %3991 = vmatprep.subr.mxu0 0.0
    %3992 = vmatpush1.msra.mxu0 0.0
    %3993 = vmatprep.subr.mxu0 0.0
    %3994 = vmatpush1.msra.mxu0 0.0
    %3995 = vmatprep.subr.mxu0 0.0
    %3996 = vmatpush1.msra.mxu0 0.0
    %3997 = vmatprep.subr.mxu0 0.0
    %3998 = vmatpush1.msra.mxu0 0.0
    %3999 = vmatprep.subr.mxu0 0.0
    %4000 = vmatpush1.msra.mxu0 0.0
    %4001 = vmatprep.subr.mxu0 0.0
    %4002 = vmatpush1.msra.mxu0 0.0
    %4003 = vmatprep.subr.mxu0 0.0
    %4004 = vmatpush1.msra.mxu0 0.0
    %4005 = vmatprep.subr.mxu0 0.0
    %4006 = vmatpush1.msra.mxu0 0.0
    %4007 = vmatprep.subr.mxu0 0.0
    %4008 = vmatpush1.msra.mxu0 0.0
    %4009 = vmatprep.subr.mxu0 0.0
    %4010 = vmatpush1.msra.mxu0 0.0
    %4011 = vmatprep.subr.mxu0 0.0
    %4012 = vmatpush1.msra.mxu0 0.0
    %4013 = vmatprep.subr.mxu0 0.0
    %4014 = vmatpush1.msra.mxu0 0.0
    %4015 = vmatprep.subr.mxu0 0.0
    %4016 = vmatpush1.msra.mxu0 0.0
    %4017 = vmatprep.subr.mxu0 0.0
    %4018 = vmatpush1.msra.mxu0 0.0
    %4019 = vmatprep.subr.mxu0 0.0
    %4020 = vmatpush1.msra.mxu0 0.0
    %4021 = vmatprep.subr.mxu0 0.0
    %4022 = vmatpush1.msra.mxu0 0.0
    %4023 = vmatprep.subr.mxu0 0.0
    %4024 = vmatpush1.msra.mxu0 0.0
    %4025 = vmatprep.subr.mxu0 0.0
    %4026 = vmatpush1.msra.mxu0 0.0
    %4027 = vmatprep.subr.mxu0 0.0
    %4028 = vmatpush1.msra.mxu0 0.0
    %4029 = vmatprep.subr.mxu0 0.0
    %4030 = vmatpush1.msra.mxu0 0.0
    %4031 = vmatprep.subr.mxu0 0.0
    %4032 = vmatpush1.msra.mxu0 0.0
    %4033 = vmatprep.subr.mxu0 0.0
    %4034 = vmatpush1.msra.mxu0 0.0
    %4035 = vmatprep.subr.mxu0 0.0
    %4036 = vmatpush1.msra.mxu0 0.0
    %4037 = vmatprep.subr.mxu0 0.0
    %4038 = vmatpush1.msra.mxu0 0.0
    %4039 = vmatprep.subr.mxu0 0.0
    %4040 = vmatpush1.msra.mxu0 0.0
    %4041 = vmatprep.subr.mxu0 0.0
    %4042 = vmatpush1.msra.mxu0 0.0
    %4043 = vmatprep.subr.mxu0 0.0
    %4044 = vmatpush1.msra.mxu0 0.0
    %4045 = vmatprep.subr.mxu0 0.0
    %4046 = vmatpush1.msra.mxu0 0.0
    %4047 = vmatprep.subr.mxu0 0.0
    %4048 = vmatpush1.msra.mxu0 0.0
    %4049 = vmatprep.mubr.f32.mxu0 0.0
    %4050 = vmatmul.mubr.f32.gmra.mrb[0].mxu0 %v3980
    %v4051 = vpop.f32.mrb[0].mxu0
    %v4052 = vadd.f32 0.0, %v4051
    %v4053 = vpop.f32.mrb[0].mxu0
    %4054 = vmatprep.mubr.f32.mxu0 0.0
    %4055 = vmatmul.mubr.f32.gmra.mrb[0].mxu0 %v3983
    %v4056 = vpop.f32.mrb[0].mxu0
    %v4057 = vadd.f32 0.0, %v4056
    %v4058 = vpop.f32.mrb[0].mxu0
    %4059 = vdwg.mxu0
    %v4061 = vsel %vm1628, %v3759, 0
    %v4064 = vsel %vm1628, %v3764, 0
    %4066 = vmatprep.subr.mxu0 0.0
    %4067 = vmatpush1.msra.mxu0 %v3768
    %4068 = vmatprep.subr.mxu0 0.0
    %4069 = vmatpush1.msra.mxu0 0.0
    %4070 = vmatprep.subr.mxu0 0.0
    %4071 = vmatpush1.msra.mxu0 0.0
    %4072 = vmatprep.subr.mxu0 0.0
    %4073 = vmatpush1.msra.mxu0 0.0
    %4074 = vmatprep.subr.mxu0 0.0
    %4075 = vmatpush1.msra.mxu0 0.0
    %4076 = vmatprep.subr.mxu0 0.0
    %4077 = vmatpush1.msra.mxu0 0.0
    %4078 = vmatprep.subr.mxu0 0.0
    %4079 = vmatpush1.msra.mxu0 0.0
    %4080 = vmatprep.subr.mxu0 0.0
    %4081 = vmatpush1.msra.mxu0 0.0
    %4082 = vmatprep.subr.mxu0 0.0
    %4083 = vmatpush1.msra.mxu0 0.0
    %4084 = vmatprep.subr.mxu0 0.0
    %4085 = vmatpush1.msra.mxu0 0.0
    %4086 = vmatprep.subr.mxu0 0.0
    %4087 = vmatpush1.msra.mxu0 0.0
    %4088 = vmatprep.subr.mxu0 0.0
    %4089 = vmatpush1.msra.mxu0 0.0
    %4090 = vmatprep.subr.mxu0 0.0
    %4091 = vmatpush1.msra.mxu0 0.0
    %4092 = vmatprep.subr.mxu0 0.0
    %4093 = vmatpush1.msra.mxu0 0.0
    %4094 = vmatprep.subr.mxu0 0.0
    %4095 = vmatpush1.msra.mxu0 0.0
    %4096 = vmatprep.subr.mxu0 0.0
    %4097 = vmatpush1.msra.mxu0 0.0
    %4098 = vmatprep.subr.mxu0 0.0
    %4099 = vmatpush1.msra.mxu0 0.0
    %4100 = vmatprep.subr.mxu0 0.0
    %4101 = vmatpush1.msra.mxu0 0.0
    %4102 = vmatprep.subr.mxu0 0.0
    %4103 = vmatpush1.msra.mxu0 0.0
    %4104 = vmatprep.subr.mxu0 0.0
    %4105 = vmatpush1.msra.mxu0 0.0
    %4106 = vmatprep.subr.mxu0 0.0
    %4107 = vmatpush1.msra.mxu0 0.0
    %4108 = vmatprep.subr.mxu0 0.0
    %4109 = vmatpush1.msra.mxu0 0.0
    %4110 = vmatprep.subr.mxu0 0.0
    %4111 = vmatpush1.msra.mxu0 0.0
    %4112 = vmatprep.subr.mxu0 0.0
    %4113 = vmatpush1.msra.mxu0 0.0
    %4114 = vmatprep.subr.mxu0 0.0
    %4115 = vmatpush1.msra.mxu0 0.0
    %4116 = vmatprep.subr.mxu0 0.0
    %4117 = vmatpush1.msra.mxu0 0.0
    %4118 = vmatprep.subr.mxu0 0.0
    %4119 = vmatpush1.msra.mxu0 0.0
    %4120 = vmatprep.subr.mxu0 0.0
    %4121 = vmatpush1.msra.mxu0 0.0
    %4122 = vmatprep.subr.mxu0 0.0
    %4123 = vmatpush1.msra.mxu0 0.0
    %4124 = vmatprep.subr.mxu0 0.0
    %4125 = vmatpush1.msra.mxu0 0.0
    %4126 = vmatprep.subr.mxu0 0.0
    %4127 = vmatpush1.msra.mxu0 0.0
    %4128 = vmatprep.subr.mxu0 0.0
    %4129 = vmatpush1.msra.mxu0 0.0
    %4130 = vmatprep.mubr.f32.mxu0 0.0
    %4131 = vmatmul.mubr.f32.gmra.mrb[0].mxu0 %v4061
    %v4132 = vpop.f32.mrb[0].mxu0
    %v4133 = vadd.f32 %v4052, %v4132
    %v4134 = vpop.f32.mrb[0].mxu0
    %4135 = vmatprep.mubr.f32.mxu0 0.0
    %4136 = vmatmul.mubr.f32.gmra.mrb[0].mxu0 %v4064
    %v4137 = vpop.f32.mrb[0].mxu0
    %v4138 = vadd.f32 %v4057, %v4137
    %v4139 = vpop.f32.mrb[0].mxu0
    %4140 = vdwg.mxu0
    %s4141 = scalar_lea.vmem [#allocation13], 1
    %v4142 = vld [vmem:[%s4141] sm:$0x1]
    %v4144 = vlaneseq
    %v4145 = vshrl.u32 %v4144, 7
    %v4146 = vsub.s32 0, %v4145
    %v4147 = vrot.slane %v4142, %v4146
    %v4149 = vadd.f32 %v4133, %v4147
    %v4150 = vadd.f32 %v4138, %v4147
    %v4151 = vadd.f32 %v3305, %v4149
    %v4152 = vadd.f32 %v3306, %v4150
    %s4153 = scalar_lea.vmem [#allocation14], 1
    %v4154 = vld [vmem:[%s4153] sm:$0x1]
    %s4155 = scalar_lea.vmem [#allocation16], 1
    %v4156 = vld [vmem:[%s4155] sm:$0x1]
    %v4157 = vsel %vm1378, %v4151, 0.0
    %4158 = vadd.xlane.f32.xlu0 %v4157
    %v4159 = vpop.xlane.xlu0 %4158
    %v4160 = vsel %vm1378, %v4152, 0.0
    %4161 = vadd.xlane.f32.xlu0 %v4160
    %v4162 = vpop.xlane.xlu0 %4161
    %v4163 = vmul.f32 %v4159, %v2217
    %v4164 = vmul.f32 %v4162, %v2217
    %v4165 = vsub.f32 %v4151, %v4163
    %v4166 = vsub.f32 %v4152, %v4164
    %v4167 = vmul.f32 %v4165, %v4165
    %v4168 = vmul.f32 %v4166, %v4166
    %v4169 = vsel %vm1378, %v4167, 0.0
    %4170 = vadd.xlane.f32.xlu0 %v4169
    %v4171 = vpop.xlane.xlu0 %4170
    %v4172 = vsel %vm1378, %v4168, 0.0
    %4173 = vadd.xlane.f32.xlu0 %v4172
    %v4174 = vpop.xlane.xlu0 %4173
    %v4175 = vmul.f32 %v4171, %v2217
    %v4176 = vmul.f32 %v4174, %v2217
    %v4177 = vadd.f32 %v4175, 1e-05
    %v4178 = vadd.f32 %v4176, 1e-05
    %v4179 = vrsqrt.pop %v4177
    %v4180 = vrsqrt.pop %v4178
    %v4181 = vmul.f32 %v4165, %v4179
    %v4182 = vmul.f32 %v4166, %v4180
    %v4184 = vlaneseq
    %v4185 = vshrl.u32 %v4184, 7
    %v4186 = vsub.s32 0, %v4185
    %v4187 = vrot.slane %v4154, %v4186
    %v4189 = vmul.f32 %v4181, %v4187
    %v4190 = vmul.f32 %v4182, %v4187
    %v4192 = vlaneseq
    %v4193 = vshrl.u32 %v4192, 7
    %v4194 = vsub.s32 0, %v4193
    %v4195 = vrot.slane %v4156, %v4194
    %v4197 = vadd.f32 %v4189, %v4195
    %v4198 = vadd.f32 %v4190, %v4195
    %v4199 = vpack.c.bf16 %v4198, %v4197
    %s4200 = scalar_lea.vmem [#allocation17], 128
    %v4201 = vld [vmem:[%s4200] sm:$0xff]
    %v4202 = vld [vmem:[%s4200 + $0x8] sm:$0xff]
    %v4203 = vld [vmem:[%s4200 + $0x10] sm:$0xff]
    %v4204 = vld [vmem:[%s4200 + $0x18] sm:$0xff]
    %v4205 = vld [vmem:[%s4200 + $0x20] sm:$0xff]
    %v4206 = vld [vmem:[%s4200 + $0x28] sm:$0xff]
    %v4207 = vld [vmem:[%s4200 + $0x30] sm:$0xff]
    %v4208 = vld [vmem:[%s4200 + $0x38] sm:$0xff]
    %v4209 = vld [vmem:[%s4200 + $0x40] sm:$0xff]
    %v4210 = vld [vmem:[%s4200 + $0x48] sm:$0xff]
    %v4211 = vld [vmem:[%s4200 + $0x50] sm:$0xff]
    %v4212 = vld [vmem:[%s4200 + $0x58] sm:$0xff]
    %v4213 = vld [vmem:[%s4200 + $0x60] sm:$0xff]
    %v4214 = vld [vmem:[%s4200 + $0x68] sm:$0xff]
    %v4215 = vld [vmem:[%s4200 + $0x70] sm:$0xff]
    %v4216 = vld [vmem:[%s4200 + $0x78] sm:$0xff]
    %s4217 = scalar_lea.vmem [#allocation19], 16
    %v4218 = vld [vmem:[%s4217] sm:$0xff]
    %v4219 = vld [vmem:[%s4217 + $0x8] sm:$0xff]
    %v4222 = vlaneseq
    %v4223 = vshrl.u32 %v4222, 7
    %v4224 = vsub.s32 0, %v4223
    %v4225 = vrot.slane %v4218, %v4224
    %v4226 = vlaneseq
    %v4227 = vshrl.u32 %v4226, 7
    %v4228 = vsub.s32 1, %v4227
    %v4229 = vrot.slane %v4218, %v4228
    %v4230 = vlaneseq
    %v4231 = vshrl.u32 %v4230, 7
    %v4232 = vsub.s32 2, %v4231
    %v4233 = vrot.slane %v4218, %v4232
    %v4234 = vlaneseq
    %v4235 = vshrl.u32 %v4234, 7
    %v4236 = vsub.s32 3, %v4235
    %v4237 = vrot.slane %v4218, %v4236
    %v4238 = vlaneseq
    %v4239 = vshrl.u32 %v4238, 7
    %v4240 = vsub.s32 4, %v4239
    %v4241 = vrot.slane %v4218, %v4240
    %v4242 = vlaneseq
    %v4243 = vshrl.u32 %v4242, 7
    %v4244 = vsub.s32 5, %v4243
    %v4245 = vrot.slane %v4218, %v4244
    %v4246 = vlaneseq
    %v4247 = vshrl.u32 %v4246, 7
    %v4248 = vsub.s32 6, %v4247
    %v4249 = vrot.slane %v4218, %v4248
    %v4250 = vlaneseq
    %v4251 = vshrl.u32 %v4250, 7
    %v4252 = vsub.s32 7, %v4251
    %v4253 = vrot.slane %v4218, %v4252
    %v4254 = vlaneseq
    %v4255 = vshrl.u32 %v4254, 7
    %v4256 = vsub.s32 0, %v4255
    %v4257 = vrot.slane %v4219, %v4256
    %v4258 = vlaneseq
    %v4259 = vshrl.u32 %v4258, 7
    %v4260 = vsub.s32 1, %v4259
    %v4261 = vrot.slane %v4219, %v4260
    %v4262 = vlaneseq
    %v4263 = vshrl.u32 %v4262, 7
    %v4264 = vsub.s32 2, %v4263
    %v4265 = vrot.slane %v4219, %v4264
    %v4266 = vlaneseq
    %v4267 = vshrl.u32 %v4266, 7
    %v4268 = vsub.s32 3, %v4267
    %v4269 = vrot.slane %v4219, %v4268
    %v4270 = vlaneseq
    %v4271 = vshrl.u32 %v4270, 7
    %v4272 = vsub.s32 4, %v4271
    %v4273 = vrot.slane %v4219, %v4272
    %v4274 = vlaneseq
    %v4275 = vshrl.u32 %v4274, 7
    %v4276 = vsub.s32 5, %v4275
    %v4277 = vrot.slane %v4219, %v4276
    %v4278 = vlaneseq
    %v4279 = vshrl.u32 %v4278, 7
    %v4280 = vsub.s32 6, %v4279
    %v4281 = vrot.slane %v4219, %v4280
    %v4282 = vlaneseq
    %v4283 = vshrl.u32 %v4282, 7
    %v4284 = vsub.s32 7, %v4283
    %v4285 = vrot.slane %v4219, %v4284
    %v4318 = vunpack.c.l.b16 %v4201
    %v4319 = vunpack.c.h.b16 %v4201
    %v4320 = vunpack.c.l.b16 %v4202
    %v4321 = vunpack.c.h.b16 %v4202
    %v4322 = vunpack.c.l.b16 %v4203
    %v4323 = vunpack.c.h.b16 %v4203
    %v4324 = vunpack.c.l.b16 %v4204
    %v4325 = vunpack.c.h.b16 %v4204
    %v4326 = vunpack.c.l.b16 %v4205
    %v4327 = vunpack.c.h.b16 %v4205
    %v4328 = vunpack.c.l.b16 %v4206
    %v4329 = vunpack.c.h.b16 %v4206
    %v4330 = vunpack.c.l.b16 %v4207
    %v4331 = vunpack.c.h.b16 %v4207
    %v4332 = vunpack.c.l.b16 %v4208
    %v4333 = vunpack.c.h.b16 %v4208
    %v4334 = vunpack.c.l.b16 %v4209
    %v4335 = vunpack.c.h.b16 %v4209
    %v4336 = vunpack.c.l.b16 %v4210
    %v4337 = vunpack.c.h.b16 %v4210
    %v4338 = vunpack.c.l.b16 %v4211
    %v4339 = vunpack.c.h.b16 %v4211
    %v4340 = vunpack.c.l.b16 %v4212
    %v4341 = vunpack.c.h.b16 %v4212
    %v4342 = vunpack.c.l.b16 %v4213
    %v4343 = vunpack.c.h.b16 %v4213
    %v4344 = vunpack.c.l.b16 %v4214
    %v4345 = vunpack.c.h.b16 %v4214
    %v4346 = vunpack.c.l.b16 %v4215
    %v4347 = vunpack.c.h.b16 %v4215
    %v4348 = vunpack.c.l.b16 %v4216
    %v4349 = vunpack.c.h.b16 %v4216
    %v4350 = vpack.c.b16 %v4334, %v4318
    %v4351 = vpack.c.b16 %v4335, %v4319
    %v4352 = vpack.c.b16 %v4336, %v4320
    %v4353 = vpack.c.b16 %v4337, %v4321
    %v4354 = vpack.c.b16 %v4338, %v4322
    %v4355 = vpack.c.b16 %v4339, %v4323
    %v4356 = vpack.c.b16 %v4340, %v4324
    %v4357 = vpack.c.b16 %v4341, %v4325
    %v4358 = vpack.c.b16 %v4342, %v4326
    %v4359 = vpack.c.b16 %v4343, %v4327
    %v4360 = vpack.c.b16 %v4344, %v4328
    %v4361 = vpack.c.b16 %v4345, %v4329
    %v4362 = vpack.c.b16 %v4346, %v4330
    %v4363 = vpack.c.b16 %v4347, %v4331
    %v4364 = vpack.c.b16 %v4348, %v4332
    %v4365 = vpack.c.b16 %v4349, %v4333
    %v4383 = vsel %vm1378, %v4199, 0
    %4385 = vmatprep.subr.bf16.mxu0 %v4351
    %4386 = vmatpush1.bf16.msra.mxu0 %v4350
    %4387 = vmatprep.subr.bf16.mxu0 0
    %4388 = vmatpush1.bf16.msra.mxu0 0
    %4389 = vmatprep.subr.bf16.mxu0 0
    %4390 = vmatpush1.bf16.msra.mxu0 0
    %4391 = vmatprep.subr.bf16.mxu0 0
    %4392 = vmatpush1.bf16.msra.mxu0 0
    %4393 = vmatprep.subr.bf16.mxu0 0
    %4394 = vmatpush1.bf16.msra.mxu0 0
    %4395 = vmatprep.subr.bf16.mxu0 0
    %4396 = vmatpush1.bf16.msra.mxu0 0
    %4397 = vmatprep.subr.bf16.mxu0 0
    %4398 = vmatpush1.bf16.msra.mxu0 0
    %4399 = vmatprep.subr.bf16.mxu0 0
    %4400 = vmatpush1.bf16.msra.mxu0 0
    %4401 = vmatprep.subr.bf16.mxu0 0
    %4402 = vmatpush1.bf16.msra.mxu0 0
    %4403 = vmatprep.subr.bf16.mxu0 0
    %4404 = vmatpush1.bf16.msra.mxu0 0
    %4405 = vmatprep.subr.bf16.mxu0 0
    %4406 = vmatpush1.bf16.msra.mxu0 0
    %4407 = vmatprep.subr.bf16.mxu0 0
    %4408 = vmatpush1.bf16.msra.mxu0 0
    %4409 = vmatprep.subr.bf16.mxu0 0
    %4410 = vmatpush1.bf16.msra.mxu0 0
    %4411 = vmatprep.subr.bf16.mxu0 0
    %4412 = vmatpush1.bf16.msra.mxu0 0
    %4413 = vmatprep.subr.bf16.mxu0 0
    %4414 = vmatpush1.bf16.msra.mxu0 0
    %4415 = vmatprep.subr.bf16.mxu0 0
    %4416 = vmatpush1.bf16.msra.mxu0 0
    %4417 = vmatprep.mubr.bf16.mxu0 0
    %4418 = vmatmul.mubr.bf16.gmra.mrb[0].mxu0 %v4383
    %v4419 = vpop.f32.mrb[0].mxu0
    %v4420 = vadd.f32 %v4225, %v4419
    %v4421 = vpop.f32.mrb[0].mxu0
    %v4422 = vadd.f32 %v4229, %v4421
    %v4423 = vpop.f32.mrb[0].mxu0
    %v4424 = vadd.f32 %v4225, %v4423
    %v4425 = vpop.f32.mrb[0].mxu0
    %v4426 = vadd.f32 %v4229, %v4425
    %4427 = vdwg.mxu0
    %4428 = vmatprep.subr.bf16.mxu0 %v4353
    %4429 = vmatpush1.bf16.msra.mxu0 %v4352
    %4430 = vmatprep.subr.bf16.mxu0 0
    %4431 = vmatpush1.bf16.msra.mxu0 0
    %4432 = vmatprep.subr.bf16.mxu0 0
    %4433 = vmatpush1.bf16.msra.mxu0 0
    %4434 = vmatprep.subr.bf16.mxu0 0
    %4435 = vmatpush1.bf16.msra.mxu0 0
    %4436 = vmatprep.subr.bf16.mxu0 0
    %4437 = vmatpush1.bf16.msra.mxu0 0
    %4438 = vmatprep.subr.bf16.mxu0 0
    %4439 = vmatpush1.bf16.msra.mxu0 0
    %4440 = vmatprep.subr.bf16.mxu0 0
    %4441 = vmatpush1.bf16.msra.mxu0 0
    %4442 = vmatprep.subr.bf16.mxu0 0
    %4443 = vmatpush1.bf16.msra.mxu0 0
    %4444 = vmatprep.subr.bf16.mxu0 0
    %4445 = vmatpush1.bf16.msra.mxu0 0
    %4446 = vmatprep.subr.bf16.mxu0 0
    %4447 = vmatpush1.bf16.msra.mxu0 0
    %4448 = vmatprep.subr.bf16.mxu0 0
    %4449 = vmatpush1.bf16.msra.mxu0 0
    %4450 = vmatprep.subr.bf16.mxu0 0
    %4451 = vmatpush1.bf16.msra.mxu0 0
    %4452 = vmatprep.subr.bf16.mxu0 0
    %4453 = vmatpush1.bf16.msra.mxu0 0
    %4454 = vmatprep.subr.bf16.mxu0 0
    %4455 = vmatpush1.bf16.msra.mxu0 0
    %4456 = vmatprep.subr.bf16.mxu0 0
    %4457 = vmatpush1.bf16.msra.mxu0 0
    %4458 = vmatprep.subr.bf16.mxu0 0
    %4459 = vmatpush1.bf16.msra.mxu0 0
    %4460 = vmatprep.mubr.bf16.mxu0 0
    %4461 = vmatmul.mubr.bf16.gmra.mrb[0].mxu0 %v4383
    %v4462 = vpop.f32.mrb[0].mxu0
    %v4463 = vadd.f32 %v4233, %v4462
    %v4464 = vpop.f32.mrb[0].mxu0
    %v4465 = vadd.f32 %v4237, %v4464
    %v4466 = vpop.f32.mrb[0].mxu0
    %v4467 = vadd.f32 %v4233, %v4466
    %v4468 = vpop.f32.mrb[0].mxu0
    %v4469 = vadd.f32 %v4237, %v4468
    %4470 = vdwg.mxu0
    %4471 = vmatprep.subr.bf16.mxu0 %v4355
    %4472 = vmatpush1.bf16.msra.mxu0 %v4354
    %4473 = vmatprep.subr.bf16.mxu0 0
    %4474 = vmatpush1.bf16.msra.mxu0 0
    %4475 = vmatprep.subr.bf16.mxu0 0
    %4476 = vmatpush1.bf16.msra.mxu0 0
    %4477 = vmatprep.subr.bf16.mxu0 0
    %4478 = vmatpush1.bf16.msra.mxu0 0
    %4479 = vmatprep.subr.bf16.mxu0 0
    %4480 = vmatpush1.bf16.msra.mxu0 0
    %4481 = vmatprep.subr.bf16.mxu0 0
    %4482 = vmatpush1.bf16.msra.mxu0 0
    %4483 = vmatprep.subr.bf16.mxu0 0
    %4484 = vmatpush1.bf16.msra.mxu0 0
    %4485 = vmatprep.subr.bf16.mxu0 0
    %4486 = vmatpush1.bf16.msra.mxu0 0
    %4487 = vmatprep.subr.bf16.mxu0 0
    %4488 = vmatpush1.bf16.msra.mxu0 0
    %4489 = vmatprep.subr.bf16.mxu0 0
    %4490 = vmatpush1.bf16.msra.mxu0 0
    %4491 = vmatprep.subr.bf16.mxu0 0
    %4492 = vmatpush1.bf16.msra.mxu0 0
    %4493 = vmatprep.subr.bf16.mxu0 0
    %4494 = vmatpush1.bf16.msra.mxu0 0
    %4495 = vmatprep.subr.bf16.mxu0 0
    %4496 = vmatpush1.bf16.msra.mxu0 0
    %4497 = vmatprep.subr.bf16.mxu0 0
    %4498 = vmatpush1.bf16.msra.mxu0 0
    %4499 = vmatprep.subr.bf16.mxu0 0
    %4500 = vmatpush1.bf16.msra.mxu0 0
    %4501 = vmatprep.subr.bf16.mxu0 0
    %4502 = vmatpush1.bf16.msra.mxu0 0
    %4503 = vmatprep.mubr.bf16.mxu0 0
    %4504 = vmatmul.mubr.bf16.gmra.mrb[0].mxu0 %v4383
    %v4505 = vpop.f32.mrb[0].mxu0
    %v4506 = vadd.f32 %v4241, %v4505
    %v4507 = vpop.f32.mrb[0].mxu0
    %v4508 = vadd.f32 %v4245, %v4507
    %v4509 = vpop.f32.mrb[0].mxu0
    %v4510 = vadd.f32 %v4241, %v4509
    %v4511 = vpop.f32.mrb[0].mxu0
    %v4512 = vadd.f32 %v4245, %v4511
    %4513 = vdwg.mxu0
    %4514 = vmatprep.subr.bf16.mxu0 %v4357
    %4515 = vmatpush1.bf16.msra.mxu0 %v4356
    %4516 = vmatprep.subr.bf16.mxu0 0
    %4517 = vmatpush1.bf16.msra.mxu0 0
    %4518 = vmatprep.subr.bf16.mxu0 0
    %4519 = vmatpush1.bf16.msra.mxu0 0
    %4520 = vmatprep.subr.bf16.mxu0 0
    %4521 = vmatpush1.bf16.msra.mxu0 0
    %4522 = vmatprep.subr.bf16.mxu0 0
    %4523 = vmatpush1.bf16.msra.mxu0 0
    %4524 = vmatprep.subr.bf16.mxu0 0
    %4525 = vmatpush1.bf16.msra.mxu0 0
    %4526 = vmatprep.subr.bf16.mxu0 0
    %4527 = vmatpush1.bf16.msra.mxu0 0
    %4528 = vmatprep.subr.bf16.mxu0 0
    %4529 = vmatpush1.bf16.msra.mxu0 0
    %4530 = vmatprep.subr.bf16.mxu0 0
    %4531 = vmatpush1.bf16.msra.mxu0 0
    %4532 = vmatprep.subr.bf16.mxu0 0
    %4533 = vmatpush1.bf16.msra.mxu0 0
    %4534 = vmatprep.subr.bf16.mxu0 0
    %4535 = vmatpush1.bf16.msra.mxu0 0
    %4536 = vmatprep.subr.bf16.mxu0 0
    %4537 = vmatpush1.bf16.msra.mxu0 0
    %4538 = vmatprep.subr.bf16.mxu0 0
    %4539 = vmatpush1.bf16.msra.mxu0 0
    %4540 = vmatprep.subr.bf16.mxu0 0
    %4541 = vmatpush1.bf16.msra.mxu0 0
    %4542 = vmatprep.subr.bf16.mxu0 0
    %4543 = vmatpush1.bf16.msra.mxu0 0
    %4544 = vmatprep.subr.bf16.mxu0 0
    %4545 = vmatpush1.bf16.msra.mxu0 0
    %4546 = vmatprep.mubr.bf16.mxu0 0
    %4547 = vmatmul.mubr.bf16.gmra.mrb[0].mxu0 %v4383
    %v4548 = vpop.f32.mrb[0].mxu0
    %v4549 = vadd.f32 %v4249, %v4548
    %v4550 = vpop.f32.mrb[0].mxu0
    %v4551 = vadd.f32 %v4253, %v4550
    %v4552 = vpop.f32.mrb[0].mxu0
    %v4553 = vadd.f32 %v4249, %v4552
    %v4554 = vpop.f32.mrb[0].mxu0
    %v4555 = vadd.f32 %v4253, %v4554
    %4556 = vdwg.mxu0
    %4557 = vmatprep.subr.bf16.mxu0 %v4359
    %4558 = vmatpush1.bf16.msra.mxu0 %v4358
    %4559 = vmatprep.subr.bf16.mxu0 0
    %4560 = vmatpush1.bf16.msra.mxu0 0
    %4561 = vmatprep.subr.bf16.mxu0 0
    %4562 = vmatpush1.bf16.msra.mxu0 0
    %4563 = vmatprep.subr.bf16.mxu0 0
    %4564 = vmatpush1.bf16.msra.mxu0 0
    %4565 = vmatprep.subr.bf16.mxu0 0
    %4566 = vmatpush1.bf16.msra.mxu0 0
    %4567 = vmatprep.subr.bf16.mxu0 0
    %4568 = vmatpush1.bf16.msra.mxu0 0
    %4569 = vmatprep.subr.bf16.mxu0 0
    %4570 = vmatpush1.bf16.msra.mxu0 0
    %4571 = vmatprep.subr.bf16.mxu0 0
    %4572 = vmatpush1.bf16.msra.mxu0 0
    %4573 = vmatprep.subr.bf16.mxu0 0
    %4574 = vmatpush1.bf16.msra.mxu0 0
    %4575 = vmatprep.subr.bf16.mxu0 0
    %4576 = vmatpush1.bf16.msra.mxu0 0
    %4577 = vmatprep.subr.bf16.mxu0 0
    %4578 = vmatpush1.bf16.msra.mxu0 0
    %4579 = vmatprep.subr.bf16.mxu0 0
    %4580 = vmatpush1.bf16.msra.mxu0 0
    %4581 = vmatprep.subr.bf16.mxu0 0
    %4582 = vmatpush1.bf16.msra.mxu0 0
    %4583 = vmatprep.subr.bf16.mxu0 0
    %4584 = vmatpush1.bf16.msra.mxu0 0
    %4585 = vmatprep.subr.bf16.mxu0 0
    %4586 = vmatpush1.bf16.msra.mxu0 0
    %4587 = vmatprep.subr.bf16.mxu0 0
    %4588 = vmatpush1.bf16.msra.mxu0 0
    %4589 = vmatprep.mubr.bf16.mxu0 0
    %4590 = vmatmul.mubr.bf16.gmra.mrb[0].mxu0 %v4383
    %v4591 = vpop.f32.mrb[0].mxu0
    %v4592 = vadd.f32 %v4257, %v4591
    %v4593 = vpop.f32.mrb[0].mxu0
    %v4594 = vadd.f32 %v4261, %v4593
    %v4595 = vpop.f32.mrb[0].mxu0
    %v4596 = vadd.f32 %v4257, %v4595
    %v4597 = vpop.f32.mrb[0].mxu0
    %v4598 = vadd.f32 %v4261, %v4597
    %4599 = vdwg.mxu0
    %4600 = vmatprep.subr.bf16.mxu0 %v4361
    %4601 = vmatpush1.bf16.msra.mxu0 %v4360
    %4602 = vmatprep.subr.bf16.mxu0 0
    %4603 = vmatpush1.bf16.msra.mxu0 0
    %4604 = vmatprep.subr.bf16.mxu0 0
    %4605 = vmatpush1.bf16.msra.mxu0 0
    %4606 = vmatprep.subr.bf16.mxu0 0
    %4607 = vmatpush1.bf16.msra.mxu0 0
    %4608 = vmatprep.subr.bf16.mxu0 0
    %4609 = vmatpush1.bf16.msra.mxu0 0
    %4610 = vmatprep.subr.bf16.mxu0 0
    %4611 = vmatpush1.bf16.msra.mxu0 0
    %4612 = vmatprep.subr.bf16.mxu0 0
    %4613 = vmatpush1.bf16.msra.mxu0 0
    %4614 = vmatprep.subr.bf16.mxu0 0
    %4615 = vmatpush1.bf16.msra.mxu0 0
    %4616 = vmatprep.subr.bf16.mxu0 0
    %4617 = vmatpush1.bf16.msra.mxu0 0
    %4618 = vmatprep.subr.bf16.mxu0 0
    %4619 = vmatpush1.bf16.msra.mxu0 0
    %4620 = vmatprep.subr.bf16.mxu0 0
    %4621 = vmatpush1.bf16.msra.mxu0 0
    %4622 = vmatprep.subr.bf16.mxu0 0
    %4623 = vmatpush1.bf16.msra.mxu0 0
    %4624 = vmatprep.subr.bf16.mxu0 0
    %4625 = vmatpush1.bf16.msra.mxu0 0
    %4626 = vmatprep.subr.bf16.mxu0 0
    %4627 = vmatpush1.bf16.msra.mxu0 0
    %4628 = vmatprep.subr.bf16.mxu0 0
    %4629 = vmatpush1.bf16.msra.mxu0 0
    %4630 = vmatprep.subr.bf16.mxu0 0
    %4631 = vmatpush1.bf16.msra.mxu0 0
    %4632 = vmatprep.mubr.bf16.mxu0 0
    %4633 = vmatmul.mubr.bf16.gmra.mrb[0].mxu0 %v4383
    %v4634 = vpop.f32.mrb[0].mxu0
    %v4635 = vadd.f32 %v4265, %v4634
    %v4636 = vpop.f32.mrb[0].mxu0
    %v4637 = vadd.f32 %v4269, %v4636
    %v4638 = vpop.f32.mrb[0].mxu0
    %v4639 = vadd.f32 %v4265, %v4638
    %v4640 = vpop.f32.mrb[0].mxu0
    %v4641 = vadd.f32 %v4269, %v4640
    %4642 = vdwg.mxu0
    %4643 = vmatprep.subr.bf16.mxu0 %v4363
    %4644 = vmatpush1.bf16.msra.mxu0 %v4362
    %4645 = vmatprep.subr.bf16.mxu0 0
    %4646 = vmatpush1.bf16.msra.mxu0 0
    %4647 = vmatprep.subr.bf16.mxu0 0
    %4648 = vmatpush1.bf16.msra.mxu0 0
    %4649 = vmatprep.subr.bf16.mxu0 0
    %4650 = vmatpush1.bf16.msra.mxu0 0
    %4651 = vmatprep.subr.bf16.mxu0 0
    %4652 = vmatpush1.bf16.msra.mxu0 0
    %4653 = vmatprep.subr.bf16.mxu0 0
    %4654 = vmatpush1.bf16.msra.mxu0 0
    %4655 = vmatprep.subr.bf16.mxu0 0
    %4656 = vmatpush1.bf16.msra.mxu0 0
    %4657 = vmatprep.subr.bf16.mxu0 0
    %4658 = vmatpush1.bf16.msra.mxu0 0
    %4659 = vmatprep.subr.bf16.mxu0 0
    %4660 = vmatpush1.bf16.msra.mxu0 0
    %4661 = vmatprep.subr.bf16.mxu0 0
    %4662 = vmatpush1.bf16.msra.mxu0 0
    %4663 = vmatprep.subr.bf16.mxu0 0
    %4664 = vmatpush1.bf16.msra.mxu0 0
    %4665 = vmatprep.subr.bf16.mxu0 0
    %4666 = vmatpush1.bf16.msra.mxu0 0
    %4667 = vmatprep.subr.bf16.mxu0 0
    %4668 = vmatpush1.bf16.msra.mxu0 0
    %4669 = vmatprep.subr.bf16.mxu0 0
    %4670 = vmatpush1.bf16.msra.mxu0 0
    %4671 = vmatprep.subr.bf16.mxu0 0
    %4672 = vmatpush1.bf16.msra.mxu0 0
    %4673 = vmatprep.subr.bf16.mxu0 0
    %4674 = vmatpush1.bf16.msra.mxu0 0
    %4675 = vmatprep.mubr.bf16.mxu0 0
    %4676 = vmatmul.mubr.bf16.gmra.mrb[0].mxu0 %v4383
    %v4677 = vpop.f32.mrb[0].mxu0
    %v4678 = vadd.f32 %v4273, %v4677
    %v4679 = vpop.f32.mrb[0].mxu0
    %v4680 = vadd.f32 %v4277, %v4679
    %v4681 = vpop.f32.mrb[0].mxu0
    %v4682 = vadd.f32 %v4273, %v4681
    %v4683 = vpop.f32.mrb[0].mxu0
    %v4684 = vadd.f32 %v4277, %v4683
    %4685 = vdwg.mxu0
    %4686 = vmatprep.subr.bf16.mxu0 %v4365
    %4687 = vmatpush1.bf16.msra.mxu0 %v4364
    %4688 = vmatprep.subr.bf16.mxu0 0
    %4689 = vmatpush1.bf16.msra.mxu0 0
    %4690 = vmatprep.subr.bf16.mxu0 0
    %4691 = vmatpush1.bf16.msra.mxu0 0
    %4692 = vmatprep.subr.bf16.mxu0 0
    %4693 = vmatpush1.bf16.msra.mxu0 0
    %4694 = vmatprep.subr.bf16.mxu0 0
    %4695 = vmatpush1.bf16.msra.mxu0 0
    %4696 = vmatprep.subr.bf16.mxu0 0
    %4697 = vmatpush1.bf16.msra.mxu0 0
    %4698 = vmatprep.subr.bf16.mxu0 0
    %4699 = vmatpush1.bf16.msra.mxu0 0
    %4700 = vmatprep.subr.bf16.mxu0 0
    %4701 = vmatpush1.bf16.msra.mxu0 0
    %4702 = vmatprep.subr.bf16.mxu0 0
    %4703 = vmatpush1.bf16.msra.mxu0 0
    %4704 = vmatprep.subr.bf16.mxu0 0
    %4705 = vmatpush1.bf16.msra.mxu0 0
    %4706 = vmatprep.subr.bf16.mxu0 0
    %4707 = vmatpush1.bf16.msra.mxu0 0
    %4708 = vmatprep.subr.bf16.mxu0 0
    %4709 = vmatpush1.bf16.msra.mxu0 0
    %4710 = vmatprep.subr.bf16.mxu0 0
    %4711 = vmatpush1.bf16.msra.mxu0 0
    %4712 = vmatprep.subr.bf16.mxu0 0
    %4713 = vmatpush1.bf16.msra.mxu0 0
    %4714 = vmatprep.subr.bf16.mxu0 0
    %4715 = vmatpush1.bf16.msra.mxu0 0
    %4716 = vmatprep.subr.bf16.mxu0 0
    %4717 = vmatpush1.bf16.msra.mxu0 0
    %4718 = vmatprep.mubr.bf16.mxu0 0
    %4719 = vmatmul.mubr.bf16.gmra.mrb[0].mxu0 %v4383
    %v4720 = vpop.f32.mrb[0].mxu0
    %v4721 = vadd.f32 %v4281, %v4720
    %v4722 = vpop.f32.mrb[0].mxu0
    %v4723 = vadd.f32 %v4285, %v4722
    %v4724 = vpop.f32.mrb[0].mxu0
    %v4725 = vadd.f32 %v4281, %v4724
    %v4726 = vpop.f32.mrb[0].mxu0
    %v4727 = vadd.f32 %v4285, %v4726
    %4728 = vdwg.mxu0
    %v4729 = vmax.f32 %v4420, 0.0
    %v4730 = vmax.f32 %v4422, 0.0
    %v4731 = vmax.f32 %v4463, 0.0
    %v4732 = vmax.f32 %v4465, 0.0
    %v4733 = vmax.f32 %v4506, 0.0
    %v4734 = vmax.f32 %v4508, 0.0
    %v4735 = vmax.f32 %v4549, 0.0
    %v4736 = vmax.f32 %v4551, 0.0
    %v4737 = vmax.f32 %v4592, 0.0
    %v4738 = vmax.f32 %v4594, 0.0
    %v4739 = vmax.f32 %v4635, 0.0
    %v4740 = vmax.f32 %v4637, 0.0
    %v4741 = vmax.f32 %v4678, 0.0
    %v4742 = vmax.f32 %v4680, 0.0
    %v4743 = vmax.f32 %v4721, 0.0
    %v4744 = vmax.f32 %v4723, 0.0
    %v4745 = vmax.f32 %v4424, 0.0
    %v4746 = vmax.f32 %v4426, 0.0
    %v4747 = vmax.f32 %v4467, 0.0
    %v4748 = vmax.f32 %v4469, 0.0
    %v4749 = vmax.f32 %v4510, 0.0
    %v4750 = vmax.f32 %v4512, 0.0
    %v4751 = vmax.f32 %v4553, 0.0
    %v4752 = vmax.f32 %v4555, 0.0
    %v4753 = vmax.f32 %v4596, 0.0
    %v4754 = vmax.f32 %v4598, 0.0
    %v4755 = vmax.f32 %v4639, 0.0
    %v4756 = vmax.f32 %v4641, 0.0
    %v4757 = vmax.f32 %v4682, 0.0
    %v4758 = vmax.f32 %v4684, 0.0
    %v4759 = vmax.f32 %v4725, 0.0
    %v4760 = vmax.f32 %v4727, 0.0
    %v4761 = vpack.c.bf16 %v4745, %v4729
    %v4762 = vpack.c.bf16 %v4746, %v4730
    %v4763 = vpack.c.bf16 %v4747, %v4731
    %v4764 = vpack.c.bf16 %v4748, %v4732
    %v4765 = vpack.c.bf16 %v4749, %v4733
    %v4766 = vpack.c.bf16 %v4750, %v4734
    %v4767 = vpack.c.bf16 %v4751, %v4735
    %v4768 = vpack.c.bf16 %v4752, %v4736
    %v4769 = vpack.c.bf16 %v4753, %v4737
    %v4770 = vpack.c.bf16 %v4754, %v4738
    %v4771 = vpack.c.bf16 %v4755, %v4739
    %v4772 = vpack.c.bf16 %v4756, %v4740
    %v4773 = vpack.c.bf16 %v4757, %v4741
    %v4774 = vpack.c.bf16 %v4758, %v4742
    %v4775 = vpack.c.bf16 %v4759, %v4743
    %v4776 = vpack.c.bf16 %v4760, %v4744
    %s4777 = scalar_lea.vmem [#allocation20], 128
    %v4778 = vld [vmem:[%s4777] sm:$0xff]
    %v4779 = vld [vmem:[%s4777 + $0x8] sm:$0xff]
    %v4780 = vld [vmem:[%s4777 + $0x10] sm:$0xff]
    %v4781 = vld [vmem:[%s4777 + $0x18] sm:$0xff]
    %v4782 = vld [vmem:[%s4777 + $0x20] sm:$0xff]
    %v4783 = vld [vmem:[%s4777 + $0x28] sm:$0xff]
    %v4784 = vld [vmem:[%s4777 + $0x30] sm:$0xff]
    %v4785 = vld [vmem:[%s4777 + $0x38] sm:$0xff]
    %v4786 = vld [vmem:[%s4777 + $0x40] sm:$0xff]
    %v4787 = vld [vmem:[%s4777 + $0x48] sm:$0xff]
    %v4788 = vld [vmem:[%s4777 + $0x50] sm:$0xff]
    %v4789 = vld [vmem:[%s4777 + $0x58] sm:$0xff]
    %v4790 = vld [vmem:[%s4777 + $0x60] sm:$0xff]
    %v4791 = vld [vmem:[%s4777 + $0x68] sm:$0xff]
    %v4792 = vld [vmem:[%s4777 + $0x70] sm:$0xff]
    %v4793 = vld [vmem:[%s4777 + $0x78] sm:$0xff]
    %s4794 = scalar_lea.vmem [#allocation22], 1
    %v4795 = vld [vmem:[%s4794] sm:$0x1]
    %v4797 = vlaneseq
    %v4798 = vshrl.u32 %v4797, 7
    %v4799 = vsub.s32 0, %v4798
    %v4800 = vrot.slane %v4795, %v4799
    %v4818 = vunpack.c.l.b16 %v4778
    %v4819 = vunpack.c.h.b16 %v4778
    %v4820 = vunpack.c.l.b16 %v4779
    %v4821 = vunpack.c.h.b16 %v4779
    %v4822 = vunpack.c.l.b16 %v4780
    %v4823 = vunpack.c.h.b16 %v4780
    %v4824 = vunpack.c.l.b16 %v4781
    %v4825 = vunpack.c.h.b16 %v4781
    %v4826 = vunpack.c.l.b16 %v4782
    %v4827 = vunpack.c.h.b16 %v4782
    %v4828 = vunpack.c.l.b16 %v4783
    %v4829 = vunpack.c.h.b16 %v4783
    %v4830 = vunpack.c.l.b16 %v4784
    %v4831 = vunpack.c.h.b16 %v4784
    %v4832 = vunpack.c.l.b16 %v4785
    %v4833 = vunpack.c.h.b16 %v4785
    %v4834 = vunpack.c.l.b16 %v4786
    %v4835 = vunpack.c.h.b16 %v4786
    %v4836 = vunpack.c.l.b16 %v4787
    %v4837 = vunpack.c.h.b16 %v4787
    %v4838 = vunpack.c.l.b16 %v4788
    %v4839 = vunpack.c.h.b16 %v4788
    %v4840 = vunpack.c.l.b16 %v4789
    %v4841 = vunpack.c.h.b16 %v4789
    %v4842 = vunpack.c.l.b16 %v4790
    %v4843 = vunpack.c.h.b16 %v4790
    %v4844 = vunpack.c.l.b16 %v4791
    %v4845 = vunpack.c.h.b16 %v4791
    %v4846 = vunpack.c.l.b16 %v4792
    %v4847 = vunpack.c.h.b16 %v4792
    %v4848 = vunpack.c.l.b16 %v4793
    %v4849 = vunpack.c.h.b16 %v4793
    %v4850 = vpack.c.b16 %v4834, %v4818
    %v4851 = vpack.c.b16 %v4835, %v4819
    %v4852 = vpack.c.b16 %v4836, %v4820
    %v4853 = vpack.c.b16 %v4837, %v4821
    %v4854 = vpack.c.b16 %v4838, %v4822
    %v4855 = vpack.c.b16 %v4839, %v4823
    %v4856 = vpack.c.b16 %v4840, %v4824
    %v4857 = vpack.c.b16 %v4841, %v4825
    %v4858 = vpack.c.b16 %v4842, %v4826
    %v4859 = vpack.c.b16 %v4843, %v4827
    %v4860 = vpack.c.b16 %v4844, %v4828
    %v4861 = vpack.c.b16 %v4845, %v4829
    %v4862 = vpack.c.b16 %v4846, %v4830
    %v4863 = vpack.c.b16 %v4847, %v4831
    %v4864 = vpack.c.b16 %v4848, %v4832
    %v4865 = vpack.c.b16 %v4849, %v4833
    %4882 = vmatprep.subr.bf16.mxu0 %v4851
    %4883 = vmatpush1.bf16.xpose.msra.mxu0 %v4850
    %4884 = vmatprep.subr.bf16.mxu0 0
    %4885 = vmatpush1.bf16.xpose.msra.mxu0 0
    %4886 = vmatprep.subr.bf16.mxu0 0
    %4887 = vmatpush1.bf16.xpose.msra.mxu0 0
    %4888 = vmatprep.subr.bf16.mxu0 0
    %4889 = vmatpush1.bf16.xpose.msra.mxu0 0
    %4890 = vmatprep.subr.bf16.mxu0 0
    %4891 = vmatpush1.bf16.xpose.msra.mxu0 0
    %4892 = vmatprep.subr.bf16.mxu0 0
    %4893 = vmatpush1.bf16.xpose.msra.mxu0 0
    %4894 = vmatprep.subr.bf16.mxu0 0
    %4895 = vmatpush1.bf16.xpose.msra.mxu0 0
    %4896 = vmatprep.subr.bf16.mxu0 0
    %4897 = vmatpush1.bf16.xpose.msra.mxu0 0
    %4898 = vmatprep.subr.bf16.mxu0 0
    %4899 = vmatpush1.bf16.xpose.msra.mxu0 0
    %4900 = vmatprep.subr.bf16.mxu0 0
    %4901 = vmatpush1.bf16.xpose.msra.mxu0 0
    %4902 = vmatprep.subr.bf16.mxu0 0
    %4903 = vmatpush1.bf16.xpose.msra.mxu0 0
    %4904 = vmatprep.subr.bf16.mxu0 0
    %4905 = vmatpush1.bf16.xpose.msra.mxu0 0
    %4906 = vmatprep.subr.bf16.mxu0 0
    %4907 = vmatpush1.bf16.xpose.msra.mxu0 0
    %4908 = vmatprep.subr.bf16.mxu0 0
    %4909 = vmatpush1.bf16.xpose.msra.mxu0 0
    %4910 = vmatprep.subr.bf16.mxu0 0
    %4911 = vmatpush1.bf16.xpose.msra.mxu0 0
    %4912 = vmatprep.subr.bf16.mxu0 0
    %4913 = vmatpush1.bf16.xpose.msra.mxu0 0
    %4914 = vmatprep.mubr.bf16.mxu0 %v4762
    %4915 = vmatmul.mubr.bf16.gmra.mrb[0].mxu0 %v4761
    %v4916 = vpop.f32.mrb[0].mxu0
    %v4917 = vadd.f32 %v4800, %v4916
    %v4918 = vpop.f32.mrb[0].mxu0
    %v4919 = vpop.f32.mrb[0].mxu0
    %v4920 = vadd.f32 %v4800, %v4919
    %v4921 = vpop.f32.mrb[0].mxu0
    %4922 = vdwg.mxu0
    %4923 = vmatprep.subr.bf16.mxu0 %v4853
    %4924 = vmatpush1.bf16.xpose.msra.mxu0 %v4852
    %4925 = vmatprep.subr.bf16.mxu0 0
    %4926 = vmatpush1.bf16.xpose.msra.mxu0 0
    %4927 = vmatprep.subr.bf16.mxu0 0
    %4928 = vmatpush1.bf16.xpose.msra.mxu0 0
    %4929 = vmatprep.subr.bf16.mxu0 0
    %4930 = vmatpush1.bf16.xpose.msra.mxu0 0
    %4931 = vmatprep.subr.bf16.mxu0 0
    %4932 = vmatpush1.bf16.xpose.msra.mxu0 0
    %4933 = vmatprep.subr.bf16.mxu0 0
    %4934 = vmatpush1.bf16.xpose.msra.mxu0 0
    %4935 = vmatprep.subr.bf16.mxu0 0
    %4936 = vmatpush1.bf16.xpose.msra.mxu0 0
    %4937 = vmatprep.subr.bf16.mxu0 0
    %4938 = vmatpush1.bf16.xpose.msra.mxu0 0
    %4939 = vmatprep.subr.bf16.mxu0 0
    %4940 = vmatpush1.bf16.xpose.msra.mxu0 0
    %4941 = vmatprep.subr.bf16.mxu0 0
    %4942 = vmatpush1.bf16.xpose.msra.mxu0 0
    %4943 = vmatprep.subr.bf16.mxu0 0
    %4944 = vmatpush1.bf16.xpose.msra.mxu0 0
    %4945 = vmatprep.subr.bf16.mxu0 0
    %4946 = vmatpush1.bf16.xpose.msra.mxu0 0
    %4947 = vmatprep.subr.bf16.mxu0 0
    %4948 = vmatpush1.bf16.xpose.msra.mxu0 0
    %4949 = vmatprep.subr.bf16.mxu0 0
    %4950 = vmatpush1.bf16.xpose.msra.mxu0 0
    %4951 = vmatprep.subr.bf16.mxu0 0
    %4952 = vmatpush1.bf16.xpose.msra.mxu0 0
    %4953 = vmatprep.subr.bf16.mxu0 0
    %4954 = vmatpush1.bf16.xpose.msra.mxu0 0
    %4955 = vmatprep.mubr.bf16.mxu0 %v4764
    %4956 = vmatmul.mubr.bf16.gmra.mrb[0].mxu0 %v4763
    %v4957 = vpop.f32.mrb[0].mxu0
    %v4958 = vadd.f32 %v4917, %v4957
    %v4959 = vpop.f32.mrb[0].mxu0
    %v4960 = vpop.f32.mrb[0].mxu0
    %v4961 = vadd.f32 %v4920, %v4960
    %v4962 = vpop.f32.mrb[0].mxu0
    %4963 = vdwg.mxu0
    %4964 = vmatprep.subr.bf16.mxu0 %v4855
    %4965 = vmatpush1.bf16.xpose.msra.mxu0 %v4854
    %4966 = vmatprep.subr.bf16.mxu0 0
    %4967 = vmatpush1.bf16.xpose.msra.mxu0 0
    %4968 = vmatprep.subr.bf16.mxu0 0
    %4969 = vmatpush1.bf16.xpose.msra.mxu0 0
    %4970 = vmatprep.subr.bf16.mxu0 0
    %4971 = vmatpush1.bf16.xpose.msra.mxu0 0
    %4972 = vmatprep.subr.bf16.mxu0 0
    %4973 = vmatpush1.bf16.xpose.msra.mxu0 0
    %4974 = vmatprep.subr.bf16.mxu0 0
    %4975 = vmatpush1.bf16.xpose.msra.mxu0 0
    %4976 = vmatprep.subr.bf16.mxu0 0
    %4977 = vmatpush1.bf16.xpose.msra.mxu0 0
    %4978 = vmatprep.subr.bf16.mxu0 0
    %4979 = vmatpush1.bf16.xpose.msra.mxu0 0
    %4980 = vmatprep.subr.bf16.mxu0 0
    %4981 = vmatpush1.bf16.xpose.msra.mxu0 0
    %4982 = vmatprep.subr.bf16.mxu0 0
    %4983 = vmatpush1.bf16.xpose.msra.mxu0 0
    %4984 = vmatprep.subr.bf16.mxu0 0
    %4985 = vmatpush1.bf16.xpose.msra.mxu0 0
    %4986 = vmatprep.subr.bf16.mxu0 0
    %4987 = vmatpush1.bf16.xpose.msra.mxu0 0
    %4988 = vmatprep.subr.bf16.mxu0 0
    %4989 = vmatpush1.bf16.xpose.msra.mxu0 0
    %4990 = vmatprep.subr.bf16.mxu0 0
    %4991 = vmatpush1.bf16.xpose.msra.mxu0 0
    %4992 = vmatprep.subr.bf16.mxu0 0
    %4993 = vmatpush1.bf16.xpose.msra.mxu0 0
    %4994 = vmatprep.subr.bf16.mxu0 0
    %4995 = vmatpush1.bf16.xpose.msra.mxu0 0
    %4996 = vmatprep.mubr.bf16.mxu0 %v4766
    %4997 = vmatmul.mubr.bf16.gmra.mrb[0].mxu0 %v4765
    %v4998 = vpop.f32.mrb[0].mxu0
    %v4999 = vadd.f32 %v4958, %v4998
    %v5000 = vpop.f32.mrb[0].mxu0
    %v5001 = vpop.f32.mrb[0].mxu0
    %v5002 = vadd.f32 %v4961, %v5001
    %v5003 = vpop.f32.mrb[0].mxu0
    %5004 = vdwg.mxu0
    %5005 = vmatprep.subr.bf16.mxu0 %v4857
    %5006 = vmatpush1.bf16.xpose.msra.mxu0 %v4856
    %5007 = vmatprep.subr.bf16.mxu0 0
    %5008 = vmatpush1.bf16.xpose.msra.mxu0 0
    %5009 = vmatprep.subr.bf16.mxu0 0
    %5010 = vmatpush1.bf16.xpose.msra.mxu0 0
    %5011 = vmatprep.subr.bf16.mxu0 0
    %5012 = vmatpush1.bf16.xpose.msra.mxu0 0
    %5013 = vmatprep.subr.bf16.mxu0 0
    %5014 = vmatpush1.bf16.xpose.msra.mxu0 0
    %5015 = vmatprep.subr.bf16.mxu0 0
    %5016 = vmatpush1.bf16.xpose.msra.mxu0 0
    %5017 = vmatprep.subr.bf16.mxu0 0
    %5018 = vmatpush1.bf16.xpose.msra.mxu0 0
    %5019 = vmatprep.subr.bf16.mxu0 0
    %5020 = vmatpush1.bf16.xpose.msra.mxu0 0
    %5021 = vmatprep.subr.bf16.mxu0 0
    %5022 = vmatpush1.bf16.xpose.msra.mxu0 0
    %5023 = vmatprep.subr.bf16.mxu0 0
    %5024 = vmatpush1.bf16.xpose.msra.mxu0 0
    %5025 = vmatprep.subr.bf16.mxu0 0
    %5026 = vmatpush1.bf16.xpose.msra.mxu0 0
    %5027 = vmatprep.subr.bf16.mxu0 0
    %5028 = vmatpush1.bf16.xpose.msra.mxu0 0
    %5029 = vmatprep.subr.bf16.mxu0 0
    %5030 = vmatpush1.bf16.xpose.msra.mxu0 0
    %5031 = vmatprep.subr.bf16.mxu0 0
    %5032 = vmatpush1.bf16.xpose.msra.mxu0 0
    %5033 = vmatprep.subr.bf16.mxu0 0
    %5034 = vmatpush1.bf16.xpose.msra.mxu0 0
    %5035 = vmatprep.subr.bf16.mxu0 0
    %5036 = vmatpush1.bf16.xpose.msra.mxu0 0
    %5037 = vmatprep.mubr.bf16.mxu0 %v4768
    %5038 = vmatmul.mubr.bf16.gmra.mrb[0].mxu0 %v4767
    %v5039 = vpop.f32.mrb[0].mxu0
    %v5040 = vadd.f32 %v4999, %v5039
    %v5041 = vpop.f32.mrb[0].mxu0
    %v5042 = vpop.f32.mrb[0].mxu0
    %v5043 = vadd.f32 %v5002, %v5042
    %v5044 = vpop.f32.mrb[0].mxu0
    %5045 = vdwg.mxu0
    %5046 = vmatprep.subr.bf16.mxu0 %v4859
    %5047 = vmatpush1.bf16.xpose.msra.mxu0 %v4858
    %5048 = vmatprep.subr.bf16.mxu0 0
    %5049 = vmatpush1.bf16.xpose.msra.mxu0 0
    %5050 = vmatprep.subr.bf16.mxu0 0
    %5051 = vmatpush1.bf16.xpose.msra.mxu0 0
    %5052 = vmatprep.subr.bf16.mxu0 0
    %5053 = vmatpush1.bf16.xpose.msra.mxu0 0
    %5054 = vmatprep.subr.bf16.mxu0 0
    %5055 = vmatpush1.bf16.xpose.msra.mxu0 0
    %5056 = vmatprep.subr.bf16.mxu0 0
    %5057 = vmatpush1.bf16.xpose.msra.mxu0 0
    %5058 = vmatprep.subr.bf16.mxu0 0
    %5059 = vmatpush1.bf16.xpose.msra.mxu0 0
    %5060 = vmatprep.subr.bf16.mxu0 0
    %5061 = vmatpush1.bf16.xpose.msra.mxu0 0
    %5062 = vmatprep.subr.bf16.mxu0 0
    %5063 = vmatpush1.bf16.xpose.msra.mxu0 0
    %5064 = vmatprep.subr.bf16.mxu0 0
    %5065 = vmatpush1.bf16.xpose.msra.mxu0 0
    %5066 = vmatprep.subr.bf16.mxu0 0
    %5067 = vmatpush1.bf16.xpose.msra.mxu0 0
    %5068 = vmatprep.subr.bf16.mxu0 0
    %5069 = vmatpush1.bf16.xpose.msra.mxu0 0
    %5070 = vmatprep.subr.bf16.mxu0 0
    %5071 = vmatpush1.bf16.xpose.msra.mxu0 0
    %5072 = vmatprep.subr.bf16.mxu0 0
    %5073 = vmatpush1.bf16.xpose.msra.mxu0 0
    %5074 = vmatprep.subr.bf16.mxu0 0
    %5075 = vmatpush1.bf16.xpose.msra.mxu0 0
    %5076 = vmatprep.subr.bf16.mxu0 0
    %5077 = vmatpush1.bf16.xpose.msra.mxu0 0
    %5078 = vmatprep.mubr.bf16.mxu0 %v4770
    %5079 = vmatmul.mubr.bf16.gmra.mrb[0].mxu0 %v4769
    %v5080 = vpop.f32.mrb[0].mxu0
    %v5081 = vadd.f32 %v5040, %v5080
    %v5082 = vpop.f32.mrb[0].mxu0
    %v5083 = vpop.f32.mrb[0].mxu0
    %v5084 = vadd.f32 %v5043, %v5083
    %v5085 = vpop.f32.mrb[0].mxu0
    %5086 = vdwg.mxu0
    %5087 = vmatprep.subr.bf16.mxu0 %v4861
    %5088 = vmatpush1.bf16.xpose.msra.mxu0 %v4860
    %5089 = vmatprep.subr.bf16.mxu0 0
    %5090 = vmatpush1.bf16.xpose.msra.mxu0 0
    %5091 = vmatprep.subr.bf16.mxu0 0
    %5092 = vmatpush1.bf16.xpose.msra.mxu0 0
    %5093 = vmatprep.subr.bf16.mxu0 0
    %5094 = vmatpush1.bf16.xpose.msra.mxu0 0
    %5095 = vmatprep.subr.bf16.mxu0 0
    %5096 = vmatpush1.bf16.xpose.msra.mxu0 0
    %5097 = vmatprep.subr.bf16.mxu0 0
    %5098 = vmatpush1.bf16.xpose.msra.mxu0 0
    %5099 = vmatprep.subr.bf16.mxu0 0
    %5100 = vmatpush1.bf16.xpose.msra.mxu0 0
    %5101 = vmatprep.subr.bf16.mxu0 0
    %5102 = vmatpush1.bf16.xpose.msra.mxu0 0
    %5103 = vmatprep.subr.bf16.mxu0 0
    %5104 = vmatpush1.bf16.xpose.msra.mxu0 0
    %5105 = vmatprep.subr.bf16.mxu0 0
    %5106 = vmatpush1.bf16.xpose.msra.mxu0 0
    %5107 = vmatprep.subr.bf16.mxu0 0
    %5108 = vmatpush1.bf16.xpose.msra.mxu0 0
    %5109 = vmatprep.subr.bf16.mxu0 0
    %5110 = vmatpush1.bf16.xpose.msra.mxu0 0
    %5111 = vmatprep.subr.bf16.mxu0 0
    %5112 = vmatpush1.bf16.xpose.msra.mxu0 0
    %5113 = vmatprep.subr.bf16.mxu0 0
    %5114 = vmatpush1.bf16.xpose.msra.mxu0 0
    %5115 = vmatprep.subr.bf16.mxu0 0
    %5116 = vmatpush1.bf16.xpose.msra.mxu0 0
    %5117 = vmatprep.subr.bf16.mxu0 0
    %5118 = vmatpush1.bf16.xpose.msra.mxu0 0
    %5119 = vmatprep.mubr.bf16.mxu0 %v4772
    %5120 = vmatmul.mubr.bf16.gmra.mrb[0].mxu0 %v4771
    %v5121 = vpop.f32.mrb[0].mxu0
    %v5122 = vadd.f32 %v5081, %v5121
    %v5123 = vpop.f32.mrb[0].mxu0
    %v5124 = vpop.f32.mrb[0].mxu0
    %v5125 = vadd.f32 %v5084, %v5124
    %v5126 = vpop.f32.mrb[0].mxu0
    %5127 = vdwg.mxu0
    %5128 = vmatprep.subr.bf16.mxu0 %v4863
    %5129 = vmatpush1.bf16.xpose.msra.mxu0 %v4862
    %5130 = vmatprep.subr.bf16.mxu0 0
    %5131 = vmatpush1.bf16.xpose.msra.mxu0 0
    %5132 = vmatprep.subr.bf16.mxu0 0
    %5133 = vmatpush1.bf16.xpose.msra.mxu0 0
    %5134 = vmatprep.subr.bf16.mxu0 0
    %5135 = vmatpush1.bf16.xpose.msra.mxu0 0
    %5136 = vmatprep.subr.bf16.mxu0 0
    %5137 = vmatpush1.bf16.xpose.msra.mxu0 0
    %5138 = vmatprep.subr.bf16.mxu0 0
    %5139 = vmatpush1.bf16.xpose.msra.mxu0 0
    %5140 = vmatprep.subr.bf16.mxu0 0
    %5141 = vmatpush1.bf16.xpose.msra.mxu0 0
    %5142 = vmatprep.subr.bf16.mxu0 0
    %5143 = vmatpush1.bf16.xpose.msra.mxu0 0
    %5144 = vmatprep.subr.bf16.mxu0 0
    %5145 = vmatpush1.bf16.xpose.msra.mxu0 0
    %5146 = vmatprep.subr.bf16.mxu0 0
    %5147 = vmatpush1.bf16.xpose.msra.mxu0 0
    %5148 = vmatprep.subr.bf16.mxu0 0
    %5149 = vmatpush1.bf16.xpose.msra.mxu0 0
    %5150 = vmatprep.subr.bf16.mxu0 0
    %5151 = vmatpush1.bf16.xpose.msra.mxu0 0
    %5152 = vmatprep.subr.bf16.mxu0 0
    %5153 = vmatpush1.bf16.xpose.msra.mxu0 0
    %5154 = vmatprep.subr.bf16.mxu0 0
    %5155 = vmatpush1.bf16.xpose.msra.mxu0 0
    %5156 = vmatprep.subr.bf16.mxu0 0
    %5157 = vmatpush1.bf16.xpose.msra.mxu0 0
    %5158 = vmatprep.subr.bf16.mxu0 0
    %5159 = vmatpush1.bf16.xpose.msra.mxu0 0
    %5160 = vmatprep.mubr.bf16.mxu0 %v4774
    %5161 = vmatmul.mubr.bf16.gmra.mrb[0].mxu0 %v4773
    %v5162 = vpop.f32.mrb[0].mxu0
    %v5163 = vadd.f32 %v5122, %v5162
    %v5164 = vpop.f32.mrb[0].mxu0
    %v5165 = vpop.f32.mrb[0].mxu0
    %v5166 = vadd.f32 %v5125, %v5165
    %v5167 = vpop.f32.mrb[0].mxu0
    %5168 = vdwg.mxu0
    %5169 = vmatprep.subr.bf16.mxu0 %v4865
    %5170 = vmatpush1.bf16.xpose.msra.mxu0 %v4864
    %5171 = vmatprep.subr.bf16.mxu0 0
    %5172 = vmatpush1.bf16.xpose.msra.mxu0 0
    %5173 = vmatprep.subr.bf16.mxu0 0
    %5174 = vmatpush1.bf16.xpose.msra.mxu0 0
    %5175 = vmatprep.subr.bf16.mxu0 0
    %5176 = vmatpush1.bf16.xpose.msra.mxu0 0
    %5177 = vmatprep.subr.bf16.mxu0 0
    %5178 = vmatpush1.bf16.xpose.msra.mxu0 0
    %5179 = vmatprep.subr.bf16.mxu0 0
    %5180 = vmatpush1.bf16.xpose.msra.mxu0 0
    %5181 = vmatprep.subr.bf16.mxu0 0
    %5182 = vmatpush1.bf16.xpose.msra.mxu0 0
    %5183 = vmatprep.subr.bf16.mxu0 0
    %5184 = vmatpush1.bf16.xpose.msra.mxu0 0
    %5185 = vmatprep.subr.bf16.mxu0 0
    %5186 = vmatpush1.bf16.xpose.msra.mxu0 0
    %5187 = vmatprep.subr.bf16.mxu0 0
    %5188 = vmatpush1.bf16.xpose.msra.mxu0 0
    %5189 = vmatprep.subr.bf16.mxu0 0
    %5190 = vmatpush1.bf16.xpose.msra.mxu0 0
    %5191 = vmatprep.subr.bf16.mxu0 0
    %5192 = vmatpush1.bf16.xpose.msra.mxu0 0
    %5193 = vmatprep.subr.bf16.mxu0 0
    %5194 = vmatpush1.bf16.xpose.msra.mxu0 0
    %5195 = vmatprep.subr.bf16.mxu0 0
    %5196 = vmatpush1.bf16.xpose.msra.mxu0 0
    %5197 = vmatprep.subr.bf16.mxu0 0
    %5198 = vmatpush1.bf16.xpose.msra.mxu0 0
    %5199 = vmatprep.subr.bf16.mxu0 0
    %5200 = vmatpush1.bf16.xpose.msra.mxu0 0
    %5201 = vmatprep.mubr.bf16.mxu0 %v4776
    %5202 = vmatmul.mubr.bf16.gmra.mrb[0].mxu0 %v4775
    %v5203 = vpop.f32.mrb[0].mxu0
    %v5204 = vadd.f32 %v5163, %v5203
    %v5205 = vpop.f32.mrb[0].mxu0
    %v5206 = vpop.f32.mrb[0].mxu0
    %v5207 = vadd.f32 %v5166, %v5206
    %v5208 = vpop.f32.mrb[0].mxu0
    %5209 = vdwg.mxu0
    %v5210 = vadd.f32 %v4197, %v5204
    %v5211 = vadd.f32 %v4198, %v5207
    %s5212 = scalar_lea.vmem [#allocation23], 1
    %v5213 = vld [vmem:[%s5212] sm:$0x1]
    %s5214 = scalar_lea.vmem [#allocation25], 1
    %v5215 = vld [vmem:[%s5214] sm:$0x1]
    %v5216 = vsel %vm1378, %v5210, 0.0
    %5217 = vadd.xlane.f32.xlu0 %v5216
    %v5218 = vpop.xlane.xlu0 %5217
    %v5219 = vsel %vm1378, %v5211, 0.0
    %5220 = vadd.xlane.f32.xlu0 %v5219
    %v5221 = vpop.xlane.xlu0 %5220
    %v5222 = vmul.f32 %v5218, %v2217
    %v5223 = vmul.f32 %v5221, %v2217
    %v5224 = vsub.f32 %v5210, %v5222
    %v5225 = vsub.f32 %v5211, %v5223
    %v5226 = vmul.f32 %v5224, %v5224
    %v5227 = vmul.f32 %v5225, %v5225
    %v5228 = vsel %vm1378, %v5226, 0.0
    %5229 = vadd.xlane.f32.xlu0 %v5228
    %v5230 = vpop.xlane.xlu0 %5229
    %v5231 = vsel %vm1378, %v5227, 0.0
    %5232 = vadd.xlane.f32.xlu0 %v5231
    %v5233 = vpop.xlane.xlu0 %5232
    %v5234 = vmul.f32 %v5230, %v2217
    %v5235 = vmul.f32 %v5233, %v2217
    %v5236 = vadd.f32 %v5234, 1e-05
    %v5237 = vadd.f32 %v5235, 1e-05
    %v5238 = vrsqrt.pop %v5236
    %v5239 = vrsqrt.pop %v5237
    %v5240 = vmul.f32 %v5224, %v5238
    %v5241 = vmul.f32 %v5225, %v5239
    %v5243 = vlaneseq
    %v5244 = vshrl.u32 %v5243, 7
    %v5245 = vsub.s32 0, %v5244
    %v5246 = vrot.slane %v5213, %v5245
    %v5248 = vmul.f32 %v5240, %v5246
    %v5249 = vmul.f32 %v5241, %v5246
    %v5251 = vlaneseq
    %v5252 = vshrl.u32 %v5251, 7
    %v5253 = vsub.s32 0, %v5252
    %v5254 = vrot.slane %v5215, %v5253
    %v5256 = vadd.f32 %v5248, %v5254
    %v5257 = vadd.f32 %v5249, %v5254
    %5258 = vst.msk [vmem:[#allocation26] sm:$0xff] %vm1378, %v5256
    %5259 = vst.msk [vmem:[#allocation26 + $0x8] sm:$0xff] %vm1378, %v5257
    // Predicated region
    $region154: #{encoder_forward.1} parent=1 // pred_check
      _
    $region155: #{encoder_forward.1} parent=1 // pred_check_branch
      %5261 = sbr.rel (0) target = $region157
    $region156: #{encoder_forward.1} parent=1 // pred_region
      %s5263 = ssub.s32 256, 256
      %5264 = vsyncadd [#allocation4], %s5263
      %s5265 = sshll.u32 [#allocation26], 4
      %s5266 = int_to_ptr.vmem [resolvable:$true] %s5265
      %5271 = dma.vmem_to_hbm [thread:$0]  %s5266, 256, %s23, [#allocation4], 128, 128, 8
    $region157: #{encoder_forward.1} parent=1 // pred_fallthru
      _
    // Predicated region
    $region158: #{encoder_forward.1} parent=1 // pred_check
      _
    $region159: #{encoder_forward.1} parent=1 // pred_check_branch
      %5273 = sbr.rel (0) target = $region161
    $region160: #{encoder_forward.1} parent=1 // pred_region
      %5274 = dma.done [#allocation4], 256
    $region161: #{encoder_forward.1} parent=1 // pred_fallthru
      _
    %5275 = vsyncpa [#allocation3], 1
    %5276 = vsyncpa [#allocation6], 1
    %5277 = vsyncpa [#allocation9], 1
    %5278 = vsyncpa [#allocation12], 1
    %5279 = vsyncpa [#allocation15], 1
    %5280 = vsyncpa [#allocation18], 1
    %5281 = vsyncpa [#allocation21], 1
    %5282 = vsyncpa [#allocation24], 1
    %5283 = vsyncpa [#allocation4], 1

</llo_original>
